<compile_context>
chip_gen: v7x
topology: tpu7x:2x2x1
jax: 0.10.0
libtpu: 0.0.40
codegen_flags: <defaults>
</compile_context>

<pallas_src>
import functools

import jax
import jax.numpy as jnp
from jax.experimental import pallas as pl
from jax.experimental.pallas import tpu as pltpu


def _round_up(x, m):
    return ((x + m - 1) // m) * m


# ----------------------------------------------------------------------------
# Pallas kernel: (M, K)-tiled matmul accumulating into the f32 output block,
# with fused shift + activation epilogue applied on the last K step.
# Grid = (M tiles [parallel], K tiles [arbitrary, innermost]).
# ----------------------------------------------------------------------------
def _matmul_fused_kernel(x_ref, w_ref, shift_ref, o_ref, *, act):
    kk = pl.program_id(1)

    @pl.when(kk == 0)
    def _():
        o_ref[...] = jnp.zeros_like(o_ref)

    o_ref[...] += jnp.dot(x_ref[...], w_ref[...],
                          preferred_element_type=jnp.float32)

    @pl.when(kk == pl.num_programs(1) - 1)
    def _():
        z = o_ref[...] + shift_ref[...]
        if act == "leaky":
            z = jnp.where(z >= 0, z, 0.2 * z)
        elif act == "sigmoid":
            z = jax.nn.sigmoid(z)
        o_ref[...] = z


# ----------------------------------------------------------------------------
# JAX glue: im2col patch extraction (pure indexing / reshape, no compute).
# ----------------------------------------------------------------------------
def _im2col(x_nhwc, k, stride, pad):
    n, h, w, c = x_nhwc.shape
    xp = jnp.pad(x_nhwc, ((0, 0), (pad, pad), (pad, pad), (0, 0)))
    ho = (h + 2 * pad - k) // stride + 1
    wo = (w + 2 * pad - k) // stride + 1
    pieces = []
    for i in range(k):
        for j in range(k):
            pieces.append(xp[:, i:i + stride * ho:stride,
                             j:j + stride * wo:stride, :])
    # (N, Ho, Wo, k*k, C) -> (N*Ho*Wo, k*k*C); patch row order is (kh, kw, Cin)
    patches = jnp.stack(pieces, axis=3).reshape(n * ho * wo, k * k * c)
    return patches, ho, wo


def conv2d_pallas(x_nhwc, w, b, scale, shift, *, stride, pad, act):
    """Conv2d(k=4) + bias + per-channel affine + activation via Pallas matmul."""
    cout, cin, kh, kw = w.shape
    n = x_nhwc.shape[0]
    patches, ho, wo = _im2col(x_nhwc, kh, stride, pad)
    m, k_dim = patches.shape

    # PyTorch (Cout, Cin, kh, kw) -> (kh, kw, Cin, Cout) -> (kh*kw*Cin, Cout)
    wmat = jnp.transpose(w, (2, 3, 1, 0)).reshape(kh * kw * cin, cout)

    # Fold eval-mode BN affine into weights and a single shift vector:
    #   (x @ W + b) * scale + shift == x @ (W * scale) + (b * scale + shift)
    wmat = wmat * scale[None, :]
    fused_shift = b * scale + shift

    # Lane-dense output for tiny cout (the final cout=1 layer): pad to 128 so
    # output stores are unmasked; extra lanes are sliced off after the call.
    cout_p = cout if cout >= 64 else 128
    if cout_p != cout:
        wmat = jnp.pad(wmat, ((0, 0), (0, cout_p - cout)))
        fused_shift = jnp.pad(fused_shift, (0, cout_p - cout))

    # Tile sizes: tk matches the 256-wide MXU on v6e/v7x; tm bounds VMEM and
    # gives a "parallel" M axis for megacore.  tm multiple of 16 (bf16 pack).
    tk = 128 if k_dim <= 128 else 256
    kp = _round_up(k_dim, tk)
    tm = min(256, _round_up(m, 16))
    mp = _round_up(m, tm)

    # bf16 MXU operands (f32 accumulation stays inside the kernel).
    patches = jnp.pad(patches, ((0, mp - m), (0, kp - k_dim))).astype(jnp.bfloat16)
    wmat = jnp.pad(wmat, ((0, kp - k_dim), (0, 0))).astype(jnp.bfloat16)
    fused_shift = fused_shift.reshape(1, cout_p).astype(jnp.float32)

    out = pl.pallas_call(
        functools.partial(_matmul_fused_kernel, act=act),
        out_shape=jax.ShapeDtypeStruct((mp, cout_p), jnp.float32),
        grid_spec=pltpu.PrefetchScalarGridSpec(
            num_scalar_prefetch=0,
            grid=(mp // tm, kp // tk),
            in_specs=[
                pl.BlockSpec((tm, tk), lambda mi, kk: (mi, kk)),
                pl.BlockSpec((tk, cout_p), lambda mi, kk: (kk, 0)),
                pl.BlockSpec((1, cout_p), lambda mi, kk: (0, 0)),
            ],
            out_specs=pl.BlockSpec((tm, cout_p), lambda mi, kk: (mi, 0)),
        ),
        compiler_params=pltpu.CompilerParams(
            dimension_semantics=("parallel", "arbitrary")),
    )(patches, wmat, fused_shift)

    out = out[:m, :cout]
    return out.reshape(n, ho, wo, cout)


# ----------------------------------------------------------------------------
# Model: parameters + forward.
# ----------------------------------------------------------------------------
def init_params(key, in_channels=6, nfeature=64):
    # (cin, cout, has_batchnorm) for the 5 conv layers (all kernel_size=4).
    cfg = [
        (in_channels, nfeature, False),
        (nfeature, nfeature * 2, True),
        (nfeature * 2, nfeature * 4, True),
        (nfeature * 4, nfeature * 8, True),
        (nfeature * 8, 1, False),
    ]
    eps = 1e-5
    params = []
    for cin, cout, bn in cfg:
        key, kw_key, kb_key = jax.random.split(key, 3)
        w = jax.random.normal(kw_key, (cout, cin, 4, 4), jnp.float32) * 0.02
        b = jax.random.normal(kb_key, (cout,), jnp.float32) * 0.02
        if bn:
            gamma = jnp.ones((cout,), jnp.float32)
            beta = jnp.zeros((cout,), jnp.float32)
            rmean = jnp.zeros((cout,), jnp.float32)
            rvar = jnp.ones((cout,), jnp.float32)
            scale = gamma / jnp.sqrt(rvar + eps)
            shift = beta - rmean * scale
        else:
            scale = jnp.ones((cout,), jnp.float32)
            shift = jnp.zeros((cout,), jnp.float32)
        params.append(dict(w=w, b=b, scale=scale, shift=shift))
    return params


def pix2pix_discriminator(x_nchw, params):
    # (stride, padding, activation) per layer — matches the PatchGAN blocks:
    #   conv(s2,p1)+LReLU, conv(s2,p1)+BN+LReLU x2, conv(s1,p1)+BN+LReLU,
    #   conv(s1,p1) then sigmoid.
    layer_cfg = [
        (2, 1, "leaky"),
        (2, 1, "leaky"),
        (2, 1, "leaky"),
        (1, 1, "leaky"),
        (1, 1, "sigmoid"),
    ]
    x = jnp.transpose(x_nchw, (0, 2, 3, 1))  # NCHW -> NHWC
    for p, (stride, pad, act) in zip(params, layer_cfg):
        x = conv2d_pallas(x, p["w"], p["b"], p["scale"], p["shift"],
                          stride=stride, pad=pad, act=act)
    return jnp.transpose(x, (0, 3, 1, 2))  # NHWC -> NCHW


# ----------------------------------------------------------------------------
if __name__ == "__main__":
    key = jax.random.PRNGKey(0)
    kx, kp = jax.random.split(key)

    # small input consistent with the module: N=2, C=6, H=W=32
    x = jax.random.normal(kx, (2, 6, 32, 32), jnp.float32)
    params = init_params(kp, in_channels=6, nfeature=64)

    fwd = jax.jit(lambda inp: pix2pix_discriminator(inp, params))
    out = fwd(x)
    jax.block_until_ready(out)

    # 32 -> 16 -> 8 -> 4 -> 3 -> 2 spatial; 1 output channel; values in (0,1)
    assert out.shape == (2, 1, 2, 2), out.shape
    assert bool(jnp.all((out > 0.0) & (out < 1.0)))
    print("KERNEL_OK")
</pallas_src>

<mosaic_0001>
module attributes {stable_mosaic.version = 11 : i64} {
  func.func @_matmul_fused_kernel(%arg0: i32, %arg1: i32, %arg2: memref<256x128xbf16, #tpu.memory_space<vmem>>, %arg3: memref<128x64xbf16, #tpu.memory_space<vmem>>, %arg4: memref<1x64xf32, #tpu.memory_space<vmem>>, %arg5: memref<256x64xf32, #tpu.memory_space<vmem>>) attributes {dimension_semantics = [#tpu.dimension_semantics<parallel>, #tpu.dimension_semantics<arbitrary>], iteration_bounds = array<i64: 2, 1>, scalar_prefetch = 0 : i64, scratch_operands = 0 : i64, tpu.core_type = #tpu.core_type<tc>, window_params = [{transform_indices = @transform_0, window_bounds = array<i64: 256, 128>}, {transform_indices = @transform_1, window_bounds = array<i64: 128, 64>}, {pipeline_mode = #tpu.pipeline_mode<synchronous>, transform_indices = @transform_2, window_bounds = array<i64: 1, 64>}, {transform_indices = @transform_3, window_bounds = array<i64: 256, 64>}]} {
    %c0_i32 = arith.constant 0 : i32
    %0 = arith.cmpi eq, %arg1, %c0_i32 : i32
    %1 = arith.extui %0 : i1 to i32
    %c0_i32_0 = arith.constant 0 : i32
    %2 = arith.cmpi ne, %1, %c0_i32_0 : i32
    scf.if %2 {
      %cst_10 = arith.constant 0.000000e+00 : f32
      %12 = vector.broadcast %cst_10 : f32 to vector<256x64xf32>
      %c0_11 = arith.constant 0 : index
      %c0_12 = arith.constant 0 : index
      %13 = vector.load %arg5[%c0_11, %c0_12] : memref<256x64xf32, #tpu.memory_space<vmem>>, vector<256x64xf32>
      tpu.vector_store %arg5[%c0_11, %c0_12], %12 {strides = array<i32>} : memref<256x64xf32, #tpu.memory_space<vmem>>, vector<256x64xf32>,
    } else {
    }
    %c0 = arith.constant 0 : index
    %c0_1 = arith.constant 0 : index
    %3 = vector.load %arg5[%c0, %c0_1] : memref<256x64xf32, #tpu.memory_space<vmem>>, vector<256x64xf32>
    %c0_2 = arith.constant 0 : index
    %c0_3 = arith.constant 0 : index
    %4 = vector.load %arg2[%c0_2, %c0_3] : memref<256x128xbf16, #tpu.memory_space<vmem>>, vector<256x128xbf16>
    %c0_4 = arith.constant 0 : index
    %c0_5 = arith.constant 0 : index
    %5 = vector.load %arg3[%c0_4, %c0_5] : memref<128x64xbf16, #tpu.memory_space<vmem>>, vector<128x64xbf16>
    %cst = arith.constant dense<0.000000e+00> : vector<256x64xf32>
    %6 = tpu.matmul %4, %5, %cst {dimension_numbers = #tpu.dot_dimension_numbers<[1], [0], [0], [1], [0, 0, 1, 1], [], []>} : vector<256x128xbf16>, vector<128x64xbf16>, vector<256x64xf32> -> vector<256x64xf32>
    %7 = arith.addf %3, %6 : vector<256x64xf32>
    %c0_6 = arith.constant 0 : index
    %c0_7 = arith.constant 0 : index
    %8 = vector.load %arg5[%c0_6, %c0_7] : memref<256x64xf32, #tpu.memory_space<vmem>>, vector<256x64xf32>
    tpu.vector_store %arg5[%c0_6, %c0_7], %7 {strides = array<i32>} : memref<256x64xf32, #tpu.memory_space<vmem>>, vector<256x64xf32>,
    %c0_i32_8 = arith.constant 0 : i32
    %9 = arith.cmpi eq, %arg1, %c0_i32_8 : i32
    %10 = arith.extui %9 : i1 to i32
    %c0_i32_9 = arith.constant 0 : i32
    %11 = arith.cmpi ne, %10, %c0_i32_9 : i32
    scf.if %11 {
      %c0_10 = arith.constant 0 : index
      %c0_11 = arith.constant 0 : index
      %12 = vector.load %arg5[%c0_10, %c0_11] : memref<256x64xf32, #tpu.memory_space<vmem>>, vector<256x64xf32>
      %c0_12 = arith.constant 0 : index
      %c0_13 = arith.constant 0 : index
      %13 = vector.load %arg4[%c0_12, %c0_13] : memref<1x64xf32, #tpu.memory_space<vmem>>, vector<1x64xf32>
      %14 = vector.broadcast %13 : vector<1x64xf32> to vector<256x64xf32>
      %15 = arith.addf %12, %14 : vector<256x64xf32>
      %cst_14 = arith.constant 0.000000e+00 : f32
      %16 = vector.broadcast %cst_14 : f32 to vector<256x64xf32>
      %17 = arith.cmpf oge, %15, %16 : vector<256x64xf32>
      %cst_15 = arith.constant 2.000000e-01 : f32
      %18 = vector.broadcast %cst_15 : f32 to vector<256x64xf32>
      %19 = arith.mulf %18, %15 : vector<256x64xf32>
      %20 = arith.select %17, %15, %19 : vector<256x64xi1>, vector<256x64xf32>
      %c0_16 = arith.constant 0 : index
      %c0_17 = arith.constant 0 : index
      %21 = vector.load %arg5[%c0_16, %c0_17] : memref<256x64xf32, #tpu.memory_space<vmem>>, vector<256x64xf32>
      tpu.vector_store %arg5[%c0_16, %c0_17], %20 {strides = array<i32>} : memref<256x64xf32, #tpu.memory_space<vmem>>, vector<256x64xf32>,
    } else {
    }
    return
  }
  func.func @transform_0(%arg0: i32, %arg1: i32) -> (i32, i32) {
    %c0_i32 = arith.constant 0 : i32
    return %arg0, %arg1 : i32, i32
  }
  func.func @transform_1(%arg0: i32, %arg1: i32) -> (i32, i32) {
    %c0_i32 = arith.constant 0 : i32
    %c0_i32_0 = arith.constant 0 : i32
    return %arg1, %c0_i32 : i32, i32
  }
  func.func @transform_2(%arg0: i32, %arg1: i32) -> (i32, i32) {
    %c0_i32 = arith.constant 0 : i32
    %c0_i32_0 = arith.constant 0 : i32
    %c0_i32_1 = arith.constant 0 : i32
    return %c0_i32, %c0_i32_0 : i32, i32
  }
  func.func @transform_3(%arg0: i32, %arg1: i32) -> (i32, i32) {
    %c0_i32 = arith.constant 0 : i32
    %c0_i32_0 = arith.constant 0 : i32
    return %arg0, %c0_i32 : i32, i32
  }
}

module attributes {stable_mosaic.version = 11 : i64} {
  func.func @_matmul_fused_kernel(%arg0: i32, %arg1: i32, %arg2: memref<128x256xbf16, #tpu.memory_space<vmem>>, %arg3: memref<256x128xbf16, #tpu.memory_space<vmem>>, %arg4: memref<1x128xf32, #tpu.memory_space<vmem>>, %arg5: memref<128x128xf32, #tpu.memory_space<vmem>>) attributes {dimension_semantics = [#tpu.dimension_semantics<parallel>, #tpu.dimension_semantics<arbitrary>], iteration_bounds = array<i64: 1, 4>, scalar_prefetch = 0 : i64, scratch_operands = 0 : i64, tpu.core_type = #tpu.core_type<tc>, window_params = [{transform_indices = @transform_0, window_bounds = array<i64: 128, 256>}, {transform_indices = @transform_1, window_bounds = array<i64: 256, 128>}, {pipeline_mode = #tpu.pipeline_mode<synchronous>, transform_indices = @transform_2, window_bounds = array<i64: 1, 128>}, {transform_indices = @transform_3, window_bounds = array<i64: 128, 128>}]} {
    %c0_i32 = arith.constant 0 : i32
    %0 = arith.cmpi eq, %arg1, %c0_i32 : i32
    %1 = arith.extui %0 : i1 to i32
    %c0_i32_0 = arith.constant 0 : i32
    %2 = arith.cmpi ne, %1, %c0_i32_0 : i32
    scf.if %2 {
      %cst_9 = arith.constant 0.000000e+00 : f32
      %12 = vector.broadcast %cst_9 : f32 to vector<128x128xf32>
      %c0_10 = arith.constant 0 : index
      %c0_11 = arith.constant 0 : index
      %13 = vector.load %arg5[%c0_10, %c0_11] : memref<128x128xf32, #tpu.memory_space<vmem>>, vector<128x128xf32>
      tpu.vector_store %arg5[%c0_10, %c0_11], %12 {strides = array<i32>} : memref<128x128xf32, #tpu.memory_space<vmem>>, vector<128x128xf32>,
    } else {
    }
    %c0 = arith.constant 0 : index
    %c0_1 = arith.constant 0 : index
    %3 = vector.load %arg5[%c0, %c0_1] : memref<128x128xf32, #tpu.memory_space<vmem>>, vector<128x128xf32>
    %c0_2 = arith.constant 0 : index
    %c0_3 = arith.constant 0 : index
    %4 = vector.load %arg2[%c0_2, %c0_3] : memref<128x256xbf16, #tpu.memory_space<vmem>>, vector<128x256xbf16>
    %c0_4 = arith.constant 0 : index
    %c0_5 = arith.constant 0 : index
    %5 = vector.load %arg3[%c0_4, %c0_5] : memref<256x128xbf16, #tpu.memory_space<vmem>>, vector<256x128xbf16>
    %cst = arith.constant dense<0.000000e+00> : vector<128x128xf32>
    %6 = tpu.matmul %4, %5, %cst {dimension_numbers = #tpu.dot_dimension_numbers<[1], [0], [0], [1], [0, 0, 1, 1], [], []>} : vector<128x256xbf16>, vector<256x128xbf16>, vector<128x128xf32> -> vector<128x128xf32>
    %7 = arith.addf %3, %6 : vector<128x128xf32>
    %c0_6 = arith.constant 0 : index
    %c0_7 = arith.constant 0 : index
    %8 = vector.load %arg5[%c0_6, %c0_7] : memref<128x128xf32, #tpu.memory_space<vmem>>, vector<128x128xf32>
    tpu.vector_store %arg5[%c0_6, %c0_7], %7 {strides = array<i32>} : memref<128x128xf32, #tpu.memory_space<vmem>>, vector<128x128xf32>,
    %c3_i32 = arith.constant 3 : i32
    %9 = arith.cmpi eq, %arg1, %c3_i32 : i32
    %10 = arith.extui %9 : i1 to i32
    %c0_i32_8 = arith.constant 0 : i32
    %11 = arith.cmpi ne, %10, %c0_i32_8 : i32
    scf.if %11 {
      %c0_9 = arith.constant 0 : index
      %c0_10 = arith.constant 0 : index
      %12 = vector.load %arg5[%c0_9, %c0_10] : memref<128x128xf32, #tpu.memory_space<vmem>>, vector<128x128xf32>
      %c0_11 = arith.constant 0 : index
      %c0_12 = arith.constant 0 : index
      %13 = vector.load %arg4[%c0_11, %c0_12] : memref<1x128xf32, #tpu.memory_space<vmem>>, vector<1x128xf32>
      %14 = vector.broadcast %13 : vector<1x128xf32> to vector<128x128xf32>
      %15 = arith.addf %12, %14 : vector<128x128xf32>
      %cst_13 = arith.constant 0.000000e+00 : f32
      %16 = vector.broadcast %cst_13 : f32 to vector<128x128xf32>
      %17 = arith.cmpf oge, %15, %16 : vector<128x128xf32>
      %cst_14 = arith.constant 2.000000e-01 : f32
      %18 = vector.broadcast %cst_14 : f32 to vector<128x128xf32>
      %19 = arith.mulf %18, %15 : vector<128x128xf32>
      %20 = arith.select %17, %15, %19 : vector<128x128xi1>, vector<128x128xf32>
      %c0_15 = arith.constant 0 : index
      %c0_16 = arith.constant 0 : index
      %21 = vector.load %arg5[%c0_15, %c0_16] : memref<128x128xf32, #tpu.memory_space<vmem>>, vector<128x128xf32>
      tpu.vector_store %arg5[%c0_15, %c0_16], %20 {strides = array<i32>} : memref<128x128xf32, #tpu.memory_space<vmem>>, vector<128x128xf32>,
    } else {
    }
    return
  }
  func.func @transform_0(%arg0: i32, %arg1: i32) -> (i32, i32) {
    %c0_i32 = arith.constant 0 : i32
    return %arg0, %arg1 : i32, i32
  }
  func.func @transform_1(%arg0: i32, %arg1: i32) -> (i32, i32) {
    %c0_i32 = arith.constant 0 : i32
    %c0_i32_0 = arith.constant 0 : i32
    return %arg1, %c0_i32 : i32, i32
  }
  func.func @transform_2(%arg0: i32, %arg1: i32) -> (i32, i32) {
    %c0_i32 = arith.constant 0 : i32
    %c0_i32_0 = arith.constant 0 : i32
    %c0_i32_1 = arith.constant 0 : i32
    return %c0_i32, %c0_i32_0 : i32, i32
  }
  func.func @transform_3(%arg0: i32, %arg1: i32) -> (i32, i32) {
    %c0_i32 = arith.constant 0 : i32
    %c0_i32_0 = arith.constant 0 : i32
    return %arg0, %c0_i32 : i32, i32
  }
}

module attributes {stable_mosaic.version = 11 : i64} {
  func.func @_matmul_fused_kernel(%arg0: i32, %arg1: i32, %arg2: memref<32x256xbf16, #tpu.memory_space<vmem>>, %arg3: memref<256x256xbf16, #tpu.memory_space<vmem>>, %arg4: memref<1x256xf32, #tpu.memory_space<vmem>>, %arg5: memref<32x256xf32, #tpu.memory_space<vmem>>) attributes {dimension_semantics = [#tpu.dimension_semantics<parallel>, #tpu.dimension_semantics<arbitrary>], iteration_bounds = array<i64: 1, 8>, scalar_prefetch = 0 : i64, scratch_operands = 0 : i64, tpu.core_type = #tpu.core_type<tc>, window_params = [{transform_indices = @transform_0, window_bounds = array<i64: 32, 256>}, {transform_indices = @transform_1, window_bounds = array<i64: 256, 256>}, {pipeline_mode = #tpu.pipeline_mode<synchronous>, transform_indices = @transform_2, window_bounds = array<i64: 1, 256>}, {transform_indices = @transform_3, window_bounds = array<i64: 32, 256>}]} {
    %c0_i32 = arith.constant 0 : i32
    %0 = arith.cmpi eq, %arg1, %c0_i32 : i32
    %1 = arith.extui %0 : i1 to i32
    %c0_i32_0 = arith.constant 0 : i32
    %2 = arith.cmpi ne, %1, %c0_i32_0 : i32
    scf.if %2 {
      %cst_9 = arith.constant 0.000000e+00 : f32
      %12 = vector.broadcast %cst_9 : f32 to vector<32x256xf32>
      %c0_10 = arith.constant 0 : index
      %c0_11 = arith.constant 0 : index
      %13 = vector.load %arg5[%c0_10, %c0_11] : memref<32x256xf32, #tpu.memory_space<vmem>>, vector<32x256xf32>
      tpu.vector_store %arg5[%c0_10, %c0_11], %12 {strides = array<i32>} : memref<32x256xf32, #tpu.memory_space<vmem>>, vector<32x256xf32>,
    } else {
    }
    %c0 = arith.constant 0 : index
    %c0_1 = arith.constant 0 : index
    %3 = vector.load %arg5[%c0, %c0_1] : memref<32x256xf32, #tpu.memory_space<vmem>>, vector<32x256xf32>
    %c0_2 = arith.constant 0 : index
    %c0_3 = arith.constant 0 : index
    %4 = vector.load %arg2[%c0_2, %c0_3] : memref<32x256xbf16, #tpu.memory_space<vmem>>, vector<32x256xbf16>
    %c0_4 = arith.constant 0 : index
    %c0_5 = arith.constant 0 : index
    %5 = vector.load %arg3[%c0_4, %c0_5] : memref<256x256xbf16, #tpu.memory_space<vmem>>, vector<256x256xbf16>
    %cst = arith.constant dense<0.000000e+00> : vector<32x256xf32>
    %6 = tpu.matmul %4, %5, %cst {dimension_numbers = #tpu.dot_dimension_numbers<[1], [0], [0], [1], [0, 0, 1, 1], [], []>} : vector<32x256xbf16>, vector<256x256xbf16>, vector<32x256xf32> -> vector<32x256xf32>
    %7 = arith.addf %3, %6 : vector<32x256xf32>
    %c0_6 = arith.constant 0 : index
    %c0_7 = arith.constant 0 : index
    %8 = vector.load %arg5[%c0_6, %c0_7] : memref<32x256xf32, #tpu.memory_space<vmem>>, vector<32x256xf32>
    tpu.vector_store %arg5[%c0_6, %c0_7], %7 {strides = array<i32>} : memref<32x256xf32, #tpu.memory_space<vmem>>, vector<32x256xf32>,
    %c7_i32 = arith.constant 7 : i32
    %9 = arith.cmpi eq, %arg1, %c7_i32 : i32
    %10 = arith.extui %9 : i1 to i32
    %c0_i32_8 = arith.constant 0 : i32
    %11 = arith.cmpi ne, %10, %c0_i32_8 : i32
    scf.if %11 {
      %c0_9 = arith.constant 0 : index
      %c0_10 = arith.constant 0 : index
      %12 = vector.load %arg5[%c0_9, %c0_10] : memref<32x256xf32, #tpu.memory_space<vmem>>, vector<32x256xf32>
      %c0_11 = arith.constant 0 : index
      %c0_12 = arith.constant 0 : index
      %13 = vector.load %arg4[%c0_11, %c0_12] : memref<1x256xf32, #tpu.memory_space<vmem>>, vector<1x256xf32>
      %14 = vector.broadcast %13 : vector<1x256xf32> to vector<32x256xf32>
      %15 = arith.addf %12, %14 : vector<32x256xf32>
      %cst_13 = arith.constant 0.000000e+00 : f32
      %16 = vector.broadcast %cst_13 : f32 to vector<32x256xf32>
      %17 = arith.cmpf oge, %15, %16 : vector<32x256xf32>
      %cst_14 = arith.constant 2.000000e-01 : f32
      %18 = vector.broadcast %cst_14 : f32 to vector<32x256xf32>
      %19 = arith.mulf %18, %15 : vector<32x256xf32>
      %20 = arith.select %17, %15, %19 : vector<32x256xi1>, vector<32x256xf32>
      %c0_15 = arith.constant 0 : index
      %c0_16 = arith.constant 0 : index
      %21 = vector.load %arg5[%c0_15, %c0_16] : memref<32x256xf32, #tpu.memory_space<vmem>>, vector<32x256xf32>
      tpu.vector_store %arg5[%c0_15, %c0_16], %20 {strides = array<i32>} : memref<32x256xf32, #tpu.memory_space<vmem>>, vector<32x256xf32>,
    } else {
    }
    return
  }
  func.func @transform_0(%arg0: i32, %arg1: i32) -> (i32, i32) {
    %c0_i32 = arith.constant 0 : i32
    return %arg0, %arg1 : i32, i32
  }
  func.func @transform_1(%arg0: i32, %arg1: i32) -> (i32, i32) {
    %c0_i32 = arith.constant 0 : i32
    %c0_i32_0 = arith.constant 0 : i32
    return %arg1, %c0_i32 : i32, i32
  }
  func.func @transform_2(%arg0: i32, %arg1: i32) -> (i32, i32) {
    %c0_i32 = arith.constant 0 : i32
    %c0_i32_0 = arith.constant 0 : i32
    %c0_i32_1 = arith.constant 0 : i32
    return %c0_i32, %c0_i32_0 : i32, i32
  }
  func.func @transform_3(%arg0: i32, %arg1: i32) -> (i32, i32) {
    %c0_i32 = arith.constant 0 : i32
    %c0_i32_0 = arith.constant 0 : i32
    return %arg0, %c0_i32 : i32, i32
  }
}

module attributes {stable_mosaic.version = 11 : i64} {
  func.func @_matmul_fused_kernel(%arg0: i32, %arg1: i32, %arg2: memref<32x256xbf16, #tpu.memory_space<vmem>>, %arg3: memref<256x512xbf16, #tpu.memory_space<vmem>>, %arg4: memref<1x512xf32, #tpu.memory_space<vmem>>, %arg5: memref<32x512xf32, #tpu.memory_space<vmem>>) attributes {dimension_semantics = [#tpu.dimension_semantics<parallel>, #tpu.dimension_semantics<arbitrary>], iteration_bounds = array<i64: 1, 16>, scalar_prefetch = 0 : i64, scratch_operands = 0 : i64, tpu.core_type = #tpu.core_type<tc>, window_params = [{transform_indices = @transform_0, window_bounds = array<i64: 32, 256>}, {transform_indices = @transform_1, window_bounds = array<i64: 256, 512>}, {pipeline_mode = #tpu.pipeline_mode<synchronous>, transform_indices = @transform_2, window_bounds = array<i64: 1, 512>}, {transform_indices = @transform_3, window_bounds = array<i64: 32, 512>}]} {
    %c0_i32 = arith.constant 0 : i32
    %0 = arith.cmpi eq, %arg1, %c0_i32 : i32
    %1 = arith.extui %0 : i1 to i32
    %c0_i32_0 = arith.constant 0 : i32
    %2 = arith.cmpi ne, %1, %c0_i32_0 : i32
    scf.if %2 {
      %cst_9 = arith.constant 0.000000e+00 : f32
      %12 = vector.broadcast %cst_9 : f32 to vector<32x512xf32>
      %c0_10 = arith.constant 0 : index
      %c0_11 = arith.constant 0 : index
      %13 = vector.load %arg5[%c0_10, %c0_11] : memref<32x512xf32, #tpu.memory_space<vmem>>, vector<32x512xf32>
      tpu.vector_store %arg5[%c0_10, %c0_11], %12 {strides = array<i32>} : memref<32x512xf32, #tpu.memory_space<vmem>>, vector<32x512xf32>,
    } else {
    }
    %c0 = arith.constant 0 : index
    %c0_1 = arith.constant 0 : index
    %3 = vector.load %arg5[%c0, %c0_1] : memref<32x512xf32, #tpu.memory_space<vmem>>, vector<32x512xf32>
    %c0_2 = arith.constant 0 : index
    %c0_3 = arith.constant 0 : index
    %4 = vector.load %arg2[%c0_2, %c0_3] : memref<32x256xbf16, #tpu.memory_space<vmem>>, vector<32x256xbf16>
    %c0_4 = arith.constant 0 : index
    %c0_5 = arith.constant 0 : index
    %5 = vector.load %arg3[%c0_4, %c0_5] : memref<256x512xbf16, #tpu.memory_space<vmem>>, vector<256x512xbf16>
    %cst = arith.constant dense<0.000000e+00> : vector<32x512xf32>
    %6 = tpu.matmul %4, %5, %cst {dimension_numbers = #tpu.dot_dimension_numbers<[1], [0], [0], [1], [0, 0, 1, 1], [], []>} : vector<32x256xbf16>, vector<256x512xbf16>, vector<32x512xf32> -> vector<32x512xf32>
    %7 = arith.addf %3, %6 : vector<32x512xf32>
    %c0_6 = arith.constant 0 : index
    %c0_7 = arith.constant 0 : index
    %8 = vector.load %arg5[%c0_6, %c0_7] : memref<32x512xf32, #tpu.memory_space<vmem>>, vector<32x512xf32>
    tpu.vector_store %arg5[%c0_6, %c0_7], %7 {strides = array<i32>} : memref<32x512xf32, #tpu.memory_space<vmem>>, vector<32x512xf32>,
    %c15_i32 = arith.constant 15 : i32
    %9 = arith.cmpi eq, %arg1, %c15_i32 : i32
    %10 = arith.extui %9 : i1 to i32
    %c0_i32_8 = arith.constant 0 : i32
    %11 = arith.cmpi ne, %10, %c0_i32_8 : i32
    scf.if %11 {
      %c0_9 = arith.constant 0 : index
      %c0_10 = arith.constant 0 : index
      %12 = vector.load %arg5[%c0_9, %c0_10] : memref<32x512xf32, #tpu.memory_space<vmem>>, vector<32x512xf32>
      %c0_11 = arith.constant 0 : index
      %c0_12 = arith.constant 0 : index
      %13 = vector.load %arg4[%c0_11, %c0_12] : memref<1x512xf32, #tpu.memory_space<vmem>>, vector<1x512xf32>
      %14 = vector.broadcast %13 : vector<1x512xf32> to vector<32x512xf32>
      %15 = arith.addf %12, %14 : vector<32x512xf32>
      %cst_13 = arith.constant 0.000000e+00 : f32
      %16 = vector.broadcast %cst_13 : f32 to vector<32x512xf32>
      %17 = arith.cmpf oge, %15, %16 : vector<32x512xf32>
      %cst_14 = arith.constant 2.000000e-01 : f32
      %18 = vector.broadcast %cst_14 : f32 to vector<32x512xf32>
      %19 = arith.mulf %18, %15 : vector<32x512xf32>
      %20 = arith.select %17, %15, %19 : vector<32x512xi1>, vector<32x512xf32>
      %c0_15 = arith.constant 0 : index
      %c0_16 = arith.constant 0 : index
      %21 = vector.load %arg5[%c0_15, %c0_16] : memref<32x512xf32, #tpu.memory_space<vmem>>, vector<32x512xf32>
      tpu.vector_store %arg5[%c0_15, %c0_16], %20 {strides = array<i32>} : memref<32x512xf32, #tpu.memory_space<vmem>>, vector<32x512xf32>,
    } else {
    }
    return
  }
  func.func @transform_0(%arg0: i32, %arg1: i32) -> (i32, i32) {
    %c0_i32 = arith.constant 0 : i32
    return %arg0, %arg1 : i32, i32
  }
  func.func @transform_1(%arg0: i32, %arg1: i32) -> (i32, i32) {
    %c0_i32 = arith.constant 0 : i32
    %c0_i32_0 = arith.constant 0 : i32
    return %arg1, %c0_i32 : i32, i32
  }
  func.func @transform_2(%arg0: i32, %arg1: i32) -> (i32, i32) {
    %c0_i32 = arith.constant 0 : i32
    %c0_i32_0 = arith.constant 0 : i32
    %c0_i32_1 = arith.constant 0 : i32
    return %c0_i32, %c0_i32_0 : i32, i32
  }
  func.func @transform_3(%arg0: i32, %arg1: i32) -> (i32, i32) {
    %c0_i32 = arith.constant 0 : i32
    %c0_i32_0 = arith.constant 0 : i32
    return %arg0, %c0_i32 : i32, i32
  }
}

module attributes {stable_mosaic.version = 11 : i64} {
  func.func @_matmul_fused_kernel(%arg0: i32, %arg1: i32, %arg2: memref<16x256xbf16, #tpu.memory_space<vmem>>, %arg3: memref<256x128xbf16, #tpu.memory_space<vmem>>, %arg4: memref<1x128xf32, #tpu.memory_space<vmem>>, %arg5: memref<16x128xf32, #tpu.memory_space<vmem>>) attributes {dimension_semantics = [#tpu.dimension_semantics<parallel>, #tpu.dimension_semantics<arbitrary>], iteration_bounds = array<i64: 1, 32>, scalar_prefetch = 0 : i64, scratch_operands = 0 : i64, tpu.core_type = #tpu.core_type<tc>, window_params = [{transform_indices = @transform_0, window_bounds = array<i64: 16, 256>}, {transform_indices = @transform_1, window_bounds = array<i64: 256, 128>}, {pipeline_mode = #tpu.pipeline_mode<synchronous>, transform_indices = @transform_2, window_bounds = array<i64: 1, 128>}, {transform_indices = @transform_3, window_bounds = array<i64: 16, 128>}]} {
    %c0_i32 = arith.constant 0 : i32
    %0 = arith.cmpi eq, %arg1, %c0_i32 : i32
    %1 = arith.extui %0 : i1 to i32
    %c0_i32_0 = arith.constant 0 : i32
    %2 = arith.cmpi ne, %1, %c0_i32_0 : i32
    scf.if %2 {
      %cst_9 = arith.constant 0.000000e+00 : f32
      %12 = vector.broadcast %cst_9 : f32 to vector<16x128xf32>
      %c0_10 = arith.constant 0 : index
      %c0_11 = arith.constant 0 : index
      %13 = vector.load %arg5[%c0_10, %c0_11] : memref<16x128xf32, #tpu.memory_space<vmem>>, vector<16x128xf32>
      tpu.vector_store %arg5[%c0_10, %c0_11], %12 {strides = array<i32>} : memref<16x128xf32, #tpu.memory_space<vmem>>, vector<16x128xf32>,
    } else {
    }
    %c0 = arith.constant 0 : index
    %c0_1 = arith.constant 0 : index
    %3 = vector.load %arg5[%c0, %c0_1] : memref<16x128xf32, #tpu.memory_space<vmem>>, vector<16x128xf32>
    %c0_2 = arith.constant 0 : index
    %c0_3 = arith.constant 0 : index
    %4 = vector.load %arg2[%c0_2, %c0_3] : memref<16x256xbf16, #tpu.memory_space<vmem>>, vector<16x256xbf16>
    %c0_4 = arith.constant 0 : index
    %c0_5 = arith.constant 0 : index
    %5 = vector.load %arg3[%c0_4, %c0_5] : memref<256x128xbf16, #tpu.memory_space<vmem>>, vector<256x128xbf16>
    %cst = arith.constant dense<0.000000e+00> : vector<16x128xf32>
    %6 = tpu.matmul %4, %5, %cst {dimension_numbers = #tpu.dot_dimension_numbers<[1], [0], [0], [1], [0, 0, 1, 1], [], []>} : vector<16x256xbf16>, vector<256x128xbf16>, vector<16x128xf32> -> vector<16x128xf32>
    %7 = arith.addf %3, %6 : vector<16x128xf32>
    %c0_6 = arith.constant 0 : index
    %c0_7 = arith.constant 0 : index
    %8 = vector.load %arg5[%c0_6, %c0_7] : memref<16x128xf32, #tpu.memory_space<vmem>>, vector<16x128xf32>
    tpu.vector_store %arg5[%c0_6, %c0_7], %7 {strides = array<i32>} : memref<16x128xf32, #tpu.memory_space<vmem>>, vector<16x128xf32>,
    %c31_i32 = arith.constant 31 : i32
    %9 = arith.cmpi eq, %arg1, %c31_i32 : i32
    %10 = arith.extui %9 : i1 to i32
    %c0_i32_8 = arith.constant 0 : i32
    %11 = arith.cmpi ne, %10, %c0_i32_8 : i32
    scf.if %11 {
      %c0_9 = arith.constant 0 : index
      %c0_10 = arith.constant 0 : index
      %12 = vector.load %arg5[%c0_9, %c0_10] : memref<16x128xf32, #tpu.memory_space<vmem>>, vector<16x128xf32>
      %c0_11 = arith.constant 0 : index
      %c0_12 = arith.constant 0 : index
      %13 = vector.load %arg4[%c0_11, %c0_12] : memref<1x128xf32, #tpu.memory_space<vmem>>, vector<1x128xf32>
      %14 = vector.broadcast %13 : vector<1x128xf32> to vector<16x128xf32>
      %15 = arith.addf %12, %14 : vector<16x128xf32>
      %16 = arith.negf %15 : vector<16x128xf32>
      %17 = math.exp %16 : vector<16x128xf32>
      %cst_13 = arith.constant 1.000000e+00 : f32
      %18 = vector.broadcast %cst_13 : f32 to vector<16x128xf32>
      %19 = arith.addf %18, %17 : vector<16x128xf32>
      %20 = arith.divf %18, %19 : vector<16x128xf32>
      %c0_14 = arith.constant 0 : index
      %c0_15 = arith.constant 0 : index
      %21 = vector.load %arg5[%c0_14, %c0_15] : memref<16x128xf32, #tpu.memory_space<vmem>>, vector<16x128xf32>
      tpu.vector_store %arg5[%c0_14, %c0_15], %20 {strides = array<i32>} : memref<16x128xf32, #tpu.memory_space<vmem>>, vector<16x128xf32>,
    } else {
    }
    return
  }
  func.func @transform_0(%arg0: i32, %arg1: i32) -> (i32, i32) {
    %c0_i32 = arith.constant 0 : i32
    return %arg0, %arg1 : i32, i32
  }
  func.func @transform_1(%arg0: i32, %arg1: i32) -> (i32, i32) {
    %c0_i32 = arith.constant 0 : i32
    %c0_i32_0 = arith.constant 0 : i32
    return %arg1, %c0_i32 : i32, i32
  }
  func.func @transform_2(%arg0: i32, %arg1: i32) -> (i32, i32) {
    %c0_i32 = arith.constant 0 : i32
    %c0_i32_0 = arith.constant 0 : i32
    %c0_i32_1 = arith.constant 0 : i32
    return %c0_i32, %c0_i32_0 : i32, i32
  }
  func.func @transform_3(%arg0: i32, %arg1: i32) -> (i32, i32) {
    %c0_i32 = arith.constant 0 : i32
    %c0_i32_0 = arith.constant 0 : i32
    return %arg0, %c0_i32 : i32, i32
  }
}

</mosaic_0001>

<llo_original>
// kernel: _lambda_.5
$region0: #{_lambda_.5}
  #allocation0 [shape = 'u32[]', space=smem, size = 0x4, offset = 0x4, fixed_abs, tag = 'smem constant byte address 0x4 - core index']
  #allocation1 [shape = 'u32[144,128]{1,0:T(1,128)}', space=vmem, size = 0x12000, scoped, tag = 'internal scratch']
  %s0 = inlined_call_operand.vmem [shape: bf16[512,128], index: 0, kind: input, shape index: {}]
  %s1 = inlined_call_operand.vmem [shape: bf16[128,64], index: 1, kind: input, shape index: {}]
  %s2 = inlined_call_operand.vmem [shape: f32[1,64], index: 2, kind: input, shape index: {}]
  %s3 = inlined_call_operand.vmem [shape: f32[512,64], index: 3, kind: output, shape index: {}]
  %s4 = sld [smem:[#allocation0]]
  $region53: #{_lambda_.5} parent=0
    _
  %s6 = ssub.s32 1, %s4
  %s7 = scalar_select 0, %s6, %s4
  loop: start=0, step=1, limit=4
  $region2: #{_lambda_.5} parent=0 // loop_pre_header
    _
  $region3: #{_lambda_.5} parent=0 // loop_header
    %s9 = sphi 0, %s13
    %p10 = scmp.ge.s32.totalorder %s9, 4
    %s16 = sphi 0, %s28
    %s17 = sphi 0, %s24
    %s18 = sphi 0, %s16
    %s19 = sphi 0, %s17
    %s20 = sphi 0, %s18
    %s21 = sphi 0, %s19
    %s33 = sphi 0, %s35
    %s36 = sphi 0, %s33
    %s37 = sphi 0, %s36
    %s53 = sphi 0, %s37
    %s59 = sphi 0, %s61
    %s62 = sphi 0, %s59
    %s63 = sphi 0, %s62
    %s79 = sphi 0, %s63
    %s83 = sphi 0, %s83
    %s85 = sphi 0, %s83
    %s86 = sphi 0, %s85
    %s100 = sphi 0, %s86
    %s106 = sphi 0, %s108
    %s109 = sphi 0, %s106
    %s110 = sphi 0, %s109
    %s126 = sphi 0, %s110
  $region4: #{_lambda_.5} parent=0 // loop_header_branch
    %12 = sbr.rel (%p10) target = $region8
  $region5: #{_lambda_.5} parent=0 // loop_body
    %s14 = ssub.s32 %s9, 1
    %s15 = ssub.s32 %s9, 2
    %s22 = sadd.s32 1, %s17
    %p23 = scmp.ge.s32.totalorder %s22, 1
    %s24 = scalar_select %p23, 0, %s22
    %s25 = sadd.s32 1, %s16
    %s26 = scalar_select %p23, %s25, %s16
    %p27 = scmp.ge.s32.totalorder %s26, 2
    %s28 = scalar_select %p27, 0, %s26
    %s29 = ssub.s32 %s16, %s28
    %s30 = ssub.s32 %s17, %s24
    %s31 = sor.u32 %s29, %s30
    %p32 = scmp.eq.s32.totalorder %s31, 0
    %s34 = sadd.s32 %s33, 1
    %s35 = scalar_select %p32, %s33, %s34
    %p38 = pneg %p32
    %p39 = scmp.eq.s32.totalorder %s9, 1
    %p40 = por %p38, %p39
    %p41 = scmp.ne.s32.totalorder %s33, %s36
    %p42 = scmp.eq.s32.totalorder %s9, 0
    %p43 = por %p41, %p42
    %p44 = scmp.ne.s32.totalorder %s33, %s36
    %p45 = scmp.eq.s32.totalorder %s14, 1
    %p46 = por %p44, %p45
    %p47 = scmp.ne.s32.totalorder %s36, %s37
    %p48 = scmp.eq.s32.totalorder %s14, 0
    %p49 = por %p47, %p48
    %p50 = scmp.ne.s32.totalorder %s36, %s37
    %p51 = scmp.eq.s32.totalorder %s15, 1
    %p52 = por %p50, %p51
    %p54 = scmp.ne.s32.totalorder %s37, %s53
    %p55 = scmp.eq.s32.totalorder %s15, 0
    %p56 = por %p54, %p55
    %s57 = ssub.s32 %s17, %s24
    %p58 = scmp.eq.s32.totalorder %s57, 0
    %s60 = sadd.s32 %s59, 1
    %s61 = scalar_select %p58, %s59, %s60
    %p64 = pneg %p58
    %p65 = scmp.eq.s32.totalorder %s9, 1
    %p66 = por %p64, %p65
    %p67 = scmp.ne.s32.totalorder %s59, %s62
    %p68 = scmp.eq.s32.totalorder %s9, 0
    %p69 = por %p67, %p68
    %p70 = scmp.ne.s32.totalorder %s59, %s62
    %p71 = scmp.eq.s32.totalorder %s14, 1
    %p72 = por %p70, %p71
    %p73 = scmp.ne.s32.totalorder %s62, %s63
    %p74 = scmp.eq.s32.totalorder %s14, 0
    %p75 = por %p73, %p74
    %p76 = scmp.ne.s32.totalorder %s62, %s63
    %p77 = scmp.eq.s32.totalorder %s15, 1
    %p78 = por %p76, %p77
    %p80 = scmp.ne.s32.totalorder %s63, %s79
    %p81 = scmp.eq.s32.totalorder %s15, 0
    %p82 = por %p80, %p81
    %s84 = sadd.s32 %s83, 1
    %p87 = scmp.eq.s32.totalorder %s9, 1
    %p88 = scmp.ne.s32.totalorder %s83, %s85
    %p89 = scmp.eq.s32.totalorder %s9, 0
    %p90 = por %p88, %p89
    %p91 = scmp.ne.s32.totalorder %s83, %s85
    %p92 = scmp.eq.s32.totalorder %s14, 1
    %p93 = por %p91, %p92
    %p94 = scmp.ne.s32.totalorder %s85, %s86
    %p95 = scmp.eq.s32.totalorder %s14, 0
    %p96 = por %p94, %p95
    %p97 = scmp.ne.s32.totalorder %s85, %s86
    %p98 = scmp.eq.s32.totalorder %s15, 1
    %p99 = por %p97, %p98
    %p101 = scmp.ne.s32.totalorder %s86, %s100
    %p102 = scmp.eq.s32.totalorder %s15, 0
    %p103 = por %p101, %p102
    %s104 = ssub.s32 %s16, %s28
    %p105 = scmp.eq.s32.totalorder %s104, 0
    %s107 = sadd.s32 %s106, 1
    %s108 = scalar_select %p105, %s106, %s107
    %p111 = pneg %p105
    %p112 = scmp.eq.s32.totalorder %s9, 1
    %p113 = por %p111, %p112
    %p114 = scmp.ne.s32.totalorder %s106, %s109
    %p115 = scmp.eq.s32.totalorder %s9, 0
    %p116 = por %p114, %p115
    %p117 = scmp.ne.s32.totalorder %s106, %s109
    %p118 = scmp.eq.s32.totalorder %s14, 1
    %p119 = por %p117, %p118
    %p120 = scmp.ne.s32.totalorder %s109, %s110
    %p121 = scmp.eq.s32.totalorder %s14, 0
    %p122 = por %p120, %p121
    %p123 = scmp.ne.s32.totalorder %s109, %s110
    %p124 = scmp.eq.s32.totalorder %s15, 1
    %p125 = por %p123, %p124
    %p127 = scmp.ne.s32.totalorder %s110, %s126
    %p128 = scmp.eq.s32.totalorder %s15, 0
    %p129 = por %p127, %p128
    %p130 = scmp.le.s32.totalorder 1, %s9
    %p131 = scmp.lt.s32.totalorder %s9, 3
    %p132 = pnand %p130, %p131
    %p133 = pneg %p132
    // Predicated region
    $region9: #{_lambda_.5} parent=5 // pred_check
      _
    $region10: #{_lambda_.5} parent=5 // pred_check_branch
      %135 = sbr.rel (%p132) target = $region12
    $region11: #{_lambda_.5} parent=5 // pred_region
      %s136 = ssub.s32 %s9, 1
      // Predicated region
      $region13: #{_lambda_.5} parent=11 // pred_check
        %p137 = pneg %p75
      $region14: #{_lambda_.5} parent=11 // pred_check_branch
        %139 = sbr.rel (%p137) target = $region16
      $region15: #{_lambda_.5} parent=11 // pred_region
        %s140 = smul.u32 16, %s19
        %p141 = scmp.lt.s32.totalorder %s140, 15
        %s142 = scalar_select %p141, %s140, 15
        %s143 = smul.addr %s142, 4
        %s144 = scalar_lea.vmem %s1, %s143
        %s145 = smul.u32 16, %s19
      $region16: #{_lambda_.5} parent=11 // pred_fallthru
        _
      // Predicated region
      $region17: #{_lambda_.5} parent=11 // pred_check
        %p146 = pneg %p96
      $region18: #{_lambda_.5} parent=11 // pred_check_branch
        %148 = sbr.rel (%p146) target = $region20
      $region19: #{_lambda_.5} parent=11 // pred_region
        _
      $region20: #{_lambda_.5} parent=11 // pred_fallthru
        _
    $region12: #{_lambda_.5} parent=5 // pred_fallthru
      _
    %p149 = scmp.lt.s32.totalorder %s9, 2
    // Predicated region
    $region21: #{_lambda_.5} parent=5 // pred_check
      %p150 = pneg %p149
    $region22: #{_lambda_.5} parent=5 // pred_check_branch
      %152 = sbr.rel (%p150) target = $region24
    $region23: #{_lambda_.5} parent=5 // pred_region
      // Predicated region
      $region25: #{_lambda_.5} parent=23 // pred_check
        %p153 = pneg %p43
      $region26: #{_lambda_.5} parent=23 // pred_check_branch
        %155 = sbr.rel (%p153) target = $region28
      $region27: #{_lambda_.5} parent=23 // pred_region
        %s156 = smul.u32 32, %s16
        %p157 = scmp.lt.s32.totalorder %s156, 63
        %s158 = scalar_select %p157, %s156, 63
        %p159 = scmp.lt.s32.totalorder %s17, 0
        %s160 = scalar_select %p159, %s17, 0
        %s161 = sadd.s32 %s160, %s158
        %s162 = smul.addr %s161, 4
        %s163 = scalar_lea.vmem %s0, %s162
        %s164 = smul.u32 32, %s16
      $region28: #{_lambda_.5} parent=23 // pred_fallthru
        _
    $region24: #{_lambda_.5} parent=5 // pred_fallthru
      _
    %p165 = scmp.le.s32.totalorder 1, %s9
    %p166 = scmp.lt.s32.totalorder %s9, 3
    %p167 = pnand %p165, %p166
    %p168 = pneg %p167
    // Predicated region
    $region29: #{_lambda_.5} parent=5 // pred_check
      _
    $region30: #{_lambda_.5} parent=5 // pred_check_branch
      %170 = sbr.rel (%p167) target = $region32
    $region31: #{_lambda_.5} parent=5 // pred_region
      %s171 = ssub.s32 %s9, 1
      %s172 = smul.u32 32, %s18
      %p173 = scmp.lt.s32.totalorder %s172, 63
      %s174 = scalar_select %p173, %s172, 63
      %p175 = scmp.lt.s32.totalorder %s19, 0
      %s176 = scalar_select %p175, %s19, 0
      %s177 = sadd.s32 %s176, %s174
      %s178 = smul.addr %s177, 4
      %s179 = scalar_lea.vmem %s0, %s178
      %p180 = pneg %p49
      %p181 = pneg %p46
      %s182 = smul.u32 16, %s19
      %p183 = scmp.lt.s32.totalorder %s182, 15
      %s184 = scalar_select %p183, %s182, 15
      %s185 = smul.addr %s184, 4
      %s186 = scalar_lea.vmem %s1, %s185
      %p187 = pneg %p75
      %p188 = pneg %p72
      %p189 = pneg %p96
      %p190 = pneg %p93
      %p191 = pneg %p122
      %p192 = pneg %p119
      %s193 = smul.u32 32, %s18
      %p194 = scmp.lt.s32.totalorder %s193, 63
      %s195 = scalar_select %p194, %s193, 63
      %s196 = smul.addr %s195, 8
      %s197 = scalar_lea.vmem %s3, %s196
      %s198 = smul.u32 32, %s18
      %p199 = scmp.lt.s32.totalorder %s198, 63
      %s200 = scalar_select %p199, %s198, 63
      %p201 = scmp.lt.s32.totalorder %s19, 0
      %s202 = scalar_select %p201, %s19, 0
      %s203 = sadd.s32 %s202, %s200
      %s204 = smul.addr %s203, 4
      %s205 = scalar_lea.vmem %s0, %s204
      %s206 = smul.u32 32, %s18
      %s207 = smul.u32 16, %s19
      %p208 = scmp.lt.s32.totalorder %s207, 15
      %s209 = scalar_select %p208, %s207, 15
      %s210 = smul.addr %s209, 4
      %s211 = scalar_lea.vmem %s1, %s210
      %s212 = smul.u32 16, %s19
      %s213 = smul.u32 32, %s18
      %p214 = scmp.lt.s32.totalorder %s213, 63
      %s215 = scalar_select %p214, %s213, 63
      %s216 = smul.addr %s215, 8
      %s217 = scalar_lea.vmem %s3, %s216
      %s218 = smul.u32 32, %s18
      %p220 = scmp.eq.s32.totalorder %s19, 0
      // Predicated region
      $region33: #{_lambda_.5} parent=31 // pred_check
        %p221 = pneg %p220
      $region34: #{_lambda_.5} parent=31 // pred_check_branch
        %223 = sbr.rel (%p221) target = $region36
      $region35: #{_lambda_.5} parent=31 // pred_region
        %vm224 = vcmask 523264
        %225 = vst.msk [vmem:[%s217] sm:$0xff] %vm224, 0.0
        %226 = vst.msk [vmem:[%s217 + $0x8] sm:$0xff] %vm224, 0.0
        %227 = vst.msk [vmem:[%s217 + $0x10] sm:$0xff] %vm224, 0.0
        %228 = vst.msk [vmem:[%s217 + $0x18] sm:$0xff] %vm224, 0.0
        %229 = vst.msk [vmem:[%s217 + $0x20] sm:$0xff] %vm224, 0.0
        %230 = vst.msk [vmem:[%s217 + $0x28] sm:$0xff] %vm224, 0.0
        %231 = vst.msk [vmem:[%s217 + $0x30] sm:$0xff] %vm224, 0.0
        %232 = vst.msk [vmem:[%s217 + $0x38] sm:$0xff] %vm224, 0.0
        %233 = vst.msk [vmem:[%s217 + $0x40] sm:$0xff] %vm224, 0.0
        %234 = vst.msk [vmem:[%s217 + $0x48] sm:$0xff] %vm224, 0.0
        %235 = vst.msk [vmem:[%s217 + $0x50] sm:$0xff] %vm224, 0.0
        %236 = vst.msk [vmem:[%s217 + $0x58] sm:$0xff] %vm224, 0.0
        %237 = vst.msk [vmem:[%s217 + $0x60] sm:$0xff] %vm224, 0.0
        %238 = vst.msk [vmem:[%s217 + $0x68] sm:$0xff] %vm224, 0.0
        %239 = vst.msk [vmem:[%s217 + $0x70] sm:$0xff] %vm224, 0.0
        %240 = vst.msk [vmem:[%s217 + $0x78] sm:$0xff] %vm224, 0.0
        %241 = vst.msk [vmem:[%s217 + $0x80] sm:$0xff] %vm224, 0.0
        %242 = vst.msk [vmem:[%s217 + $0x88] sm:$0xff] %vm224, 0.0
        %243 = vst.msk [vmem:[%s217 + $0x90] sm:$0xff] %vm224, 0.0
        %244 = vst.msk [vmem:[%s217 + $0x98] sm:$0xff] %vm224, 0.0
        %245 = vst.msk [vmem:[%s217 + $0xa0] sm:$0xff] %vm224, 0.0
        %246 = vst.msk [vmem:[%s217 + $0xa8] sm:$0xff] %vm224, 0.0
        %247 = vst.msk [vmem:[%s217 + $0xb0] sm:$0xff] %vm224, 0.0
        %248 = vst.msk [vmem:[%s217 + $0xb8] sm:$0xff] %vm224, 0.0
        %249 = vst.msk [vmem:[%s217 + $0xc0] sm:$0xff] %vm224, 0.0
        %250 = vst.msk [vmem:[%s217 + $0xc8] sm:$0xff] %vm224, 0.0
        %251 = vst.msk [vmem:[%s217 + $0xd0] sm:$0xff] %vm224, 0.0
        %252 = vst.msk [vmem:[%s217 + $0xd8] sm:$0xff] %vm224, 0.0
        %253 = vst.msk [vmem:[%s217 + $0xe0] sm:$0xff] %vm224, 0.0
        %254 = vst.msk [vmem:[%s217 + $0xe8] sm:$0xff] %vm224, 0.0
        %255 = vst.msk [vmem:[%s217 + $0xf0] sm:$0xff] %vm224, 0.0
        %256 = vst.msk [vmem:[%s217 + $0xf8] sm:$0xff] %vm224, 0.0
      $region36: #{_lambda_.5} parent=31 // pred_fallthru
        _
      %v257 = vld [vmem:[%s217] sm:$0xff]
      %v258 = vld [vmem:[%s217 + $0x8] sm:$0xff]
      %v259 = vld [vmem:[%s217 + $0x10] sm:$0xff]
      %v260 = vld [vmem:[%s217 + $0x18] sm:$0xff]
      %v261 = vld [vmem:[%s217 + $0x20] sm:$0xff]
      %v262 = vld [vmem:[%s217 + $0x28] sm:$0xff]
      %v263 = vld [vmem:[%s217 + $0x30] sm:$0xff]
      %v264 = vld [vmem:[%s217 + $0x38] sm:$0xff]
      %v265 = vld [vmem:[%s217 + $0x40] sm:$0xff]
      %v266 = vld [vmem:[%s217 + $0x48] sm:$0xff]
      %v267 = vld [vmem:[%s217 + $0x50] sm:$0xff]
      %v268 = vld [vmem:[%s217 + $0x58] sm:$0xff]
      %v269 = vld [vmem:[%s217 + $0x60] sm:$0xff]
      %v270 = vld [vmem:[%s217 + $0x68] sm:$0xff]
      %v271 = vld [vmem:[%s217 + $0x70] sm:$0xff]
      %v272 = vld [vmem:[%s217 + $0x78] sm:$0xff]
      %v273 = vld [vmem:[%s217 + $0x80] sm:$0xff]
      %v274 = vld [vmem:[%s217 + $0x88] sm:$0xff]
      %v275 = vld [vmem:[%s217 + $0x90] sm:$0xff]
      %v276 = vld [vmem:[%s217 + $0x98] sm:$0xff]
      %v277 = vld [vmem:[%s217 + $0xa0] sm:$0xff]
      %v278 = vld [vmem:[%s217 + $0xa8] sm:$0xff]
      %v279 = vld [vmem:[%s217 + $0xb0] sm:$0xff]
      %v280 = vld [vmem:[%s217 + $0xb8] sm:$0xff]
      %v281 = vld [vmem:[%s217 + $0xc0] sm:$0xff]
      %v282 = vld [vmem:[%s217 + $0xc8] sm:$0xff]
      %v283 = vld [vmem:[%s217 + $0xd0] sm:$0xff]
      %v284 = vld [vmem:[%s217 + $0xd8] sm:$0xff]
      %v285 = vld [vmem:[%s217 + $0xe0] sm:$0xff]
      %v286 = vld [vmem:[%s217 + $0xe8] sm:$0xff]
      %v287 = vld [vmem:[%s217 + $0xf0] sm:$0xff]
      %v288 = vld [vmem:[%s217 + $0xf8] sm:$0xff]
      %v289 = vld [vmem:[%s205] sm:$0xf]
      %v290 = vld [vmem:[%s205 + $0x4] sm:$0xf]
      %v291 = vld [vmem:[%s205 + $0x8] sm:$0xf]
      %v292 = vld [vmem:[%s205 + $0xc] sm:$0xf]
      %v293 = vld [vmem:[%s205 + $0x10] sm:$0xf]
      %v294 = vld [vmem:[%s205 + $0x14] sm:$0xf]
      %v295 = vld [vmem:[%s205 + $0x18] sm:$0xf]
      %v296 = vld [vmem:[%s205 + $0x1c] sm:$0xf]
      %v297 = vld [vmem:[%s205 + $0x20] sm:$0xf]
      %v298 = vld [vmem:[%s205 + $0x24] sm:$0xf]
      %v299 = vld [vmem:[%s205 + $0x28] sm:$0xf]
      %v300 = vld [vmem:[%s205 + $0x2c] sm:$0xf]
      %v301 = vld [vmem:[%s205 + $0x30] sm:$0xf]
      %v302 = vld [vmem:[%s205 + $0x34] sm:$0xf]
      %v303 = vld [vmem:[%s205 + $0x38] sm:$0xf]
      %v304 = vld [vmem:[%s205 + $0x3c] sm:$0xf]
      %v305 = vld [vmem:[%s205 + $0x40] sm:$0xf]
      %v306 = vld [vmem:[%s205 + $0x44] sm:$0xf]
      %v307 = vld [vmem:[%s205 + $0x48] sm:$0xf]
      %v308 = vld [vmem:[%s205 + $0x4c] sm:$0xf]
      %v309 = vld [vmem:[%s205 + $0x50] sm:$0xf]
      %v310 = vld [vmem:[%s205 + $0x54] sm:$0xf]
      %v311 = vld [vmem:[%s205 + $0x58] sm:$0xf]
      %v312 = vld [vmem:[%s205 + $0x5c] sm:$0xf]
      %v313 = vld [vmem:[%s205 + $0x60] sm:$0xf]
      %v314 = vld [vmem:[%s205 + $0x64] sm:$0xf]
      %v315 = vld [vmem:[%s205 + $0x68] sm:$0xf]
      %v316 = vld [vmem:[%s205 + $0x6c] sm:$0xf]
      %v317 = vld [vmem:[%s205 + $0x70] sm:$0xf]
      %v318 = vld [vmem:[%s205 + $0x74] sm:$0xf]
      %v319 = vld [vmem:[%s205 + $0x78] sm:$0xf]
      %v320 = vld [vmem:[%s205 + $0x7c] sm:$0xf]
      %v321 = vld [vmem:[%s211] sm:$0xf]
      %v322 = vld [vmem:[%s211 + $0x4] sm:$0xf]
      %v323 = vld [vmem:[%s211 + $0x8] sm:$0xf]
      %v324 = vld [vmem:[%s211 + $0xc] sm:$0xf]
      %v325 = vld [vmem:[%s211 + $0x10] sm:$0xf]
      %v326 = vld [vmem:[%s211 + $0x14] sm:$0xf]
      %v327 = vld [vmem:[%s211 + $0x18] sm:$0xf]
      %v328 = vld [vmem:[%s211 + $0x1c] sm:$0xf]
      %v329 = vld [vmem:[%s211 + $0x20] sm:$0xf]
      %v330 = vld [vmem:[%s211 + $0x24] sm:$0xf]
      %v331 = vld [vmem:[%s211 + $0x28] sm:$0xf]
      %v332 = vld [vmem:[%s211 + $0x2c] sm:$0xf]
      %v333 = vld [vmem:[%s211 + $0x30] sm:$0xf]
      %v334 = vld [vmem:[%s211 + $0x34] sm:$0xf]
      %v335 = vld [vmem:[%s211 + $0x38] sm:$0xf]
      %v336 = vld [vmem:[%s211 + $0x3c] sm:$0xf]
      %v369 = vunpack.c.l.b16 %v289
      %v370 = vunpack.c.l.b16 %v290
      %v371 = vunpack.c.l.b16 %v291
      %v372 = vunpack.c.l.b16 %v292
      %v373 = vunpack.c.l.b16 %v293
      %v374 = vunpack.c.l.b16 %v294
      %v375 = vunpack.c.l.b16 %v295
      %v376 = vunpack.c.l.b16 %v296
      %v377 = vunpack.c.l.b16 %v297
      %v378 = vunpack.c.l.b16 %v298
      %v379 = vunpack.c.l.b16 %v299
      %v380 = vunpack.c.l.b16 %v300
      %v381 = vunpack.c.l.b16 %v301
      %v382 = vunpack.c.l.b16 %v302
      %v383 = vunpack.c.l.b16 %v303
      %v384 = vunpack.c.l.b16 %v304
      %v385 = vunpack.c.l.b16 %v305
      %v386 = vunpack.c.l.b16 %v306
      %v387 = vunpack.c.l.b16 %v307
      %v388 = vunpack.c.l.b16 %v308
      %v389 = vunpack.c.l.b16 %v309
      %v390 = vunpack.c.l.b16 %v310
      %v391 = vunpack.c.l.b16 %v311
      %v392 = vunpack.c.l.b16 %v312
      %v393 = vunpack.c.l.b16 %v313
      %v394 = vunpack.c.l.b16 %v314
      %v395 = vunpack.c.l.b16 %v315
      %v396 = vunpack.c.l.b16 %v316
      %v397 = vunpack.c.l.b16 %v317
      %v398 = vunpack.c.l.b16 %v318
      %v399 = vunpack.c.l.b16 %v319
      %v400 = vunpack.c.l.b16 %v320
      %v401 = vpack.c.b16 %v370, %v369
      %v402 = vpack.c.b16 %v372, %v371
      %v403 = vpack.c.b16 %v374, %v373
      %v404 = vpack.c.b16 %v376, %v375
      %v405 = vpack.c.b16 %v378, %v377
      %v406 = vpack.c.b16 %v380, %v379
      %v407 = vpack.c.b16 %v382, %v381
      %v408 = vpack.c.b16 %v384, %v383
      %v409 = vpack.c.b16 %v386, %v385
      %v410 = vpack.c.b16 %v388, %v387
      %v411 = vpack.c.b16 %v390, %v389
      %v412 = vpack.c.b16 %v392, %v391
      %v413 = vpack.c.b16 %v394, %v393
      %v414 = vpack.c.b16 %v396, %v395
      %v415 = vpack.c.b16 %v398, %v397
      %v416 = vpack.c.b16 %v400, %v399
      %v449 = vunpack.c.l.b16 %v321
      %v450 = vunpack.c.l.b16 %v322
      %v451 = vunpack.c.l.b16 %v323
      %v452 = vunpack.c.l.b16 %v324
      %v453 = vunpack.c.l.b16 %v325
      %v454 = vunpack.c.l.b16 %v326
      %v455 = vunpack.c.l.b16 %v327
      %v456 = vunpack.c.l.b16 %v328
      %v457 = vunpack.c.l.b16 %v329
      %v458 = vunpack.c.l.b16 %v330
      %v459 = vunpack.c.l.b16 %v331
      %v460 = vunpack.c.l.b16 %v332
      %v461 = vunpack.c.l.b16 %v333
      %v462 = vunpack.c.l.b16 %v334
      %v463 = vunpack.c.l.b16 %v335
      %v464 = vunpack.c.l.b16 %v336
      %v465 = vpack.c.b16 %v450, %v449
      %v466 = vpack.c.b16 %v452, %v451
      %v467 = vpack.c.b16 %v454, %v453
      %v468 = vpack.c.b16 %v456, %v455
      %v469 = vpack.c.b16 %v458, %v457
      %v470 = vpack.c.b16 %v460, %v459
      %v471 = vpack.c.b16 %v462, %v461
      %v472 = vpack.c.b16 %v464, %v463
      %481 = vmatprep.subr.bf16.mxu0 0
      %482 = vmatpush1.bf16.msra.mxu0 %v465
      %483 = vmatprep.subr.bf16.mxu0 0
      %484 = vmatpush1.bf16.msra.mxu0 %v466
      %485 = vmatprep.subr.bf16.mxu0 0
      %486 = vmatpush1.bf16.msra.mxu0 %v467
      %487 = vmatprep.subr.bf16.mxu0 0
      %488 = vmatpush1.bf16.msra.mxu0 %v468
      %489 = vmatprep.subr.bf16.mxu0 0
      %490 = vmatpush1.bf16.msra.mxu0 %v469
      %491 = vmatprep.subr.bf16.mxu0 0
      %492 = vmatpush1.bf16.msra.mxu0 %v470
      %493 = vmatprep.subr.bf16.mxu0 0
      %494 = vmatpush1.bf16.msra.mxu0 %v471
      %495 = vmatprep.subr.bf16.mxu0 0
      %496 = vmatpush1.bf16.msra.mxu0 %v472
      %497 = vmatprep.subr.bf16.mxu0 0
      %498 = vmatpush1.bf16.msra.mxu0 0
      %499 = vmatprep.subr.bf16.mxu0 0
      %500 = vmatpush1.bf16.msra.mxu0 0
      %501 = vmatprep.subr.bf16.mxu0 0
      %502 = vmatpush1.bf16.msra.mxu0 0
      %503 = vmatprep.subr.bf16.mxu0 0
      %504 = vmatpush1.bf16.msra.mxu0 0
      %505 = vmatprep.subr.bf16.mxu0 0
      %506 = vmatpush1.bf16.msra.mxu0 0
      %507 = vmatprep.subr.bf16.mxu0 0
      %508 = vmatpush1.bf16.msra.mxu0 0
      %509 = vmatprep.subr.bf16.mxu0 0
      %510 = vmatpush1.bf16.msra.mxu0 0
      %511 = vmatprep.subr.bf16.mxu0 0
      %512 = vmatpush1.bf16.msra.mxu0 0
      %513 = vmatprep.mubr.bf16.mxu0 0
      %514 = vmatmul.mubr.bf16.gmra.mrb[0].mxu0 %v401
      %v515 = vpop.f32.mrb[0].mxu0
      %v516 = vadd.f32 0.0, %v515
      %v517 = vpop.f32.mrb[0].mxu0
      %v518 = vpop.f32.mrb[0].mxu0
      %v519 = vadd.f32 0.0, %v518
      %v520 = vpop.f32.mrb[0].mxu0
      %521 = vmatprep.mubr.bf16.mxu0 0
      %522 = vmatmul.mubr.bf16.gmra.mrb[0].mxu0 %v402
      %v523 = vpop.f32.mrb[0].mxu0
      %v524 = vadd.f32 0.0, %v523
      %v525 = vpop.f32.mrb[0].mxu0
      %v526 = vpop.f32.mrb[0].mxu0
      %v527 = vadd.f32 0.0, %v526
      %v528 = vpop.f32.mrb[0].mxu0
      %529 = vmatprep.mubr.bf16.mxu0 0
      %530 = vmatmul.mubr.bf16.gmra.mrb[0].mxu0 %v403
      %v531 = vpop.f32.mrb[0].mxu0
      %v532 = vadd.f32 0.0, %v531
      %v533 = vpop.f32.mrb[0].mxu0
      %v534 = vpop.f32.mrb[0].mxu0
      %v535 = vadd.f32 0.0, %v534
      %v536 = vpop.f32.mrb[0].mxu0
      %537 = vmatprep.mubr.bf16.mxu0 0
      %538 = vmatmul.mubr.bf16.gmra.mrb[0].mxu0 %v404
      %v539 = vpop.f32.mrb[0].mxu0
      %v540 = vadd.f32 0.0, %v539
      %v541 = vpop.f32.mrb[0].mxu0
      %v542 = vpop.f32.mrb[0].mxu0
      %v543 = vadd.f32 0.0, %v542
      %v544 = vpop.f32.mrb[0].mxu0
      %545 = vmatprep.mubr.bf16.mxu0 0
      %546 = vmatmul.mubr.bf16.gmra.mrb[0].mxu0 %v405
      %v547 = vpop.f32.mrb[0].mxu0
      %v548 = vadd.f32 0.0, %v547
      %v549 = vpop.f32.mrb[0].mxu0
      %v550 = vpop.f32.mrb[0].mxu0
      %v551 = vadd.f32 0.0, %v550
      %v552 = vpop.f32.mrb[0].mxu0
      %553 = vmatprep.mubr.bf16.mxu0 0
      %554 = vmatmul.mubr.bf16.gmra.mrb[0].mxu0 %v406
      %v555 = vpop.f32.mrb[0].mxu0
      %v556 = vadd.f32 0.0, %v555
      %v557 = vpop.f32.mrb[0].mxu0
      %v558 = vpop.f32.mrb[0].mxu0
      %v559 = vadd.f32 0.0, %v558
      %v560 = vpop.f32.mrb[0].mxu0
      %561 = vmatprep.mubr.bf16.mxu0 0
      %562 = vmatmul.mubr.bf16.gmra.mrb[0].mxu0 %v407
      %v563 = vpop.f32.mrb[0].mxu0
      %v564 = vadd.f32 0.0, %v563
      %v565 = vpop.f32.mrb[0].mxu0
      %v566 = vpop.f32.mrb[0].mxu0
      %v567 = vadd.f32 0.0, %v566
      %v568 = vpop.f32.mrb[0].mxu0
      %569 = vmatprep.mubr.bf16.mxu0 0
      %570 = vmatmul.mubr.bf16.gmra.mrb[0].mxu0 %v408
      %v571 = vpop.f32.mrb[0].mxu0
      %v572 = vadd.f32 0.0, %v571
      %v573 = vpop.f32.mrb[0].mxu0
      %v574 = vpop.f32.mrb[0].mxu0
      %v575 = vadd.f32 0.0, %v574
      %v576 = vpop.f32.mrb[0].mxu0
      %577 = vmatprep.mubr.bf16.mxu0 0
      %578 = vmatmul.mubr.bf16.gmra.mrb[0].mxu0 %v409
      %v579 = vpop.f32.mrb[0].mxu0
      %v580 = vadd.f32 0.0, %v579
      %v581 = vpop.f32.mrb[0].mxu0
      %v582 = vpop.f32.mrb[0].mxu0
      %v583 = vadd.f32 0.0, %v582
      %v584 = vpop.f32.mrb[0].mxu0
      %585 = vmatprep.mubr.bf16.mxu0 0
      %586 = vmatmul.mubr.bf16.gmra.mrb[0].mxu0 %v410
      %v587 = vpop.f32.mrb[0].mxu0
      %v588 = vadd.f32 0.0, %v587
      %v589 = vpop.f32.mrb[0].mxu0
      %v590 = vpop.f32.mrb[0].mxu0
      %v591 = vadd.f32 0.0, %v590
      %v592 = vpop.f32.mrb[0].mxu0
      %593 = vmatprep.mubr.bf16.mxu0 0
      %594 = vmatmul.mubr.bf16.gmra.mrb[0].mxu0 %v411
      %v595 = vpop.f32.mrb[0].mxu0
      %v596 = vadd.f32 0.0, %v595
      %v597 = vpop.f32.mrb[0].mxu0
      %v598 = vpop.f32.mrb[0].mxu0
      %v599 = vadd.f32 0.0, %v598
      %v600 = vpop.f32.mrb[0].mxu0
      %601 = vmatprep.mubr.bf16.mxu0 0
      %602 = vmatmul.mubr.bf16.gmra.mrb[0].mxu0 %v412
      %v603 = vpop.f32.mrb[0].mxu0
      %v604 = vadd.f32 0.0, %v603
      %v605 = vpop.f32.mrb[0].mxu0
      %v606 = vpop.f32.mrb[0].mxu0
      %v607 = vadd.f32 0.0, %v606
      %v608 = vpop.f32.mrb[0].mxu0
      %609 = vmatprep.mubr.bf16.mxu0 0
      %610 = vmatmul.mubr.bf16.gmra.mrb[0].mxu0 %v413
      %v611 = vpop.f32.mrb[0].mxu0
      %v612 = vadd.f32 0.0, %v611
      %v613 = vpop.f32.mrb[0].mxu0
      %v614 = vpop.f32.mrb[0].mxu0
      %v615 = vadd.f32 0.0, %v614
      %v616 = vpop.f32.mrb[0].mxu0
      %617 = vmatprep.mubr.bf16.mxu0 0
      %618 = vmatmul.mubr.bf16.gmra.mrb[0].mxu0 %v414
      %v619 = vpop.f32.mrb[0].mxu0
      %v620 = vadd.f32 0.0, %v619
      %v621 = vpop.f32.mrb[0].mxu0
      %v622 = vpop.f32.mrb[0].mxu0
      %v623 = vadd.f32 0.0, %v622
      %v624 = vpop.f32.mrb[0].mxu0
      %625 = vmatprep.mubr.bf16.mxu0 0
      %626 = vmatmul.mubr.bf16.gmra.mrb[0].mxu0 %v415
      %v627 = vpop.f32.mrb[0].mxu0
      %v628 = vadd.f32 0.0, %v627
      %v629 = vpop.f32.mrb[0].mxu0
      %v630 = vpop.f32.mrb[0].mxu0
      %v631 = vadd.f32 0.0, %v630
      %v632 = vpop.f32.mrb[0].mxu0
      %633 = vmatprep.mubr.bf16.mxu0 0
      %634 = vmatmul.mubr.bf16.gmra.mrb[0].mxu0 %v416
      %v635 = vpop.f32.mrb[0].mxu0
      %v636 = vadd.f32 0.0, %v635
      %v637 = vpop.f32.mrb[0].mxu0
      %v638 = vpop.f32.mrb[0].mxu0
      %v639 = vadd.f32 0.0, %v638
      %v640 = vpop.f32.mrb[0].mxu0
      %641 = vdwg.mxu0
      %v642 = vadd.f32 %v257, %v516
      %v643 = vadd.f32 %v258, %v519
      %v644 = vadd.f32 %v259, %v524
      %v645 = vadd.f32 %v260, %v527
      %v646 = vadd.f32 %v261, %v532
      %v647 = vadd.f32 %v262, %v535
      %v648 = vadd.f32 %v263, %v540
      %v649 = vadd.f32 %v264, %v543
      %v650 = vadd.f32 %v265, %v548
      %v651 = vadd.f32 %v266, %v551
      %v652 = vadd.f32 %v267, %v556
      %v653 = vadd.f32 %v268, %v559
      %v654 = vadd.f32 %v269, %v564
      %v655 = vadd.f32 %v270, %v567
      %v656 = vadd.f32 %v271, %v572
      %v657 = vadd.f32 %v272, %v575
      %v658 = vadd.f32 %v273, %v580
      %v659 = vadd.f32 %v274, %v583
      %v660 = vadd.f32 %v275, %v588
      %v661 = vadd.f32 %v276, %v591
      %v662 = vadd.f32 %v277, %v596
      %v663 = vadd.f32 %v278, %v599
      %v664 = vadd.f32 %v279, %v604
      %v665 = vadd.f32 %v280, %v607
      %v666 = vadd.f32 %v281, %v612
      %v667 = vadd.f32 %v282, %v615
      %v668 = vadd.f32 %v283, %v620
      %v669 = vadd.f32 %v284, %v623
      %v670 = vadd.f32 %v285, %v628
      %v671 = vadd.f32 %v286, %v631
      %v672 = vadd.f32 %v287, %v636
      %v673 = vadd.f32 %v288, %v639
      %vm674 = vcmask 523264
      %675 = vst.msk [vmem:[%s217] sm:$0xff] %vm674, %v642
      %676 = vst.msk [vmem:[%s217 + $0x8] sm:$0xff] %vm674, %v643
      %677 = vst.msk [vmem:[%s217 + $0x10] sm:$0xff] %vm674, %v644
      %678 = vst.msk [vmem:[%s217 + $0x18] sm:$0xff] %vm674, %v645
      %679 = vst.msk [vmem:[%s217 + $0x20] sm:$0xff] %vm674, %v646
      %680 = vst.msk [vmem:[%s217 + $0x28] sm:$0xff] %vm674, %v647
      %681 = vst.msk [vmem:[%s217 + $0x30] sm:$0xff] %vm674, %v648
      %682 = vst.msk [vmem:[%s217 + $0x38] sm:$0xff] %vm674, %v649
      %683 = vst.msk [vmem:[%s217 + $0x40] sm:$0xff] %vm674, %v650
      %684 = vst.msk [vmem:[%s217 + $0x48] sm:$0xff] %vm674, %v651
      %685 = vst.msk [vmem:[%s217 + $0x50] sm:$0xff] %vm674, %v652
      %686 = vst.msk [vmem:[%s217 + $0x58] sm:$0xff] %vm674, %v653
      %687 = vst.msk [vmem:[%s217 + $0x60] sm:$0xff] %vm674, %v654
      %688 = vst.msk [vmem:[%s217 + $0x68] sm:$0xff] %vm674, %v655
      %689 = vst.msk [vmem:[%s217 + $0x70] sm:$0xff] %vm674, %v656
      %690 = vst.msk [vmem:[%s217 + $0x78] sm:$0xff] %vm674, %v657
      %691 = vst.msk [vmem:[%s217 + $0x80] sm:$0xff] %vm674, %v658
      %692 = vst.msk [vmem:[%s217 + $0x88] sm:$0xff] %vm674, %v659
      %693 = vst.msk [vmem:[%s217 + $0x90] sm:$0xff] %vm674, %v660
      %694 = vst.msk [vmem:[%s217 + $0x98] sm:$0xff] %vm674, %v661
      %695 = vst.msk [vmem:[%s217 + $0xa0] sm:$0xff] %vm674, %v662
      %696 = vst.msk [vmem:[%s217 + $0xa8] sm:$0xff] %vm674, %v663
      %697 = vst.msk [vmem:[%s217 + $0xb0] sm:$0xff] %vm674, %v664
      %698 = vst.msk [vmem:[%s217 + $0xb8] sm:$0xff] %vm674, %v665
      %699 = vst.msk [vmem:[%s217 + $0xc0] sm:$0xff] %vm674, %v666
      %700 = vst.msk [vmem:[%s217 + $0xc8] sm:$0xff] %vm674, %v667
      %701 = vst.msk [vmem:[%s217 + $0xd0] sm:$0xff] %vm674, %v668
      %702 = vst.msk [vmem:[%s217 + $0xd8] sm:$0xff] %vm674, %v669
      %703 = vst.msk [vmem:[%s217 + $0xe0] sm:$0xff] %vm674, %v670
      %704 = vst.msk [vmem:[%s217 + $0xe8] sm:$0xff] %vm674, %v671
      %705 = vst.msk [vmem:[%s217 + $0xf0] sm:$0xff] %vm674, %v672
      %706 = vst.msk [vmem:[%s217 + $0xf8] sm:$0xff] %vm674, %v673
      // Predicated region
      $region37: #{_lambda_.5} parent=31 // pred_check
        %p707 = pneg %p220
      $region38: #{_lambda_.5} parent=31 // pred_check_branch
        %709 = sbr.rel (%p707) target = $region40
      $region39: #{_lambda_.5} parent=31 // pred_region
        %v710 = vld [vmem:[%s217] sm:$0xff]
        %v711 = vld [vmem:[%s217 + $0x8] sm:$0xff]
        %v712 = vld [vmem:[%s217 + $0x10] sm:$0xff]
        %v713 = vld [vmem:[%s217 + $0x18] sm:$0xff]
        %v714 = vld [vmem:[%s217 + $0x20] sm:$0xff]
        %v715 = vld [vmem:[%s217 + $0x28] sm:$0xff]
        %v716 = vld [vmem:[%s217 + $0x30] sm:$0xff]
        %v717 = vld [vmem:[%s217 + $0x38] sm:$0xff]
        %v718 = vld [vmem:[%s217 + $0x40] sm:$0xff]
        %v719 = vld [vmem:[%s217 + $0x48] sm:$0xff]
        %v720 = vld [vmem:[%s217 + $0x50] sm:$0xff]
        %v721 = vld [vmem:[%s217 + $0x58] sm:$0xff]
        %v722 = vld [vmem:[%s217 + $0x60] sm:$0xff]
        %v723 = vld [vmem:[%s217 + $0x68] sm:$0xff]
        %v724 = vld [vmem:[%s217 + $0x70] sm:$0xff]
        %v725 = vld [vmem:[%s217 + $0x78] sm:$0xff]
        %v726 = vld [vmem:[%s217 + $0x80] sm:$0xff]
        %v727 = vld [vmem:[%s217 + $0x88] sm:$0xff]
        %v728 = vld [vmem:[%s217 + $0x90] sm:$0xff]
        %v729 = vld [vmem:[%s217 + $0x98] sm:$0xff]
        %v730 = vld [vmem:[%s217 + $0xa0] sm:$0xff]
        %v731 = vld [vmem:[%s217 + $0xa8] sm:$0xff]
        %v732 = vld [vmem:[%s217 + $0xb0] sm:$0xff]
        %v733 = vld [vmem:[%s217 + $0xb8] sm:$0xff]
        %v734 = vld [vmem:[%s217 + $0xc0] sm:$0xff]
        %v735 = vld [vmem:[%s217 + $0xc8] sm:$0xff]
        %v736 = vld [vmem:[%s217 + $0xd0] sm:$0xff]
        %v737 = vld [vmem:[%s217 + $0xd8] sm:$0xff]
        %v738 = vld [vmem:[%s217 + $0xe0] sm:$0xff]
        %v739 = vld [vmem:[%s217 + $0xe8] sm:$0xff]
        %v740 = vld [vmem:[%s217 + $0xf0] sm:$0xff]
        %v741 = vld [vmem:[%s217 + $0xf8] sm:$0xff]
        %v742 = vld [vmem:[%s2] sm:$0x1]
        %v744 = vlaneseq
        %v745 = vshrl.u32 %v744, 7
        %v746 = vsub.s32 0, %v745
        %v747 = vrot.slane %v742, %v746
        %v749 = vadd.f32 %v710, %v747
        %v750 = vadd.f32 %v711, %v747
        %v751 = vadd.f32 %v712, %v747
        %v752 = vadd.f32 %v713, %v747
        %v753 = vadd.f32 %v714, %v747
        %v754 = vadd.f32 %v715, %v747
        %v755 = vadd.f32 %v716, %v747
        %v756 = vadd.f32 %v717, %v747
        %v757 = vadd.f32 %v718, %v747
        %v758 = vadd.f32 %v719, %v747
        %v759 = vadd.f32 %v720, %v747
        %v760 = vadd.f32 %v721, %v747
        %v761 = vadd.f32 %v722, %v747
        %v762 = vadd.f32 %v723, %v747
        %v763 = vadd.f32 %v724, %v747
        %v764 = vadd.f32 %v725, %v747
        %v765 = vadd.f32 %v726, %v747
        %v766 = vadd.f32 %v727, %v747
        %v767 = vadd.f32 %v728, %v747
        %v768 = vadd.f32 %v729, %v747
        %v769 = vadd.f32 %v730, %v747
        %v770 = vadd.f32 %v731, %v747
        %v771 = vadd.f32 %v732, %v747
        %v772 = vadd.f32 %v733, %v747
        %v773 = vadd.f32 %v734, %v747
        %v774 = vadd.f32 %v735, %v747
        %v775 = vadd.f32 %v736, %v747
        %v776 = vadd.f32 %v737, %v747
        %v777 = vadd.f32 %v738, %v747
        %v778 = vadd.f32 %v739, %v747
        %v779 = vadd.f32 %v740, %v747
        %v780 = vadd.f32 %v741, %v747
        %vm781 = vcmp.ge.f32.partialorder %v749, 0.0
        %vm782 = vcmp.ge.f32.partialorder %v750, 0.0
        %vm783 = vcmp.ge.f32.partialorder %v751, 0.0
        %vm784 = vcmp.ge.f32.partialorder %v752, 0.0
        %vm785 = vcmp.ge.f32.partialorder %v753, 0.0
        %vm786 = vcmp.ge.f32.partialorder %v754, 0.0
        %vm787 = vcmp.ge.f32.partialorder %v755, 0.0
        %vm788 = vcmp.ge.f32.partialorder %v756, 0.0
        %vm789 = vcmp.ge.f32.partialorder %v757, 0.0
        %vm790 = vcmp.ge.f32.partialorder %v758, 0.0
        %vm791 = vcmp.ge.f32.partialorder %v759, 0.0
        %vm792 = vcmp.ge.f32.partialorder %v760, 0.0
        %vm793 = vcmp.ge.f32.partialorder %v761, 0.0
        %vm794 = vcmp.ge.f32.partialorder %v762, 0.0
        %vm795 = vcmp.ge.f32.partialorder %v763, 0.0
        %vm796 = vcmp.ge.f32.partialorder %v764, 0.0
        %vm797 = vcmp.ge.f32.partialorder %v765, 0.0
        %vm798 = vcmp.ge.f32.partialorder %v766, 0.0
        %vm799 = vcmp.ge.f32.partialorder %v767, 0.0
        %vm800 = vcmp.ge.f32.partialorder %v768, 0.0
        %vm801 = vcmp.ge.f32.partialorder %v769, 0.0
        %vm802 = vcmp.ge.f32.partialorder %v770, 0.0
        %vm803 = vcmp.ge.f32.partialorder %v771, 0.0
        %vm804 = vcmp.ge.f32.partialorder %v772, 0.0
        %vm805 = vcmp.ge.f32.partialorder %v773, 0.0
        %vm806 = vcmp.ge.f32.partialorder %v774, 0.0
        %vm807 = vcmp.ge.f32.partialorder %v775, 0.0
        %vm808 = vcmp.ge.f32.partialorder %v776, 0.0
        %vm809 = vcmp.ge.f32.partialorder %v777, 0.0
        %vm810 = vcmp.ge.f32.partialorder %v778, 0.0
        %vm811 = vcmp.ge.f32.partialorder %v779, 0.0
        %vm812 = vcmp.ge.f32.partialorder %v780, 0.0
        %v813 = vmul.f32 %v749, 0.2
        %v814 = vmul.f32 %v750, 0.2
        %v815 = vmul.f32 %v751, 0.2
        %v816 = vmul.f32 %v752, 0.2
        %v817 = vmul.f32 %v753, 0.2
        %v818 = vmul.f32 %v754, 0.2
        %v819 = vmul.f32 %v755, 0.2
        %v820 = vmul.f32 %v756, 0.2
        %v821 = vmul.f32 %v757, 0.2
        %v822 = vmul.f32 %v758, 0.2
        %v823 = vmul.f32 %v759, 0.2
        %v824 = vmul.f32 %v760, 0.2
        %v825 = vmul.f32 %v761, 0.2
        %v826 = vmul.f32 %v762, 0.2
        %v827 = vmul.f32 %v763, 0.2
        %v828 = vmul.f32 %v764, 0.2
        %v829 = vmul.f32 %v765, 0.2
        %v830 = vmul.f32 %v766, 0.2
        %v831 = vmul.f32 %v767, 0.2
        %v832 = vmul.f32 %v768, 0.2
        %v833 = vmul.f32 %v769, 0.2
        %v834 = vmul.f32 %v770, 0.2
        %v835 = vmul.f32 %v771, 0.2
        %v836 = vmul.f32 %v772, 0.2
        %v837 = vmul.f32 %v773, 0.2
        %v838 = vmul.f32 %v774, 0.2
        %v839 = vmul.f32 %v775, 0.2
        %v840 = vmul.f32 %v776, 0.2
        %v841 = vmul.f32 %v777, 0.2
        %v842 = vmul.f32 %v778, 0.2
        %v843 = vmul.f32 %v779, 0.2
        %v844 = vmul.f32 %v780, 0.2
        %v845 = vsel %vm781, %v749, %v813
        %v846 = vsel %vm782, %v750, %v814
        %v847 = vsel %vm783, %v751, %v815
        %v848 = vsel %vm784, %v752, %v816
        %v849 = vsel %vm785, %v753, %v817
        %v850 = vsel %vm786, %v754, %v818
        %v851 = vsel %vm787, %v755, %v819
        %v852 = vsel %vm788, %v756, %v820
        %v853 = vsel %vm789, %v757, %v821
        %v854 = vsel %vm790, %v758, %v822
        %v855 = vsel %vm791, %v759, %v823
        %v856 = vsel %vm792, %v760, %v824
        %v857 = vsel %vm793, %v761, %v825
        %v858 = vsel %vm794, %v762, %v826
        %v859 = vsel %vm795, %v763, %v827
        %v860 = vsel %vm796, %v764, %v828
        %v861 = vsel %vm797, %v765, %v829
        %v862 = vsel %vm798, %v766, %v830
        %v863 = vsel %vm799, %v767, %v831
        %v864 = vsel %vm800, %v768, %v832
        %v865 = vsel %vm801, %v769, %v833
        %v866 = vsel %vm802, %v770, %v834
        %v867 = vsel %vm803, %v771, %v835
        %v868 = vsel %vm804, %v772, %v836
        %v869 = vsel %vm805, %v773, %v837
        %v870 = vsel %vm806, %v774, %v838
        %v871 = vsel %vm807, %v775, %v839
        %v872 = vsel %vm808, %v776, %v840
        %v873 = vsel %vm809, %v777, %v841
        %v874 = vsel %vm810, %v778, %v842
        %v875 = vsel %vm811, %v779, %v843
        %v876 = vsel %vm812, %v780, %v844
        %877 = vst.msk [vmem:[%s217] sm:$0xff] %vm674, %v845
        %878 = vst.msk [vmem:[%s217 + $0x8] sm:$0xff] %vm674, %v846
        %879 = vst.msk [vmem:[%s217 + $0x10] sm:$0xff] %vm674, %v847
        %880 = vst.msk [vmem:[%s217 + $0x18] sm:$0xff] %vm674, %v848
        %881 = vst.msk [vmem:[%s217 + $0x20] sm:$0xff] %vm674, %v849
        %882 = vst.msk [vmem:[%s217 + $0x28] sm:$0xff] %vm674, %v850
        %883 = vst.msk [vmem:[%s217 + $0x30] sm:$0xff] %vm674, %v851
        %884 = vst.msk [vmem:[%s217 + $0x38] sm:$0xff] %vm674, %v852
        %885 = vst.msk [vmem:[%s217 + $0x40] sm:$0xff] %vm674, %v853
        %886 = vst.msk [vmem:[%s217 + $0x48] sm:$0xff] %vm674, %v854
        %887 = vst.msk [vmem:[%s217 + $0x50] sm:$0xff] %vm674, %v855
        %888 = vst.msk [vmem:[%s217 + $0x58] sm:$0xff] %vm674, %v856
        %889 = vst.msk [vmem:[%s217 + $0x60] sm:$0xff] %vm674, %v857
        %890 = vst.msk [vmem:[%s217 + $0x68] sm:$0xff] %vm674, %v858
        %891 = vst.msk [vmem:[%s217 + $0x70] sm:$0xff] %vm674, %v859
        %892 = vst.msk [vmem:[%s217 + $0x78] sm:$0xff] %vm674, %v860
        %893 = vst.msk [vmem:[%s217 + $0x80] sm:$0xff] %vm674, %v861
        %894 = vst.msk [vmem:[%s217 + $0x88] sm:$0xff] %vm674, %v862
        %895 = vst.msk [vmem:[%s217 + $0x90] sm:$0xff] %vm674, %v863
        %896 = vst.msk [vmem:[%s217 + $0x98] sm:$0xff] %vm674, %v864
        %897 = vst.msk [vmem:[%s217 + $0xa0] sm:$0xff] %vm674, %v865
        %898 = vst.msk [vmem:[%s217 + $0xa8] sm:$0xff] %vm674, %v866
        %899 = vst.msk [vmem:[%s217 + $0xb0] sm:$0xff] %vm674, %v867
        %900 = vst.msk [vmem:[%s217 + $0xb8] sm:$0xff] %vm674, %v868
        %901 = vst.msk [vmem:[%s217 + $0xc0] sm:$0xff] %vm674, %v869
        %902 = vst.msk [vmem:[%s217 + $0xc8] sm:$0xff] %vm674, %v870
        %903 = vst.msk [vmem:[%s217 + $0xd0] sm:$0xff] %vm674, %v871
        %904 = vst.msk [vmem:[%s217 + $0xd8] sm:$0xff] %vm674, %v872
        %905 = vst.msk [vmem:[%s217 + $0xe0] sm:$0xff] %vm674, %v873
        %906 = vst.msk [vmem:[%s217 + $0xe8] sm:$0xff] %vm674, %v874
        %907 = vst.msk [vmem:[%s217 + $0xf0] sm:$0xff] %vm674, %v875
        %908 = vst.msk [vmem:[%s217 + $0xf8] sm:$0xff] %vm674, %v876
      $region40: #{_lambda_.5} parent=31 // pred_fallthru
        _
      %s909 = smul.u32 32, %s18
      %p910 = scmp.lt.s32.totalorder %s909, 63
      %s911 = scalar_select %p910, %s909, 63
      %s912 = smul.addr %s911, 8
      %s913 = scalar_lea.vmem %s3, %s912
      // Predicated region
      $region41: #{_lambda_.5} parent=31 // pred_check
        %p914 = pneg %p119
      $region42: #{_lambda_.5} parent=31 // pred_check_branch
        %916 = sbr.rel (%p914) target = $region44
      $region43: #{_lambda_.5} parent=31 // pred_region
        %s917 = smul.u32 32, %s18
      $region44: #{_lambda_.5} parent=31 // pred_fallthru
        _
    $region32: #{_lambda_.5} parent=5 // pred_fallthru
      _
    %p918 = scmp.le.s32.totalorder 2, %s9
    // Predicated region
    $region45: #{_lambda_.5} parent=5 // pred_check
      %p919 = pneg %p918
    $region46: #{_lambda_.5} parent=5 // pred_check_branch
      %921 = sbr.rel (%p919) target = $region48
    $region47: #{_lambda_.5} parent=5 // pred_region
      %s922 = ssub.s32 %s9, 2
      // Predicated region
      $region49: #{_lambda_.5} parent=47 // pred_check
        %p923 = pneg %p125
      $region50: #{_lambda_.5} parent=47 // pred_check_branch
        %925 = sbr.rel (%p923) target = $region52
      $region51: #{_lambda_.5} parent=47 // pred_region
        %s926 = smul.u32 32, %s20
        %p927 = scmp.lt.s32.totalorder %s926, 63
        %s928 = scalar_select %p927, %s926, 63
        %s929 = smul.addr %s928, 8
        %s930 = scalar_lea.vmem %s3, %s929
      $region52: #{_lambda_.5} parent=47 // pred_fallthru
        _
    $region48: #{_lambda_.5} parent=5 // pred_fallthru
      _
  $region6: #{_lambda_.5} parent=0 // loop_footer
    %s13 = sadd.s32 1, %s9
  $region7: #{_lambda_.5} parent=0 // loop_footer_branch
    %8 = sbr.rel target = $region3
  $region8: #{_lambda_.5} parent=0 // loop_exit
    _

// kernel: _lambda_.6
$region0: #{_lambda_.6}
  #allocation0 [shape = 'u32[]', space=smem, size = 0x4, offset = 0x4, fixed_abs, tag = 'smem constant byte address 0x4 - core index']
  #allocation1 [shape = 'u32[144,128]{1,0:T(1,128)}', space=vmem, size = 0x12000, scoped, tag = 'internal scratch']
  %s0 = inlined_call_operand.vmem [shape: bf16[128,1024], index: 0, kind: input, shape index: {}]
  %s1 = inlined_call_operand.vmem [shape: bf16[1024,128], index: 1, kind: input, shape index: {}]
  %s2 = inlined_call_operand.vmem [shape: f32[1,128], index: 2, kind: input, shape index: {}]
  %s3 = inlined_call_operand.vmem [shape: f32[128,128], index: 3, kind: output, shape index: {}]
  %s4 = sld [smem:[#allocation0]]
  $region91: #{_lambda_.6} parent=0
    _
  %s6 = ssub.s32 1, %s4
  %s7 = scalar_select 0, %s6, %s4
  $region1: #{_lambda_.6} parent=0
    #allocation2 [shape = 'u8[131072]{0}', space=vmem, size = 0x20000, scoped, tag = 'input window, operand 0']
    loop: start=0, step=1, limit=6
    $region2: #{_lambda_.6} parent=1 // loop_pre_header
      _
    $region3: #{_lambda_.6} parent=1 // loop_header
      %s9 = sphi 0, %s13
      %p10 = scmp.ge.s32.totalorder %s9, 6
      %s16 = sphi 0, %s28
      %s17 = sphi 0, %s24
      %s18 = sphi 0, %s16
      %s19 = sphi 0, %s17
      %s20 = sphi 0, %s18
      %s21 = sphi 0, %s19
      %s33 = sphi 0, %s35
      %s36 = sphi 0, %s33
      %s37 = sphi 0, %s36
      %s53 = sphi 0, %s37
      %s59 = sphi 0, %s61
      %s62 = sphi 0, %s59
      %s63 = sphi 0, %s62
      %s79 = sphi 0, %s63
      %s83 = sphi 0, %s83
      %s85 = sphi 0, %s83
      %s86 = sphi 0, %s85
      %s100 = sphi 0, %s86
      %s106 = sphi 0, %s108
      %s109 = sphi 0, %s106
      %s110 = sphi 0, %s109
      %s126 = sphi 0, %s110
    $region4: #{_lambda_.6} parent=1 // loop_header_branch
      %12 = sbr.rel (%p10) target = $region8
    $region5: #{_lambda_.6} parent=1 // loop_body
      %s14 = ssub.s32 %s9, 1
      %s15 = ssub.s32 %s9, 2
      %s22 = sadd.s32 1, %s17
      %p23 = scmp.ge.s32.totalorder %s22, 4
      %s24 = scalar_select %p23, 0, %s22
      %s25 = sadd.s32 1, %s16
      %s26 = scalar_select %p23, %s25, %s16
      %p27 = scmp.ge.s32.totalorder %s26, 1
      %s28 = scalar_select %p27, 0, %s26
      %s29 = ssub.s32 %s16, %s28
      %s30 = ssub.s32 %s17, %s24
      %s31 = sor.u32 %s29, %s30
      %p32 = scmp.eq.s32.totalorder %s31, 0
      %s34 = sadd.s32 %s33, 1
      %s35 = scalar_select %p32, %s33, %s34
      %p38 = pneg %p32
      %p39 = scmp.eq.s32.totalorder %s9, 3
      %p40 = por %p38, %p39
      %p41 = scmp.ne.s32.totalorder %s33, %s36
      %p42 = scmp.eq.s32.totalorder %s9, 0
      %p43 = por %p41, %p42
      %p44 = scmp.ne.s32.totalorder %s33, %s36
      %p45 = scmp.eq.s32.totalorder %s14, 3
      %p46 = por %p44, %p45
      %p47 = scmp.ne.s32.totalorder %s36, %s37
      %p48 = scmp.eq.s32.totalorder %s14, 0
      %p49 = por %p47, %p48
      %p50 = scmp.ne.s32.totalorder %s36, %s37
      %p51 = scmp.eq.s32.totalorder %s15, 3
      %p52 = por %p50, %p51
      %p54 = scmp.ne.s32.totalorder %s37, %s53
      %p55 = scmp.eq.s32.totalorder %s15, 0
      %p56 = por %p54, %p55
      %s57 = ssub.s32 %s17, %s24
      %p58 = scmp.eq.s32.totalorder %s57, 0
      %s60 = sadd.s32 %s59, 1
      %s61 = scalar_select %p58, %s59, %s60
      %p64 = pneg %p58
      %p65 = scmp.eq.s32.totalorder %s9, 3
      %p66 = por %p64, %p65
      %p67 = scmp.ne.s32.totalorder %s59, %s62
      %p68 = scmp.eq.s32.totalorder %s9, 0
      %p69 = por %p67, %p68
      %p70 = scmp.ne.s32.totalorder %s59, %s62
      %p71 = scmp.eq.s32.totalorder %s14, 3
      %p72 = por %p70, %p71
      %p73 = scmp.ne.s32.totalorder %s62, %s63
      %p74 = scmp.eq.s32.totalorder %s14, 0
      %p75 = por %p73, %p74
      %p76 = scmp.ne.s32.totalorder %s62, %s63
      %p77 = scmp.eq.s32.totalorder %s15, 3
      %p78 = por %p76, %p77
      %p80 = scmp.ne.s32.totalorder %s63, %s79
      %p81 = scmp.eq.s32.totalorder %s15, 0
      %p82 = por %p80, %p81
      %s84 = sadd.s32 %s83, 1
      %p87 = scmp.eq.s32.totalorder %s9, 3
      %p88 = scmp.ne.s32.totalorder %s83, %s85
      %p89 = scmp.eq.s32.totalorder %s9, 0
      %p90 = por %p88, %p89
      %p91 = scmp.ne.s32.totalorder %s83, %s85
      %p92 = scmp.eq.s32.totalorder %s14, 3
      %p93 = por %p91, %p92
      %p94 = scmp.ne.s32.totalorder %s85, %s86
      %p95 = scmp.eq.s32.totalorder %s14, 0
      %p96 = por %p94, %p95
      %p97 = scmp.ne.s32.totalorder %s85, %s86
      %p98 = scmp.eq.s32.totalorder %s15, 3
      %p99 = por %p97, %p98
      %p101 = scmp.ne.s32.totalorder %s86, %s100
      %p102 = scmp.eq.s32.totalorder %s15, 0
      %p103 = por %p101, %p102
      %s104 = ssub.s32 %s16, %s28
      %p105 = scmp.eq.s32.totalorder %s104, 0
      %s107 = sadd.s32 %s106, 1
      %s108 = scalar_select %p105, %s106, %s107
      %p111 = pneg %p105
      %p112 = scmp.eq.s32.totalorder %s9, 3
      %p113 = por %p111, %p112
      %p114 = scmp.ne.s32.totalorder %s106, %s109
      %p115 = scmp.eq.s32.totalorder %s9, 0
      %p116 = por %p114, %p115
      %p117 = scmp.ne.s32.totalorder %s106, %s109
      %p118 = scmp.eq.s32.totalorder %s14, 3
      %p119 = por %p117, %p118
      %p120 = scmp.ne.s32.totalorder %s109, %s110
      %p121 = scmp.eq.s32.totalorder %s14, 0
      %p122 = por %p120, %p121
      %p123 = scmp.ne.s32.totalorder %s109, %s110
      %p124 = scmp.eq.s32.totalorder %s15, 3
      %p125 = por %p123, %p124
      %p127 = scmp.ne.s32.totalorder %s110, %s126
      %p128 = scmp.eq.s32.totalorder %s15, 0
      %p129 = por %p127, %p128
      %p130 = scmp.le.s32.totalorder 1, %s9
      %p131 = scmp.lt.s32.totalorder %s9, 5
      %p132 = pnand %p130, %p131
      %p133 = pneg %p132
      // Predicated region
      $region9: #{_lambda_.6} parent=5 // pred_check
        _
      $region10: #{_lambda_.6} parent=5 // pred_check_branch
        %135 = sbr.rel (%p132) target = $region12
      $region11: #{_lambda_.6} parent=5 // pred_region
        %s136 = ssub.s32 %s9, 1
        // Predicated region
        $region13: #{_lambda_.6} parent=11 // pred_check
          %p137 = pneg %p96
        $region14: #{_lambda_.6} parent=11 // pred_check_branch
          %139 = sbr.rel (%p137) target = $region16
        $region15: #{_lambda_.6} parent=11 // pred_region
          _
        $region16: #{_lambda_.6} parent=11 // pred_fallthru
          _
      $region12: #{_lambda_.6} parent=5 // pred_fallthru
        _
      %p140 = scmp.lt.s32.totalorder %s9, 4
      // Predicated region
      $region17: #{_lambda_.6} parent=5 // pred_check
        %p141 = pneg %p140
      $region18: #{_lambda_.6} parent=5 // pred_check_branch
        %143 = sbr.rel (%p141) target = $region20
      $region19: #{_lambda_.6} parent=5 // pred_region
        // Predicated region
        $region21: #{_lambda_.6} parent=19 // pred_check
          %p144 = pneg %p43
        $region22: #{_lambda_.6} parent=19 // pred_check_branch
          %146 = sbr.rel (%p144) target = $region24
        $region23: #{_lambda_.6} parent=19 // pred_region
          %s147 = sand.u32 %s33, 1
          %s148 = sand.u32 %s33, 1
          %s149 = smul.addr %s148, 128
          %s150 = scalar_lea.vmem [#allocation2], %s149
          %s151 = smul.u32 16, %s16
          %s152 = smul.u32 2, %s17
          %s153 = smul.addr %s151, 8
          %s154 = sadd.s32 %s152, %s153
          %s155 = smul.addr %s154, 4
          %s156 = scalar_lea.vmem %s0, %s155
          // Predicated region
          $region25: #{_lambda_.6} parent=23 // pred_check
            _
          $region26: #{_lambda_.6} parent=23 // pred_check_branch
            %158 = sbr.rel (0) target = $region28
          $region27: #{_lambda_.6} parent=23 // pred_region
            // Predicated region
            $region29: #{_lambda_.6} parent=27 // pred_check
              _
            $region30: #{_lambda_.6} parent=27 // pred_check_branch
              %160 = sbr.rel (0) target = $region32
            $region31: #{_lambda_.6} parent=27 // pred_region
              // Predicated region
              $region44: #{_lambda_.6} parent=31 // pred_check
                _
              $region45: #{_lambda_.6} parent=31 // pred_check_branch
                %205 = sbr.rel (0) target = $region47
              $region46: #{_lambda_.6} parent=31 // pred_region
                loop: start=0, step=1, limit=1
                $region48: #{_lambda_.6} parent=46 // loop_pre_header
                  _
                $region49: #{_lambda_.6} parent=46 // loop_header
                  %s207 = sphi 0, %s211
                  %p208 = scmp.ge.s32.totalorder %s207, 1
                  %s212 = sphi %s156, %s156
                  %s213 = sphi %s150, %s150
                $region50: #{_lambda_.6} parent=46 // loop_header_branch
                  %210 = sbr.rel (%p208) target = $region54
                $region51: #{_lambda_.6} parent=46 // loop_body
                  %v214 = vld [vmem:[%s212] sm:$0xff]
                  %215 = vst [vmem:[%s213] sm:$0xff] %v214
                  %v216 = vld [vmem:[%s212 + $0x20] sm:$0xff]
                  %217 = vst [vmem:[%s213 + $0x8] sm:$0xff] %v216
                  %v218 = vld [vmem:[%s212 + $0x40] sm:$0xff]
                  %219 = vst [vmem:[%s213 + $0x10] sm:$0xff] %v218
                  %v220 = vld [vmem:[%s212 + $0x60] sm:$0xff]
                  %221 = vst [vmem:[%s213 + $0x18] sm:$0xff] %v220
                  %v222 = vld [vmem:[%s212 + $0x80] sm:$0xff]
                  %223 = vst [vmem:[%s213 + $0x20] sm:$0xff] %v222
                  %v224 = vld [vmem:[%s212 + $0xa0] sm:$0xff]
                  %225 = vst [vmem:[%s213 + $0x28] sm:$0xff] %v224
                  %v226 = vld [vmem:[%s212 + $0xc0] sm:$0xff]
                  %227 = vst [vmem:[%s213 + $0x30] sm:$0xff] %v226
                  %v228 = vld [vmem:[%s212 + $0xe0] sm:$0xff]
                  %229 = vst [vmem:[%s213 + $0x38] sm:$0xff] %v228
                  %v230 = vld [vmem:[%s212 + $0x100] sm:$0xff]
                  %231 = vst [vmem:[%s213 + $0x40] sm:$0xff] %v230
                  %v232 = vld [vmem:[%s212 + $0x120] sm:$0xff]
                  %233 = vst [vmem:[%s213 + $0x48] sm:$0xff] %v232
                  %v234 = vld [vmem:[%s212 + $0x140] sm:$0xff]
                  %235 = vst [vmem:[%s213 + $0x50] sm:$0xff] %v234
                  %v236 = vld [vmem:[%s212 + $0x160] sm:$0xff]
                  %237 = vst [vmem:[%s213 + $0x58] sm:$0xff] %v236
                  %v238 = vld [vmem:[%s212 + $0x180] sm:$0xff]
                  %239 = vst [vmem:[%s213 + $0x60] sm:$0xff] %v238
                  %v240 = vld [vmem:[%s212 + $0x1a0] sm:$0xff]
                  %241 = vst [vmem:[%s213 + $0x68] sm:$0xff] %v240
                  %v242 = vld [vmem:[%s212 + $0x1c0] sm:$0xff]
                  %243 = vst [vmem:[%s213 + $0x70] sm:$0xff] %v242
                  %v244 = vld [vmem:[%s212 + $0x1e0] sm:$0xff]
                  %245 = vst [vmem:[%s213 + $0x78] sm:$0xff] %v244
                $region52: #{_lambda_.6} parent=46 // loop_footer
                  %s211 = sadd.s32 1, %s207
                $region53: #{_lambda_.6} parent=46 // loop_footer_branch
                  %206 = sbr.rel target = $region49
                $region54: #{_lambda_.6} parent=46 // loop_exit
                  _
              $region47: #{_lambda_.6} parent=31 // pred_fallthru
                _
              // Predicated region
              $region55: #{_lambda_.6} parent=31 // pred_check
                _
              $region56: #{_lambda_.6} parent=31 // pred_check_branch
                %247 = sbr.rel target = $region58
              $region57: #{_lambda_.6} parent=31 // pred_region
                _
              $region58: #{_lambda_.6} parent=31 // pred_fallthru
                _
            $region32: #{_lambda_.6} parent=27 // pred_fallthru
              _
            // Predicated region
            $region33: #{_lambda_.6} parent=27 // pred_check
              _
            $region34: #{_lambda_.6} parent=27 // pred_check_branch
              %162 = sbr.rel target = $region36
            $region35: #{_lambda_.6} parent=27 // pred_region
              loop: start=0, step=1, limit=1
              $region37: #{_lambda_.6} parent=35 // loop_pre_header
                _
              $region38: #{_lambda_.6} parent=35 // loop_header
                %s165 = sphi 0, %s169
                %p166 = scmp.ge.s32.totalorder %s165, 1
                %s170 = sphi %s156, %s156
                %s171 = sphi %s150, %s150
              $region39: #{_lambda_.6} parent=35 // loop_header_branch
                %168 = sbr.rel (%p166) target = $region43
              $region40: #{_lambda_.6} parent=35 // loop_body
                %v172 = vld [vmem:[%s170] sm:$0xff]
                %173 = vst [vmem:[%s171] sm:$0xff] %v172
                %v174 = vld [vmem:[%s170 + $0x20] sm:$0xff]
                %175 = vst [vmem:[%s171 + $0x8] sm:$0xff] %v174
                %v176 = vld [vmem:[%s170 + $0x40] sm:$0xff]
                %177 = vst [vmem:[%s171 + $0x10] sm:$0xff] %v176
                %v178 = vld [vmem:[%s170 + $0x60] sm:$0xff]
                %179 = vst [vmem:[%s171 + $0x18] sm:$0xff] %v178
                %v180 = vld [vmem:[%s170 + $0x80] sm:$0xff]
                %181 = vst [vmem:[%s171 + $0x20] sm:$0xff] %v180
                %v182 = vld [vmem:[%s170 + $0xa0] sm:$0xff]
                %183 = vst [vmem:[%s171 + $0x28] sm:$0xff] %v182
                %v184 = vld [vmem:[%s170 + $0xc0] sm:$0xff]
                %185 = vst [vmem:[%s171 + $0x30] sm:$0xff] %v184
                %v186 = vld [vmem:[%s170 + $0xe0] sm:$0xff]
                %187 = vst [vmem:[%s171 + $0x38] sm:$0xff] %v186
                %v188 = vld [vmem:[%s170 + $0x100] sm:$0xff]
                %189 = vst [vmem:[%s171 + $0x40] sm:$0xff] %v188
                %v190 = vld [vmem:[%s170 + $0x120] sm:$0xff]
                %191 = vst [vmem:[%s171 + $0x48] sm:$0xff] %v190
                %v192 = vld [vmem:[%s170 + $0x140] sm:$0xff]
                %193 = vst [vmem:[%s171 + $0x50] sm:$0xff] %v192
                %v194 = vld [vmem:[%s170 + $0x160] sm:$0xff]
                %195 = vst [vmem:[%s171 + $0x58] sm:$0xff] %v194
                %v196 = vld [vmem:[%s170 + $0x180] sm:$0xff]
                %197 = vst [vmem:[%s171 + $0x60] sm:$0xff] %v196
                %v198 = vld [vmem:[%s170 + $0x1a0] sm:$0xff]
                %199 = vst [vmem:[%s171 + $0x68] sm:$0xff] %v198
                %v200 = vld [vmem:[%s170 + $0x1c0] sm:$0xff]
                %201 = vst [vmem:[%s171 + $0x70] sm:$0xff] %v200
                %v202 = vld [vmem:[%s170 + $0x1e0] sm:$0xff]
                %203 = vst [vmem:[%s171 + $0x78] sm:$0xff] %v202
              $region41: #{_lambda_.6} parent=35 // loop_footer
                %s169 = sadd.s32 1, %s165
              $region42: #{_lambda_.6} parent=35 // loop_footer_branch
                %164 = sbr.rel target = $region38
              $region43: #{_lambda_.6} parent=35 // loop_exit
                _
            $region36: #{_lambda_.6} parent=27 // pred_fallthru
              _
          $region28: #{_lambda_.6} parent=23 // pred_fallthru
            _
          %248 = vnop
        $region24: #{_lambda_.6} parent=19 // pred_fallthru
          _
        // Predicated region
        $region59: #{_lambda_.6} parent=19 // pred_check
          %p249 = pneg %p69
        $region60: #{_lambda_.6} parent=19 // pred_check_branch
          %251 = sbr.rel (%p249) target = $region62
        $region61: #{_lambda_.6} parent=19 // pred_region
          %s252 = smul.u32 32, %s17
          %p253 = scmp.lt.s32.totalorder %s252, 127
          %s254 = scalar_select %p253, %s252, 127
          %s255 = smul.addr %s254, 4
          %s256 = scalar_lea.vmem %s1, %s255
          %s257 = smul.u32 32, %s17
        $region62: #{_lambda_.6} parent=19 // pred_fallthru
          _
      $region20: #{_lambda_.6} parent=5 // pred_fallthru
        _
      %p258 = scmp.le.s32.totalorder 1, %s9
      %p259 = scmp.lt.s32.totalorder %s9, 5
      %p260 = pnand %p258, %p259
      %p261 = pneg %p260
      // Predicated region
      $region63: #{_lambda_.6} parent=5 // pred_check
        _
      $region64: #{_lambda_.6} parent=5 // pred_check_branch
        %263 = sbr.rel (%p260) target = $region66
      $region65: #{_lambda_.6} parent=5 // pred_region
        %s264 = ssub.s32 %s9, 1
        %s265 = sand.u32 %s36, 1
        %s266 = sand.u32 %s36, 1
        %s267 = smul.addr %s266, 128
        %s268 = scalar_lea.vmem [#allocation2], %s267
        // Predicated region
        $region67: #{_lambda_.6} parent=65 // pred_check
          %p269 = pneg %p49
        $region68: #{_lambda_.6} parent=65 // pred_check_branch
          %271 = sbr.rel (%p269) target = $region70
        $region69: #{_lambda_.6} parent=65 // pred_region
          _
        $region70: #{_lambda_.6} parent=65 // pred_fallthru
          _
        %s272 = sand.u32 %s36, 1
        %s273 = sand.u32 %s36, 1
        %s274 = smul.addr %s273, 128
        %s275 = scalar_lea.vmem [#allocation2], %s274
        %p276 = pneg %p49
        %p277 = pneg %p46
        %s278 = smul.u32 32, %s19
        %p279 = scmp.lt.s32.totalorder %s278, 127
        %s280 = scalar_select %p279, %s278, 127
        %s281 = smul.addr %s280, 4
        %s282 = scalar_lea.vmem %s1, %s281
        %p283 = pneg %p75
        %p284 = pneg %p72
        %p285 = pneg %p96
        %p286 = pneg %p93
        %p287 = pneg %p122
        %p288 = pneg %p119
        %s289 = smul.u32 16, %s18
        %p290 = scmp.lt.s32.totalorder %s289, 15
        %s291 = scalar_select %p290, %s289, 15
        %s292 = smul.addr %s291, 8
        %s293 = scalar_lea.vmem %s3, %s292
        %s294 = smul.u32 16, %s18
        %s295 = smul.u32 2, %s19
        %s296 = smul.u32 32, %s19
        %p297 = scmp.lt.s32.totalorder %s296, 127
        %s298 = scalar_select %p297, %s296, 127
        %s299 = smul.addr %s298, 4
        %s300 = scalar_lea.vmem %s1, %s299
        %s301 = smul.u32 32, %s19
        %s302 = smul.u32 16, %s18
        %p303 = scmp.lt.s32.totalorder %s302, 15
        %s304 = scalar_select %p303, %s302, 15
        %s305 = smul.addr %s304, 8
        %s306 = scalar_lea.vmem %s3, %s305
        %s307 = smul.u32 16, %s18
        %p309 = scmp.eq.s32.totalorder %s19, 0
        // Predicated region
        $region71: #{_lambda_.6} parent=65 // pred_check
          %p310 = pneg %p309
        $region72: #{_lambda_.6} parent=65 // pred_check_branch
          %312 = sbr.rel (%p310) target = $region74
        $region73: #{_lambda_.6} parent=65 // pred_region
          %313 = vst [vmem:[%s306] sm:$0xff] 0.0
          %314 = vst [vmem:[%s306 + $0x8] sm:$0xff] 0.0
          %315 = vst [vmem:[%s306 + $0x10] sm:$0xff] 0.0
          %316 = vst [vmem:[%s306 + $0x18] sm:$0xff] 0.0
          %317 = vst [vmem:[%s306 + $0x20] sm:$0xff] 0.0
          %318 = vst [vmem:[%s306 + $0x28] sm:$0xff] 0.0
          %319 = vst [vmem:[%s306 + $0x30] sm:$0xff] 0.0
          %320 = vst [vmem:[%s306 + $0x38] sm:$0xff] 0.0
          %321 = vst [vmem:[%s306 + $0x40] sm:$0xff] 0.0
          %322 = vst [vmem:[%s306 + $0x48] sm:$0xff] 0.0
          %323 = vst [vmem:[%s306 + $0x50] sm:$0xff] 0.0
          %324 = vst [vmem:[%s306 + $0x58] sm:$0xff] 0.0
          %325 = vst [vmem:[%s306 + $0x60] sm:$0xff] 0.0
          %326 = vst [vmem:[%s306 + $0x68] sm:$0xff] 0.0
          %327 = vst [vmem:[%s306 + $0x70] sm:$0xff] 0.0
          %328 = vst [vmem:[%s306 + $0x78] sm:$0xff] 0.0
        $region74: #{_lambda_.6} parent=65 // pred_fallthru
          _
        %v329 = vld [vmem:[%s306] sm:$0xff]
        %v330 = vld [vmem:[%s306 + $0x8] sm:$0xff]
        %v331 = vld [vmem:[%s306 + $0x10] sm:$0xff]
        %v332 = vld [vmem:[%s306 + $0x18] sm:$0xff]
        %v333 = vld [vmem:[%s306 + $0x20] sm:$0xff]
        %v334 = vld [vmem:[%s306 + $0x28] sm:$0xff]
        %v335 = vld [vmem:[%s306 + $0x30] sm:$0xff]
        %v336 = vld [vmem:[%s306 + $0x38] sm:$0xff]
        %v337 = vld [vmem:[%s306 + $0x40] sm:$0xff]
        %v338 = vld [vmem:[%s306 + $0x48] sm:$0xff]
        %v339 = vld [vmem:[%s306 + $0x50] sm:$0xff]
        %v340 = vld [vmem:[%s306 + $0x58] sm:$0xff]
        %v341 = vld [vmem:[%s306 + $0x60] sm:$0xff]
        %v342 = vld [vmem:[%s306 + $0x68] sm:$0xff]
        %v343 = vld [vmem:[%s306 + $0x70] sm:$0xff]
        %v344 = vld [vmem:[%s306 + $0x78] sm:$0xff]
        %v345 = vld [vmem:[%s268] sm:$0xff]
        %v346 = vld [vmem:[%s268 + $0x8] sm:$0xff]
        %v347 = vld [vmem:[%s268 + $0x10] sm:$0xff]
        %v348 = vld [vmem:[%s268 + $0x18] sm:$0xff]
        %v349 = vld [vmem:[%s268 + $0x20] sm:$0xff]
        %v350 = vld [vmem:[%s268 + $0x28] sm:$0xff]
        %v351 = vld [vmem:[%s268 + $0x30] sm:$0xff]
        %v352 = vld [vmem:[%s268 + $0x38] sm:$0xff]
        %v353 = vld [vmem:[%s268 + $0x40] sm:$0xff]
        %v354 = vld [vmem:[%s268 + $0x48] sm:$0xff]
        %v355 = vld [vmem:[%s268 + $0x50] sm:$0xff]
        %v356 = vld [vmem:[%s268 + $0x58] sm:$0xff]
        %v357 = vld [vmem:[%s268 + $0x60] sm:$0xff]
        %v358 = vld [vmem:[%s268 + $0x68] sm:$0xff]
        %v359 = vld [vmem:[%s268 + $0x70] sm:$0xff]
        %v360 = vld [vmem:[%s268 + $0x78] sm:$0xff]
        %v361 = vld [vmem:[%s300] sm:$0xf]
        %v362 = vld [vmem:[%s300 + $0x4] sm:$0xf]
        %v363 = vld [vmem:[%s300 + $0x8] sm:$0xf]
        %v364 = vld [vmem:[%s300 + $0xc] sm:$0xf]
        %v365 = vld [vmem:[%s300 + $0x10] sm:$0xf]
        %v366 = vld [vmem:[%s300 + $0x14] sm:$0xf]
        %v367 = vld [vmem:[%s300 + $0x18] sm:$0xf]
        %v368 = vld [vmem:[%s300 + $0x1c] sm:$0xf]
        %v369 = vld [vmem:[%s300 + $0x20] sm:$0xf]
        %v370 = vld [vmem:[%s300 + $0x24] sm:$0xf]
        %v371 = vld [vmem:[%s300 + $0x28] sm:$0xf]
        %v372 = vld [vmem:[%s300 + $0x2c] sm:$0xf]
        %v373 = vld [vmem:[%s300 + $0x30] sm:$0xf]
        %v374 = vld [vmem:[%s300 + $0x34] sm:$0xf]
        %v375 = vld [vmem:[%s300 + $0x38] sm:$0xf]
        %v376 = vld [vmem:[%s300 + $0x3c] sm:$0xf]
        %v377 = vld [vmem:[%s300 + $0x40] sm:$0xf]
        %v378 = vld [vmem:[%s300 + $0x44] sm:$0xf]
        %v379 = vld [vmem:[%s300 + $0x48] sm:$0xf]
        %v380 = vld [vmem:[%s300 + $0x4c] sm:$0xf]
        %v381 = vld [vmem:[%s300 + $0x50] sm:$0xf]
        %v382 = vld [vmem:[%s300 + $0x54] sm:$0xf]
        %v383 = vld [vmem:[%s300 + $0x58] sm:$0xf]
        %v384 = vld [vmem:[%s300 + $0x5c] sm:$0xf]
        %v385 = vld [vmem:[%s300 + $0x60] sm:$0xf]
        %v386 = vld [vmem:[%s300 + $0x64] sm:$0xf]
        %v387 = vld [vmem:[%s300 + $0x68] sm:$0xf]
        %v388 = vld [vmem:[%s300 + $0x6c] sm:$0xf]
        %v389 = vld [vmem:[%s300 + $0x70] sm:$0xf]
        %v390 = vld [vmem:[%s300 + $0x74] sm:$0xf]
        %v391 = vld [vmem:[%s300 + $0x78] sm:$0xf]
        %v392 = vld [vmem:[%s300 + $0x7c] sm:$0xf]
        %v409 = vunpack.c.l.b16 %v345
        %v410 = vunpack.c.h.b16 %v345
        %v411 = vunpack.c.l.b16 %v346
        %v412 = vunpack.c.h.b16 %v346
        %v413 = vunpack.c.l.b16 %v347
        %v414 = vunpack.c.h.b16 %v347
        %v415 = vunpack.c.l.b16 %v348
        %v416 = vunpack.c.h.b16 %v348
        %v417 = vunpack.c.l.b16 %v349
        %v418 = vunpack.c.h.b16 %v349
        %v419 = vunpack.c.l.b16 %v350
        %v420 = vunpack.c.h.b16 %v350
        %v421 = vunpack.c.l.b16 %v351
        %v422 = vunpack.c.h.b16 %v351
        %v423 = vunpack.c.l.b16 %v352
        %v424 = vunpack.c.h.b16 %v352
        %v425 = vunpack.c.l.b16 %v353
        %v426 = vunpack.c.h.b16 %v353
        %v427 = vunpack.c.l.b16 %v354
        %v428 = vunpack.c.h.b16 %v354
        %v429 = vunpack.c.l.b16 %v355
        %v430 = vunpack.c.h.b16 %v355
        %v431 = vunpack.c.l.b16 %v356
        %v432 = vunpack.c.h.b16 %v356
        %v433 = vunpack.c.l.b16 %v357
        %v434 = vunpack.c.h.b16 %v357
        %v435 = vunpack.c.l.b16 %v358
        %v436 = vunpack.c.h.b16 %v358
        %v437 = vunpack.c.l.b16 %v359
        %v438 = vunpack.c.h.b16 %v359
        %v439 = vunpack.c.l.b16 %v360
        %v440 = vunpack.c.h.b16 %v360
        %v441 = vpack.c.b16 %v411, %v409
        %v442 = vpack.c.b16 %v412, %v410
        %v443 = vpack.c.b16 %v415, %v413
        %v444 = vpack.c.b16 %v416, %v414
        %v445 = vpack.c.b16 %v419, %v417
        %v446 = vpack.c.b16 %v420, %v418
        %v447 = vpack.c.b16 %v423, %v421
        %v448 = vpack.c.b16 %v424, %v422
        %v449 = vpack.c.b16 %v427, %v425
        %v450 = vpack.c.b16 %v428, %v426
        %v451 = vpack.c.b16 %v431, %v429
        %v452 = vpack.c.b16 %v432, %v430
        %v453 = vpack.c.b16 %v435, %v433
        %v454 = vpack.c.b16 %v436, %v434
        %v455 = vpack.c.b16 %v439, %v437
        %v456 = vpack.c.b16 %v440, %v438
        %v505 = vunpack.c.l.b16 %v361
        %v506 = vunpack.c.l.b16 %v362
        %v507 = vunpack.c.l.b16 %v363
        %v508 = vunpack.c.l.b16 %v364
        %v509 = vunpack.c.l.b16 %v365
        %v510 = vunpack.c.l.b16 %v366
        %v511 = vunpack.c.l.b16 %v367
        %v512 = vunpack.c.l.b16 %v368
        %v513 = vunpack.c.l.b16 %v369
        %v514 = vunpack.c.l.b16 %v370
        %v515 = vunpack.c.l.b16 %v371
        %v516 = vunpack.c.l.b16 %v372
        %v517 = vunpack.c.l.b16 %v373
        %v518 = vunpack.c.l.b16 %v374
        %v519 = vunpack.c.l.b16 %v375
        %v520 = vunpack.c.l.b16 %v376
        %v521 = vunpack.c.l.b16 %v377
        %v522 = vunpack.c.l.b16 %v378
        %v523 = vunpack.c.l.b16 %v379
        %v524 = vunpack.c.l.b16 %v380
        %v525 = vunpack.c.l.b16 %v381
        %v526 = vunpack.c.l.b16 %v382
        %v527 = vunpack.c.l.b16 %v383
        %v528 = vunpack.c.l.b16 %v384
        %v529 = vunpack.c.l.b16 %v385
        %v530 = vunpack.c.l.b16 %v386
        %v531 = vunpack.c.l.b16 %v387
        %v532 = vunpack.c.l.b16 %v388
        %v533 = vunpack.c.l.b16 %v389
        %v534 = vunpack.c.l.b16 %v390
        %v535 = vunpack.c.l.b16 %v391
        %v536 = vunpack.c.l.b16 %v392
        %v537 = vpack.c.b16 %v506, %v505
        %v538 = vpack.c.b16 %v508, %v507
        %v539 = vpack.c.b16 %v510, %v509
        %v540 = vpack.c.b16 %v512, %v511
        %v541 = vpack.c.b16 %v514, %v513
        %v542 = vpack.c.b16 %v516, %v515
        %v543 = vpack.c.b16 %v518, %v517
        %v544 = vpack.c.b16 %v520, %v519
        %v545 = vpack.c.b16 %v522, %v521
        %v546 = vpack.c.b16 %v524, %v523
        %v547 = vpack.c.b16 %v526, %v525
        %v548 = vpack.c.b16 %v528, %v527
        %v549 = vpack.c.b16 %v530, %v529
        %v550 = vpack.c.b16 %v532, %v531
        %v551 = vpack.c.b16 %v534, %v533
        %v552 = vpack.c.b16 %v536, %v535
        %569 = vmatprep.subr.bf16.mxu0 0
        %570 = vmatpush1.bf16.msra.mxu0 %v537
        %571 = vmatprep.subr.bf16.mxu0 0
        %572 = vmatpush1.bf16.msra.mxu0 %v538
        %573 = vmatprep.subr.bf16.mxu0 0
        %574 = vmatpush1.bf16.msra.mxu0 %v539
        %575 = vmatprep.subr.bf16.mxu0 0
        %576 = vmatpush1.bf16.msra.mxu0 %v540
        %577 = vmatprep.subr.bf16.mxu0 0
        %578 = vmatpush1.bf16.msra.mxu0 %v541
        %579 = vmatprep.subr.bf16.mxu0 0
        %580 = vmatpush1.bf16.msra.mxu0 %v542
        %581 = vmatprep.subr.bf16.mxu0 0
        %582 = vmatpush1.bf16.msra.mxu0 %v543
        %583 = vmatprep.subr.bf16.mxu0 0
        %584 = vmatpush1.bf16.msra.mxu0 %v544
        %585 = vmatprep.subr.bf16.mxu0 0
        %586 = vmatpush1.bf16.msra.mxu0 %v545
        %587 = vmatprep.subr.bf16.mxu0 0
        %588 = vmatpush1.bf16.msra.mxu0 %v546
        %589 = vmatprep.subr.bf16.mxu0 0
        %590 = vmatpush1.bf16.msra.mxu0 %v547
        %591 = vmatprep.subr.bf16.mxu0 0
        %592 = vmatpush1.bf16.msra.mxu0 %v548
        %593 = vmatprep.subr.bf16.mxu0 0
        %594 = vmatpush1.bf16.msra.mxu0 %v549
        %595 = vmatprep.subr.bf16.mxu0 0
        %596 = vmatpush1.bf16.msra.mxu0 %v550
        %597 = vmatprep.subr.bf16.mxu0 0
        %598 = vmatpush1.bf16.msra.mxu0 %v551
        %599 = vmatprep.subr.bf16.mxu0 0
        %600 = vmatpush1.bf16.msra.mxu0 %v552
        %601 = vmatprep.mubr.bf16.mxu0 %v442
        %602 = vmatmul.mubr.bf16.gmra.mrb[0].mxu0 %v441
        %v603 = vpop.f32.mrb[0].mxu0
        %v604 = vadd.f32 0.0, %v603
        %v605 = vpop.f32.mrb[0].mxu0
        %v606 = vpop.f32.mrb[0].mxu0
        %v607 = vadd.f32 0.0, %v606
        %v608 = vpop.f32.mrb[0].mxu0
        %609 = vmatprep.mubr.bf16.mxu0 %v444
        %610 = vmatmul.mubr.bf16.gmra.mrb[0].mxu0 %v443
        %v611 = vpop.f32.mrb[0].mxu0
        %v612 = vadd.f32 0.0, %v611
        %v613 = vpop.f32.mrb[0].mxu0
        %v614 = vpop.f32.mrb[0].mxu0
        %v615 = vadd.f32 0.0, %v614
        %v616 = vpop.f32.mrb[0].mxu0
        %617 = vmatprep.mubr.bf16.mxu0 %v446
        %618 = vmatmul.mubr.bf16.gmra.mrb[0].mxu0 %v445
        %v619 = vpop.f32.mrb[0].mxu0
        %v620 = vadd.f32 0.0, %v619
        %v621 = vpop.f32.mrb[0].mxu0
        %v622 = vpop.f32.mrb[0].mxu0
        %v623 = vadd.f32 0.0, %v622
        %v624 = vpop.f32.mrb[0].mxu0
        %625 = vmatprep.mubr.bf16.mxu0 %v448
        %626 = vmatmul.mubr.bf16.gmra.mrb[0].mxu0 %v447
        %v627 = vpop.f32.mrb[0].mxu0
        %v628 = vadd.f32 0.0, %v627
        %v629 = vpop.f32.mrb[0].mxu0
        %v630 = vpop.f32.mrb[0].mxu0
        %v631 = vadd.f32 0.0, %v630
        %v632 = vpop.f32.mrb[0].mxu0
        %633 = vmatprep.mubr.bf16.mxu0 %v450
        %634 = vmatmul.mubr.bf16.gmra.mrb[0].mxu0 %v449
        %v635 = vpop.f32.mrb[0].mxu0
        %v636 = vadd.f32 0.0, %v635
        %v637 = vpop.f32.mrb[0].mxu0
        %v638 = vpop.f32.mrb[0].mxu0
        %v639 = vadd.f32 0.0, %v638
        %v640 = vpop.f32.mrb[0].mxu0
        %641 = vmatprep.mubr.bf16.mxu0 %v452
        %642 = vmatmul.mubr.bf16.gmra.mrb[0].mxu0 %v451
        %v643 = vpop.f32.mrb[0].mxu0
        %v644 = vadd.f32 0.0, %v643
        %v645 = vpop.f32.mrb[0].mxu0
        %v646 = vpop.f32.mrb[0].mxu0
        %v647 = vadd.f32 0.0, %v646
        %v648 = vpop.f32.mrb[0].mxu0
        %649 = vmatprep.mubr.bf16.mxu0 %v454
        %650 = vmatmul.mubr.bf16.gmra.mrb[0].mxu0 %v453
        %v651 = vpop.f32.mrb[0].mxu0
        %v652 = vadd.f32 0.0, %v651
        %v653 = vpop.f32.mrb[0].mxu0
        %v654 = vpop.f32.mrb[0].mxu0
        %v655 = vadd.f32 0.0, %v654
        %v656 = vpop.f32.mrb[0].mxu0
        %657 = vmatprep.mubr.bf16.mxu0 %v456
        %658 = vmatmul.mubr.bf16.gmra.mrb[0].mxu0 %v455
        %v659 = vpop.f32.mrb[0].mxu0
        %v660 = vadd.f32 0.0, %v659
        %v661 = vpop.f32.mrb[0].mxu0
        %v662 = vpop.f32.mrb[0].mxu0
        %v663 = vadd.f32 0.0, %v662
        %v664 = vpop.f32.mrb[0].mxu0
        %665 = vdwg.mxu0
        %v666 = vadd.f32 %v329, %v604
        %v667 = vadd.f32 %v330, %v607
        %v668 = vadd.f32 %v331, %v612
        %v669 = vadd.f32 %v332, %v615
        %v670 = vadd.f32 %v333, %v620
        %v671 = vadd.f32 %v334, %v623
        %v672 = vadd.f32 %v335, %v628
        %v673 = vadd.f32 %v336, %v631
        %v674 = vadd.f32 %v337, %v636
        %v675 = vadd.f32 %v338, %v639
        %v676 = vadd.f32 %v339, %v644
        %v677 = vadd.f32 %v340, %v647
        %v678 = vadd.f32 %v341, %v652
        %v679 = vadd.f32 %v342, %v655
        %v680 = vadd.f32 %v343, %v660
        %v681 = vadd.f32 %v344, %v663
        %682 = vst [vmem:[%s306] sm:$0xff] %v666
        %683 = vst [vmem:[%s306 + $0x8] sm:$0xff] %v667
        %684 = vst [vmem:[%s306 + $0x10] sm:$0xff] %v668
        %685 = vst [vmem:[%s306 + $0x18] sm:$0xff] %v669
        %686 = vst [vmem:[%s306 + $0x20] sm:$0xff] %v670
        %687 = vst [vmem:[%s306 + $0x28] sm:$0xff] %v671
        %688 = vst [vmem:[%s306 + $0x30] sm:$0xff] %v672
        %689 = vst [vmem:[%s306 + $0x38] sm:$0xff] %v673
        %690 = vst [vmem:[%s306 + $0x40] sm:$0xff] %v674
        %691 = vst [vmem:[%s306 + $0x48] sm:$0xff] %v675
        %692 = vst [vmem:[%s306 + $0x50] sm:$0xff] %v676
        %693 = vst [vmem:[%s306 + $0x58] sm:$0xff] %v677
        %694 = vst [vmem:[%s306 + $0x60] sm:$0xff] %v678
        %695 = vst [vmem:[%s306 + $0x68] sm:$0xff] %v679
        %696 = vst [vmem:[%s306 + $0x70] sm:$0xff] %v680
        %697 = vst [vmem:[%s306 + $0x78] sm:$0xff] %v681
        %p698 = scmp.eq.s32.totalorder %s19, 3
        // Predicated region
        $region75: #{_lambda_.6} parent=65 // pred_check
          %p699 = pneg %p698
        $region76: #{_lambda_.6} parent=65 // pred_check_branch
          %701 = sbr.rel (%p699) target = $region78
        $region77: #{_lambda_.6} parent=65 // pred_region
          %v702 = vld [vmem:[%s306] sm:$0xff]
          %v703 = vld [vmem:[%s306 + $0x8] sm:$0xff]
          %v704 = vld [vmem:[%s306 + $0x10] sm:$0xff]
          %v705 = vld [vmem:[%s306 + $0x18] sm:$0xff]
          %v706 = vld [vmem:[%s306 + $0x20] sm:$0xff]
          %v707 = vld [vmem:[%s306 + $0x28] sm:$0xff]
          %v708 = vld [vmem:[%s306 + $0x30] sm:$0xff]
          %v709 = vld [vmem:[%s306 + $0x38] sm:$0xff]
          %v710 = vld [vmem:[%s306 + $0x40] sm:$0xff]
          %v711 = vld [vmem:[%s306 + $0x48] sm:$0xff]
          %v712 = vld [vmem:[%s306 + $0x50] sm:$0xff]
          %v713 = vld [vmem:[%s306 + $0x58] sm:$0xff]
          %v714 = vld [vmem:[%s306 + $0x60] sm:$0xff]
          %v715 = vld [vmem:[%s306 + $0x68] sm:$0xff]
          %v716 = vld [vmem:[%s306 + $0x70] sm:$0xff]
          %v717 = vld [vmem:[%s306 + $0x78] sm:$0xff]
          %v718 = vld [vmem:[%s2] sm:$0x1]
          %v720 = vlaneseq
          %v721 = vshrl.u32 %v720, 7
          %v722 = vsub.s32 0, %v721
          %v723 = vrot.slane %v718, %v722
          %v725 = vadd.f32 %v702, %v723
          %v726 = vadd.f32 %v703, %v723
          %v727 = vadd.f32 %v704, %v723
          %v728 = vadd.f32 %v705, %v723
          %v729 = vadd.f32 %v706, %v723
          %v730 = vadd.f32 %v707, %v723
          %v731 = vadd.f32 %v708, %v723
          %v732 = vadd.f32 %v709, %v723
          %v733 = vadd.f32 %v710, %v723
          %v734 = vadd.f32 %v711, %v723
          %v735 = vadd.f32 %v712, %v723
          %v736 = vadd.f32 %v713, %v723
          %v737 = vadd.f32 %v714, %v723
          %v738 = vadd.f32 %v715, %v723
          %v739 = vadd.f32 %v716, %v723
          %v740 = vadd.f32 %v717, %v723
          %vm741 = vcmp.ge.f32.partialorder %v725, 0.0
          %vm742 = vcmp.ge.f32.partialorder %v726, 0.0
          %vm743 = vcmp.ge.f32.partialorder %v727, 0.0
          %vm744 = vcmp.ge.f32.partialorder %v728, 0.0
          %vm745 = vcmp.ge.f32.partialorder %v729, 0.0
          %vm746 = vcmp.ge.f32.partialorder %v730, 0.0
          %vm747 = vcmp.ge.f32.partialorder %v731, 0.0
          %vm748 = vcmp.ge.f32.partialorder %v732, 0.0
          %vm749 = vcmp.ge.f32.partialorder %v733, 0.0
          %vm750 = vcmp.ge.f32.partialorder %v734, 0.0
          %vm751 = vcmp.ge.f32.partialorder %v735, 0.0
          %vm752 = vcmp.ge.f32.partialorder %v736, 0.0
          %vm753 = vcmp.ge.f32.partialorder %v737, 0.0
          %vm754 = vcmp.ge.f32.partialorder %v738, 0.0
          %vm755 = vcmp.ge.f32.partialorder %v739, 0.0
          %vm756 = vcmp.ge.f32.partialorder %v740, 0.0
          %v757 = vmul.f32 %v725, 0.2
          %v758 = vmul.f32 %v726, 0.2
          %v759 = vmul.f32 %v727, 0.2
          %v760 = vmul.f32 %v728, 0.2
          %v761 = vmul.f32 %v729, 0.2
          %v762 = vmul.f32 %v730, 0.2
          %v763 = vmul.f32 %v731, 0.2
          %v764 = vmul.f32 %v732, 0.2
          %v765 = vmul.f32 %v733, 0.2
          %v766 = vmul.f32 %v734, 0.2
          %v767 = vmul.f32 %v735, 0.2
          %v768 = vmul.f32 %v736, 0.2
          %v769 = vmul.f32 %v737, 0.2
          %v770 = vmul.f32 %v738, 0.2
          %v771 = vmul.f32 %v739, 0.2
          %v772 = vmul.f32 %v740, 0.2
          %v773 = vsel %vm741, %v725, %v757
          %v774 = vsel %vm742, %v726, %v758
          %v775 = vsel %vm743, %v727, %v759
          %v776 = vsel %vm744, %v728, %v760
          %v777 = vsel %vm745, %v729, %v761
          %v778 = vsel %vm746, %v730, %v762
          %v779 = vsel %vm747, %v731, %v763
          %v780 = vsel %vm748, %v732, %v764
          %v781 = vsel %vm749, %v733, %v765
          %v782 = vsel %vm750, %v734, %v766
          %v783 = vsel %vm751, %v735, %v767
          %v784 = vsel %vm752, %v736, %v768
          %v785 = vsel %vm753, %v737, %v769
          %v786 = vsel %vm754, %v738, %v770
          %v787 = vsel %vm755, %v739, %v771
          %v788 = vsel %vm756, %v740, %v772
          %789 = vst [vmem:[%s306] sm:$0xff] %v773
          %790 = vst [vmem:[%s306 + $0x8] sm:$0xff] %v774
          %791 = vst [vmem:[%s306 + $0x10] sm:$0xff] %v775
          %792 = vst [vmem:[%s306 + $0x18] sm:$0xff] %v776
          %793 = vst [vmem:[%s306 + $0x20] sm:$0xff] %v777
          %794 = vst [vmem:[%s306 + $0x28] sm:$0xff] %v778
          %795 = vst [vmem:[%s306 + $0x30] sm:$0xff] %v779
          %796 = vst [vmem:[%s306 + $0x38] sm:$0xff] %v780
          %797 = vst [vmem:[%s306 + $0x40] sm:$0xff] %v781
          %798 = vst [vmem:[%s306 + $0x48] sm:$0xff] %v782
          %799 = vst [vmem:[%s306 + $0x50] sm:$0xff] %v783
          %800 = vst [vmem:[%s306 + $0x58] sm:$0xff] %v784
          %801 = vst [vmem:[%s306 + $0x60] sm:$0xff] %v785
          %802 = vst [vmem:[%s306 + $0x68] sm:$0xff] %v786
          %803 = vst [vmem:[%s306 + $0x70] sm:$0xff] %v787
          %804 = vst [vmem:[%s306 + $0x78] sm:$0xff] %v788
        $region78: #{_lambda_.6} parent=65 // pred_fallthru
          _
        %s805 = smul.u32 16, %s18
        %p806 = scmp.lt.s32.totalorder %s805, 15
        %s807 = scalar_select %p806, %s805, 15
        %s808 = smul.addr %s807, 8
        %s809 = scalar_lea.vmem %s3, %s808
        // Predicated region
        $region79: #{_lambda_.6} parent=65 // pred_check
          %p810 = pneg %p119
        $region80: #{_lambda_.6} parent=65 // pred_check_branch
          %812 = sbr.rel (%p810) target = $region82
        $region81: #{_lambda_.6} parent=65 // pred_region
          %s813 = smul.u32 16, %s18
        $region82: #{_lambda_.6} parent=65 // pred_fallthru
          _
        // Predicated region
        $region83: #{_lambda_.6} parent=65 // pred_check
          %p814 = pneg %p119
        $region84: #{_lambda_.6} parent=65 // pred_check_branch
          %816 = sbr.rel (%p814) target = $region86
        $region85: #{_lambda_.6} parent=65 // pred_region
          %s817 = smul.u32 16, %s18
          %p818 = scmp.lt.s32.totalorder %s817, 15
          %s819 = scalar_select %p818, %s817, 15
          %s820 = smul.addr %s819, 8
          %s821 = scalar_lea.vmem %s3, %s820
        $region86: #{_lambda_.6} parent=65 // pred_fallthru
          _
      $region66: #{_lambda_.6} parent=5 // pred_fallthru
        _
      %p822 = scmp.le.s32.totalorder 2, %s9
      // Predicated region
      $region87: #{_lambda_.6} parent=5 // pred_check
        %p823 = pneg %p822
      $region88: #{_lambda_.6} parent=5 // pred_check_branch
        %825 = sbr.rel (%p823) target = $region90
      $region89: #{_lambda_.6} parent=5 // pred_region
        %s826 = ssub.s32 %s9, 2
      $region90: #{_lambda_.6} parent=5 // pred_fallthru
        _
    $region6: #{_lambda_.6} parent=1 // loop_footer
      %s13 = sadd.s32 1, %s9
    $region7: #{_lambda_.6} parent=1 // loop_footer_branch
      %8 = sbr.rel target = $region3
    $region8: #{_lambda_.6} parent=1 // loop_exit
      _

// kernel: _lambda_.7
$region0: #{_lambda_.7}
  #allocation0 [shape = 'u32[]', space=smem, size = 0x4, offset = 0x4, fixed_abs, tag = 'smem constant byte address 0x4 - core index']
  #allocation1 [shape = 'u32[144,128]{1,0:T(1,128)}', space=vmem, size = 0x12000, scoped, tag = 'internal scratch']
  %s0 = inlined_call_operand.vmem [shape: bf16[32,2048], index: 0, kind: input, shape index: {}]
  %s1 = inlined_call_operand.vmem [shape: bf16[2048,256], index: 1, kind: input, shape index: {}]
  %s2 = inlined_call_operand.vmem [shape: f32[1,256], index: 2, kind: input, shape index: {}]
  %s3 = inlined_call_operand.vmem [shape: f32[32,256], index: 3, kind: output, shape index: {}]
  %s4 = sld [smem:[#allocation0]]
  $region91: #{_lambda_.7} parent=0
    _
  %s6 = ssub.s32 1, %s4
  %s7 = scalar_select 0, %s6, %s4
  $region1: #{_lambda_.7} parent=0
    #allocation2 [shape = 'u8[32768]{0}', space=vmem, size = 0x8000, scoped, tag = 'input window, operand 0']
    loop: start=0, step=1, limit=10
    $region2: #{_lambda_.7} parent=1 // loop_pre_header
      _
    $region3: #{_lambda_.7} parent=1 // loop_header
      %s9 = sphi 0, %s13
      %p10 = scmp.ge.s32.totalorder %s9, 10
      %s16 = sphi 0, %s28
      %s17 = sphi 0, %s24
      %s18 = sphi 0, %s16
      %s19 = sphi 0, %s17
      %s20 = sphi 0, %s18
      %s21 = sphi 0, %s19
      %s33 = sphi 0, %s35
      %s36 = sphi 0, %s33
      %s37 = sphi 0, %s36
      %s53 = sphi 0, %s37
      %s59 = sphi 0, %s61
      %s62 = sphi 0, %s59
      %s63 = sphi 0, %s62
      %s79 = sphi 0, %s63
      %s83 = sphi 0, %s83
      %s85 = sphi 0, %s83
      %s86 = sphi 0, %s85
      %s100 = sphi 0, %s86
      %s106 = sphi 0, %s108
      %s109 = sphi 0, %s106
      %s110 = sphi 0, %s109
      %s126 = sphi 0, %s110
    $region4: #{_lambda_.7} parent=1 // loop_header_branch
      %12 = sbr.rel (%p10) target = $region8
    $region5: #{_lambda_.7} parent=1 // loop_body
      %s14 = ssub.s32 %s9, 1
      %s15 = ssub.s32 %s9, 2
      %s22 = sadd.s32 1, %s17
      %p23 = scmp.ge.s32.totalorder %s22, 8
      %s24 = scalar_select %p23, 0, %s22
      %s25 = sadd.s32 1, %s16
      %s26 = scalar_select %p23, %s25, %s16
      %p27 = scmp.ge.s32.totalorder %s26, 1
      %s28 = scalar_select %p27, 0, %s26
      %s29 = ssub.s32 %s16, %s28
      %s30 = ssub.s32 %s17, %s24
      %s31 = sor.u32 %s29, %s30
      %p32 = scmp.eq.s32.totalorder %s31, 0
      %s34 = sadd.s32 %s33, 1
      %s35 = scalar_select %p32, %s33, %s34
      %p38 = pneg %p32
      %p39 = scmp.eq.s32.totalorder %s9, 7
      %p40 = por %p38, %p39
      %p41 = scmp.ne.s32.totalorder %s33, %s36
      %p42 = scmp.eq.s32.totalorder %s9, 0
      %p43 = por %p41, %p42
      %p44 = scmp.ne.s32.totalorder %s33, %s36
      %p45 = scmp.eq.s32.totalorder %s14, 7
      %p46 = por %p44, %p45
      %p47 = scmp.ne.s32.totalorder %s36, %s37
      %p48 = scmp.eq.s32.totalorder %s14, 0
      %p49 = por %p47, %p48
      %p50 = scmp.ne.s32.totalorder %s36, %s37
      %p51 = scmp.eq.s32.totalorder %s15, 7
      %p52 = por %p50, %p51
      %p54 = scmp.ne.s32.totalorder %s37, %s53
      %p55 = scmp.eq.s32.totalorder %s15, 0
      %p56 = por %p54, %p55
      %s57 = ssub.s32 %s17, %s24
      %p58 = scmp.eq.s32.totalorder %s57, 0
      %s60 = sadd.s32 %s59, 1
      %s61 = scalar_select %p58, %s59, %s60
      %p64 = pneg %p58
      %p65 = scmp.eq.s32.totalorder %s9, 7
      %p66 = por %p64, %p65
      %p67 = scmp.ne.s32.totalorder %s59, %s62
      %p68 = scmp.eq.s32.totalorder %s9, 0
      %p69 = por %p67, %p68
      %p70 = scmp.ne.s32.totalorder %s59, %s62
      %p71 = scmp.eq.s32.totalorder %s14, 7
      %p72 = por %p70, %p71
      %p73 = scmp.ne.s32.totalorder %s62, %s63
      %p74 = scmp.eq.s32.totalorder %s14, 0
      %p75 = por %p73, %p74
      %p76 = scmp.ne.s32.totalorder %s62, %s63
      %p77 = scmp.eq.s32.totalorder %s15, 7
      %p78 = por %p76, %p77
      %p80 = scmp.ne.s32.totalorder %s63, %s79
      %p81 = scmp.eq.s32.totalorder %s15, 0
      %p82 = por %p80, %p81
      %s84 = sadd.s32 %s83, 1
      %p87 = scmp.eq.s32.totalorder %s9, 7
      %p88 = scmp.ne.s32.totalorder %s83, %s85
      %p89 = scmp.eq.s32.totalorder %s9, 0
      %p90 = por %p88, %p89
      %p91 = scmp.ne.s32.totalorder %s83, %s85
      %p92 = scmp.eq.s32.totalorder %s14, 7
      %p93 = por %p91, %p92
      %p94 = scmp.ne.s32.totalorder %s85, %s86
      %p95 = scmp.eq.s32.totalorder %s14, 0
      %p96 = por %p94, %p95
      %p97 = scmp.ne.s32.totalorder %s85, %s86
      %p98 = scmp.eq.s32.totalorder %s15, 7
      %p99 = por %p97, %p98
      %p101 = scmp.ne.s32.totalorder %s86, %s100
      %p102 = scmp.eq.s32.totalorder %s15, 0
      %p103 = por %p101, %p102
      %s104 = ssub.s32 %s16, %s28
      %p105 = scmp.eq.s32.totalorder %s104, 0
      %s107 = sadd.s32 %s106, 1
      %s108 = scalar_select %p105, %s106, %s107
      %p111 = pneg %p105
      %p112 = scmp.eq.s32.totalorder %s9, 7
      %p113 = por %p111, %p112
      %p114 = scmp.ne.s32.totalorder %s106, %s109
      %p115 = scmp.eq.s32.totalorder %s9, 0
      %p116 = por %p114, %p115
      %p117 = scmp.ne.s32.totalorder %s106, %s109
      %p118 = scmp.eq.s32.totalorder %s14, 7
      %p119 = por %p117, %p118
      %p120 = scmp.ne.s32.totalorder %s109, %s110
      %p121 = scmp.eq.s32.totalorder %s14, 0
      %p122 = por %p120, %p121
      %p123 = scmp.ne.s32.totalorder %s109, %s110
      %p124 = scmp.eq.s32.totalorder %s15, 7
      %p125 = por %p123, %p124
      %p127 = scmp.ne.s32.totalorder %s110, %s126
      %p128 = scmp.eq.s32.totalorder %s15, 0
      %p129 = por %p127, %p128
      %p130 = scmp.le.s32.totalorder 1, %s9
      %p131 = scmp.lt.s32.totalorder %s9, 9
      %p132 = pnand %p130, %p131
      %p133 = pneg %p132
      // Predicated region
      $region9: #{_lambda_.7} parent=5 // pred_check
        _
      $region10: #{_lambda_.7} parent=5 // pred_check_branch
        %135 = sbr.rel (%p132) target = $region12
      $region11: #{_lambda_.7} parent=5 // pred_region
        %s136 = ssub.s32 %s9, 1
        // Predicated region
        $region13: #{_lambda_.7} parent=11 // pred_check
          %p137 = pneg %p96
        $region14: #{_lambda_.7} parent=11 // pred_check_branch
          %139 = sbr.rel (%p137) target = $region16
        $region15: #{_lambda_.7} parent=11 // pred_region
          _
        $region16: #{_lambda_.7} parent=11 // pred_fallthru
          _
      $region12: #{_lambda_.7} parent=5 // pred_fallthru
        _
      %p140 = scmp.lt.s32.totalorder %s9, 8
      // Predicated region
      $region17: #{_lambda_.7} parent=5 // pred_check
        %p141 = pneg %p140
      $region18: #{_lambda_.7} parent=5 // pred_check_branch
        %143 = sbr.rel (%p141) target = $region20
      $region19: #{_lambda_.7} parent=5 // pred_region
        // Predicated region
        $region21: #{_lambda_.7} parent=19 // pred_check
          %p144 = pneg %p43
        $region22: #{_lambda_.7} parent=19 // pred_check_branch
          %146 = sbr.rel (%p144) target = $region24
        $region23: #{_lambda_.7} parent=19 // pred_region
          %s147 = sand.u32 %s33, 1
          %s148 = sand.u32 %s33, 1
          %s149 = smul.addr %s148, 32
          %s150 = scalar_lea.vmem [#allocation2], %s149
          %s151 = smul.u32 4, %s16
          %s152 = smul.u32 2, %s17
          %s153 = smul.addr %s151, 16
          %s154 = sadd.s32 %s152, %s153
          %s155 = smul.addr %s154, 4
          %s156 = scalar_lea.vmem %s0, %s155
          // Predicated region
          $region25: #{_lambda_.7} parent=23 // pred_check
            _
          $region26: #{_lambda_.7} parent=23 // pred_check_branch
            %158 = sbr.rel (0) target = $region28
          $region27: #{_lambda_.7} parent=23 // pred_region
            // Predicated region
            $region29: #{_lambda_.7} parent=27 // pred_check
              _
            $region30: #{_lambda_.7} parent=27 // pred_check_branch
              %160 = sbr.rel (0) target = $region32
            $region31: #{_lambda_.7} parent=27 // pred_region
              // Predicated region
              $region44: #{_lambda_.7} parent=31 // pred_check
                _
              $region45: #{_lambda_.7} parent=31 // pred_check_branch
                %181 = sbr.rel (0) target = $region47
              $region46: #{_lambda_.7} parent=31 // pred_region
                loop: start=0, step=1, limit=1
                $region48: #{_lambda_.7} parent=46 // loop_pre_header
                  _
                $region49: #{_lambda_.7} parent=46 // loop_header
                  %s183 = sphi 0, %s187
                  %p184 = scmp.ge.s32.totalorder %s183, 1
                  %s188 = sphi %s156, %s156
                  %s189 = sphi %s150, %s150
                $region50: #{_lambda_.7} parent=46 // loop_header_branch
                  %186 = sbr.rel (%p184) target = $region54
                $region51: #{_lambda_.7} parent=46 // loop_body
                  %v190 = vld [vmem:[%s188] sm:$0xff]
                  %191 = vst [vmem:[%s189] sm:$0xff] %v190
                  %v192 = vld [vmem:[%s188 + $0x40] sm:$0xff]
                  %193 = vst [vmem:[%s189 + $0x8] sm:$0xff] %v192
                  %v194 = vld [vmem:[%s188 + $0x80] sm:$0xff]
                  %195 = vst [vmem:[%s189 + $0x10] sm:$0xff] %v194
                  %v196 = vld [vmem:[%s188 + $0xc0] sm:$0xff]
                  %197 = vst [vmem:[%s189 + $0x18] sm:$0xff] %v196
                $region52: #{_lambda_.7} parent=46 // loop_footer
                  %s187 = sadd.s32 1, %s183
                $region53: #{_lambda_.7} parent=46 // loop_footer_branch
                  %182 = sbr.rel target = $region49
                $region54: #{_lambda_.7} parent=46 // loop_exit
                  _
              $region47: #{_lambda_.7} parent=31 // pred_fallthru
                _
              // Predicated region
              $region55: #{_lambda_.7} parent=31 // pred_check
                _
              $region56: #{_lambda_.7} parent=31 // pred_check_branch
                %199 = sbr.rel target = $region58
              $region57: #{_lambda_.7} parent=31 // pred_region
                _
              $region58: #{_lambda_.7} parent=31 // pred_fallthru
                _
            $region32: #{_lambda_.7} parent=27 // pred_fallthru
              _
            // Predicated region
            $region33: #{_lambda_.7} parent=27 // pred_check
              _
            $region34: #{_lambda_.7} parent=27 // pred_check_branch
              %162 = sbr.rel target = $region36
            $region35: #{_lambda_.7} parent=27 // pred_region
              loop: start=0, step=1, limit=1
              $region37: #{_lambda_.7} parent=35 // loop_pre_header
                _
              $region38: #{_lambda_.7} parent=35 // loop_header
                %s165 = sphi 0, %s169
                %p166 = scmp.ge.s32.totalorder %s165, 1
                %s170 = sphi %s156, %s156
                %s171 = sphi %s150, %s150
              $region39: #{_lambda_.7} parent=35 // loop_header_branch
                %168 = sbr.rel (%p166) target = $region43
              $region40: #{_lambda_.7} parent=35 // loop_body
                %v172 = vld [vmem:[%s170] sm:$0xff]
                %173 = vst [vmem:[%s171] sm:$0xff] %v172
                %v174 = vld [vmem:[%s170 + $0x40] sm:$0xff]
                %175 = vst [vmem:[%s171 + $0x8] sm:$0xff] %v174
                %v176 = vld [vmem:[%s170 + $0x80] sm:$0xff]
                %177 = vst [vmem:[%s171 + $0x10] sm:$0xff] %v176
                %v178 = vld [vmem:[%s170 + $0xc0] sm:$0xff]
                %179 = vst [vmem:[%s171 + $0x18] sm:$0xff] %v178
              $region41: #{_lambda_.7} parent=35 // loop_footer
                %s169 = sadd.s32 1, %s165
              $region42: #{_lambda_.7} parent=35 // loop_footer_branch
                %164 = sbr.rel target = $region38
              $region43: #{_lambda_.7} parent=35 // loop_exit
                _
            $region36: #{_lambda_.7} parent=27 // pred_fallthru
              _
          $region28: #{_lambda_.7} parent=23 // pred_fallthru
            _
          %200 = vnop
        $region24: #{_lambda_.7} parent=19 // pred_fallthru
          _
        // Predicated region
        $region59: #{_lambda_.7} parent=19 // pred_check
          %p201 = pneg %p69
        $region60: #{_lambda_.7} parent=19 // pred_check_branch
          %203 = sbr.rel (%p201) target = $region62
        $region61: #{_lambda_.7} parent=19 // pred_region
          %s204 = smul.u32 32, %s17
          %p205 = scmp.lt.s32.totalorder %s204, 255
          %s206 = scalar_select %p205, %s204, 255
          %s207 = smul.addr %s206, 2
          %s208 = smul.addr %s207, 4
          %s209 = scalar_lea.vmem %s1, %s208
          %s210 = smul.u32 32, %s17
        $region62: #{_lambda_.7} parent=19 // pred_fallthru
          _
      $region20: #{_lambda_.7} parent=5 // pred_fallthru
        _
      %p211 = scmp.le.s32.totalorder 1, %s9
      %p212 = scmp.lt.s32.totalorder %s9, 9
      %p213 = pnand %p211, %p212
      %p214 = pneg %p213
      // Predicated region
      $region63: #{_lambda_.7} parent=5 // pred_check
        _
      $region64: #{_lambda_.7} parent=5 // pred_check_branch
        %216 = sbr.rel (%p213) target = $region66
      $region65: #{_lambda_.7} parent=5 // pred_region
        %s217 = ssub.s32 %s9, 1
        %s218 = sand.u32 %s36, 1
        %s219 = sand.u32 %s36, 1
        %s220 = smul.addr %s219, 32
        %s221 = scalar_lea.vmem [#allocation2], %s220
        // Predicated region
        $region67: #{_lambda_.7} parent=65 // pred_check
          %p222 = pneg %p49
        $region68: #{_lambda_.7} parent=65 // pred_check_branch
          %224 = sbr.rel (%p222) target = $region70
        $region69: #{_lambda_.7} parent=65 // pred_region
          _
        $region70: #{_lambda_.7} parent=65 // pred_fallthru
          _
        %s225 = sand.u32 %s36, 1
        %s226 = sand.u32 %s36, 1
        %s227 = smul.addr %s226, 32
        %s228 = scalar_lea.vmem [#allocation2], %s227
        %p229 = pneg %p49
        %p230 = pneg %p46
        %s231 = smul.u32 32, %s19
        %p232 = scmp.lt.s32.totalorder %s231, 255
        %s233 = scalar_select %p232, %s231, 255
        %s234 = smul.addr %s233, 2
        %s235 = smul.addr %s234, 4
        %s236 = scalar_lea.vmem %s1, %s235
        %p237 = pneg %p75
        %p238 = pneg %p72
        %p239 = pneg %p96
        %p240 = pneg %p93
        %p241 = pneg %p122
        %p242 = pneg %p119
        %s243 = smul.u32 4, %s18
        %p244 = scmp.lt.s32.totalorder %s243, 3
        %s245 = scalar_select %p244, %s243, 3
        %s246 = smul.addr %s245, 2
        %s247 = smul.addr %s246, 8
        %s248 = scalar_lea.vmem %s3, %s247
        %s249 = smul.u32 4, %s18
        %s250 = smul.u32 2, %s19
        %s251 = smul.u32 32, %s19
        %p252 = scmp.lt.s32.totalorder %s251, 255
        %s253 = scalar_select %p252, %s251, 255
        %s254 = smul.addr %s253, 2
        %s255 = smul.addr %s254, 4
        %s256 = scalar_lea.vmem %s1, %s255
        %s257 = smul.u32 32, %s19
        %s258 = smul.u32 4, %s18
        %p259 = scmp.lt.s32.totalorder %s258, 3
        %s260 = scalar_select %p259, %s258, 3
        %s261 = smul.addr %s260, 2
        %s262 = smul.addr %s261, 8
        %s263 = scalar_lea.vmem %s3, %s262
        %s264 = smul.u32 4, %s18
        %p265 = scmp.eq.s32.totalorder %s19, 0
        // Predicated region
        $region71: #{_lambda_.7} parent=65 // pred_check
          %p266 = pneg %p265
        $region72: #{_lambda_.7} parent=65 // pred_check_branch
          %268 = sbr.rel (%p266) target = $region74
        $region73: #{_lambda_.7} parent=65 // pred_region
          %269 = vst [vmem:[%s263] sm:$0xff] 0.0
          %270 = vst [vmem:[%s263 + $0x8] sm:$0xff] 0.0
          %271 = vst [vmem:[%s263 + $0x10] sm:$0xff] 0.0
          %272 = vst [vmem:[%s263 + $0x18] sm:$0xff] 0.0
          %273 = vst [vmem:[%s263 + $0x20] sm:$0xff] 0.0
          %274 = vst [vmem:[%s263 + $0x28] sm:$0xff] 0.0
          %275 = vst [vmem:[%s263 + $0x30] sm:$0xff] 0.0
          %276 = vst [vmem:[%s263 + $0x38] sm:$0xff] 0.0
        $region74: #{_lambda_.7} parent=65 // pred_fallthru
          _
        %v277 = vld [vmem:[%s263] sm:$0xff]
        %v278 = vld [vmem:[%s263 + $0x8] sm:$0xff]
        %v279 = vld [vmem:[%s263 + $0x10] sm:$0xff]
        %v280 = vld [vmem:[%s263 + $0x18] sm:$0xff]
        %v281 = vld [vmem:[%s263 + $0x20] sm:$0xff]
        %v282 = vld [vmem:[%s263 + $0x28] sm:$0xff]
        %v283 = vld [vmem:[%s263 + $0x30] sm:$0xff]
        %v284 = vld [vmem:[%s263 + $0x38] sm:$0xff]
        %v285 = vld [vmem:[%s221] sm:$0xff]
        %v286 = vld [vmem:[%s221 + $0x8] sm:$0xff]
        %v287 = vld [vmem:[%s221 + $0x10] sm:$0xff]
        %v288 = vld [vmem:[%s221 + $0x18] sm:$0xff]
        %v289 = vld [vmem:[%s256] sm:$0xff]
        %v290 = vld [vmem:[%s256 + $0x8] sm:$0xff]
        %v291 = vld [vmem:[%s256 + $0x10] sm:$0xff]
        %v292 = vld [vmem:[%s256 + $0x18] sm:$0xff]
        %v293 = vld [vmem:[%s256 + $0x20] sm:$0xff]
        %v294 = vld [vmem:[%s256 + $0x28] sm:$0xff]
        %v295 = vld [vmem:[%s256 + $0x30] sm:$0xff]
        %v296 = vld [vmem:[%s256 + $0x38] sm:$0xff]
        %v297 = vld [vmem:[%s256 + $0x40] sm:$0xff]
        %v298 = vld [vmem:[%s256 + $0x48] sm:$0xff]
        %v299 = vld [vmem:[%s256 + $0x50] sm:$0xff]
        %v300 = vld [vmem:[%s256 + $0x58] sm:$0xff]
        %v301 = vld [vmem:[%s256 + $0x60] sm:$0xff]
        %v302 = vld [vmem:[%s256 + $0x68] sm:$0xff]
        %v303 = vld [vmem:[%s256 + $0x70] sm:$0xff]
        %v304 = vld [vmem:[%s256 + $0x78] sm:$0xff]
        %v305 = vld [vmem:[%s256 + $0x80] sm:$0xff]
        %v306 = vld [vmem:[%s256 + $0x88] sm:$0xff]
        %v307 = vld [vmem:[%s256 + $0x90] sm:$0xff]
        %v308 = vld [vmem:[%s256 + $0x98] sm:$0xff]
        %v309 = vld [vmem:[%s256 + $0xa0] sm:$0xff]
        %v310 = vld [vmem:[%s256 + $0xa8] sm:$0xff]
        %v311 = vld [vmem:[%s256 + $0xb0] sm:$0xff]
        %v312 = vld [vmem:[%s256 + $0xb8] sm:$0xff]
        %v313 = vld [vmem:[%s256 + $0xc0] sm:$0xff]
        %v314 = vld [vmem:[%s256 + $0xc8] sm:$0xff]
        %v315 = vld [vmem:[%s256 + $0xd0] sm:$0xff]
        %v316 = vld [vmem:[%s256 + $0xd8] sm:$0xff]
        %v317 = vld [vmem:[%s256 + $0xe0] sm:$0xff]
        %v318 = vld [vmem:[%s256 + $0xe8] sm:$0xff]
        %v319 = vld [vmem:[%s256 + $0xf0] sm:$0xff]
        %v320 = vld [vmem:[%s256 + $0xf8] sm:$0xff]
        %v325 = vunpack.c.l.b16 %v285
        %v326 = vunpack.c.h.b16 %v285
        %v327 = vunpack.c.l.b16 %v286
        %v328 = vunpack.c.h.b16 %v286
        %v329 = vunpack.c.l.b16 %v287
        %v330 = vunpack.c.h.b16 %v287
        %v331 = vunpack.c.l.b16 %v288
        %v332 = vunpack.c.h.b16 %v288
        %v333 = vpack.c.b16 %v327, %v325
        %v334 = vpack.c.b16 %v328, %v326
        %v335 = vpack.c.b16 %v331, %v329
        %v336 = vpack.c.b16 %v332, %v330
        %v373 = vunpack.c.l.b16 %v289
        %v374 = vunpack.c.h.b16 %v289
        %v375 = vunpack.c.l.b16 %v290
        %v376 = vunpack.c.h.b16 %v290
        %v377 = vunpack.c.l.b16 %v291
        %v378 = vunpack.c.h.b16 %v291
        %v379 = vunpack.c.l.b16 %v292
        %v380 = vunpack.c.h.b16 %v292
        %v381 = vunpack.c.l.b16 %v293
        %v382 = vunpack.c.h.b16 %v293
        %v383 = vunpack.c.l.b16 %v294
        %v384 = vunpack.c.h.b16 %v294
        %v385 = vunpack.c.l.b16 %v295
        %v386 = vunpack.c.h.b16 %v295
        %v387 = vunpack.c.l.b16 %v296
        %v388 = vunpack.c.h.b16 %v296
        %v389 = vunpack.c.l.b16 %v297
        %v390 = vunpack.c.h.b16 %v297
        %v391 = vunpack.c.l.b16 %v298
        %v392 = vunpack.c.h.b16 %v298
        %v393 = vunpack.c.l.b16 %v299
        %v394 = vunpack.c.h.b16 %v299
        %v395 = vunpack.c.l.b16 %v300
        %v396 = vunpack.c.h.b16 %v300
        %v397 = vunpack.c.l.b16 %v301
        %v398 = vunpack.c.h.b16 %v301
        %v399 = vunpack.c.l.b16 %v302
        %v400 = vunpack.c.h.b16 %v302
        %v401 = vunpack.c.l.b16 %v303
        %v402 = vunpack.c.h.b16 %v303
        %v403 = vunpack.c.l.b16 %v304
        %v404 = vunpack.c.h.b16 %v304
        %v405 = vunpack.c.l.b16 %v305
        %v406 = vunpack.c.h.b16 %v305
        %v407 = vunpack.c.l.b16 %v306
        %v408 = vunpack.c.h.b16 %v306
        %v409 = vunpack.c.l.b16 %v307
        %v410 = vunpack.c.h.b16 %v307
        %v411 = vunpack.c.l.b16 %v308
        %v412 = vunpack.c.h.b16 %v308
        %v413 = vunpack.c.l.b16 %v309
        %v414 = vunpack.c.h.b16 %v309
        %v415 = vunpack.c.l.b16 %v310
        %v416 = vunpack.c.h.b16 %v310
        %v417 = vunpack.c.l.b16 %v311
        %v418 = vunpack.c.h.b16 %v311
        %v419 = vunpack.c.l.b16 %v312
        %v420 = vunpack.c.h.b16 %v312
        %v421 = vunpack.c.l.b16 %v313
        %v422 = vunpack.c.h.b16 %v313
        %v423 = vunpack.c.l.b16 %v314
        %v424 = vunpack.c.h.b16 %v314
        %v425 = vunpack.c.l.b16 %v315
        %v426 = vunpack.c.h.b16 %v315
        %v427 = vunpack.c.l.b16 %v316
        %v428 = vunpack.c.h.b16 %v316
        %v429 = vunpack.c.l.b16 %v317
        %v430 = vunpack.c.h.b16 %v317
        %v431 = vunpack.c.l.b16 %v318
        %v432 = vunpack.c.h.b16 %v318
        %v433 = vunpack.c.l.b16 %v319
        %v434 = vunpack.c.h.b16 %v319
        %v435 = vunpack.c.l.b16 %v320
        %v436 = vunpack.c.h.b16 %v320
        %v437 = vpack.c.b16 %v375, %v373
        %v438 = vpack.c.b16 %v376, %v374
        %v439 = vpack.c.b16 %v379, %v377
        %v440 = vpack.c.b16 %v380, %v378
        %v441 = vpack.c.b16 %v383, %v381
        %v442 = vpack.c.b16 %v384, %v382
        %v443 = vpack.c.b16 %v387, %v385
        %v444 = vpack.c.b16 %v388, %v386
        %v445 = vpack.c.b16 %v391, %v389
        %v446 = vpack.c.b16 %v392, %v390
        %v447 = vpack.c.b16 %v395, %v393
        %v448 = vpack.c.b16 %v396, %v394
        %v449 = vpack.c.b16 %v399, %v397
        %v450 = vpack.c.b16 %v400, %v398
        %v451 = vpack.c.b16 %v403, %v401
        %v452 = vpack.c.b16 %v404, %v402
        %v453 = vpack.c.b16 %v407, %v405
        %v454 = vpack.c.b16 %v408, %v406
        %v455 = vpack.c.b16 %v411, %v409
        %v456 = vpack.c.b16 %v412, %v410
        %v457 = vpack.c.b16 %v415, %v413
        %v458 = vpack.c.b16 %v416, %v414
        %v459 = vpack.c.b16 %v419, %v417
        %v460 = vpack.c.b16 %v420, %v418
        %v461 = vpack.c.b16 %v423, %v421
        %v462 = vpack.c.b16 %v424, %v422
        %v463 = vpack.c.b16 %v427, %v425
        %v464 = vpack.c.b16 %v428, %v426
        %v465 = vpack.c.b16 %v431, %v429
        %v466 = vpack.c.b16 %v432, %v430
        %v467 = vpack.c.b16 %v435, %v433
        %v468 = vpack.c.b16 %v436, %v434
        %501 = vmatprep.subr.bf16.mxu0 %v438
        %502 = vmatpush1.bf16.msra.mxu0 %v437
        %503 = vmatprep.subr.bf16.mxu0 %v440
        %504 = vmatpush1.bf16.msra.mxu0 %v439
        %505 = vmatprep.subr.bf16.mxu0 %v442
        %506 = vmatpush1.bf16.msra.mxu0 %v441
        %507 = vmatprep.subr.bf16.mxu0 %v444
        %508 = vmatpush1.bf16.msra.mxu0 %v443
        %509 = vmatprep.subr.bf16.mxu0 %v446
        %510 = vmatpush1.bf16.msra.mxu0 %v445
        %511 = vmatprep.subr.bf16.mxu0 %v448
        %512 = vmatpush1.bf16.msra.mxu0 %v447
        %513 = vmatprep.subr.bf16.mxu0 %v450
        %514 = vmatpush1.bf16.msra.mxu0 %v449
        %515 = vmatprep.subr.bf16.mxu0 %v452
        %516 = vmatpush1.bf16.msra.mxu0 %v451
        %517 = vmatprep.subr.bf16.mxu0 %v454
        %518 = vmatpush1.bf16.msra.mxu0 %v453
        %519 = vmatprep.subr.bf16.mxu0 %v456
        %520 = vmatpush1.bf16.msra.mxu0 %v455
        %521 = vmatprep.subr.bf16.mxu0 %v458
        %522 = vmatpush1.bf16.msra.mxu0 %v457
        %523 = vmatprep.subr.bf16.mxu0 %v460
        %524 = vmatpush1.bf16.msra.mxu0 %v459
        %525 = vmatprep.subr.bf16.mxu0 %v462
        %526 = vmatpush1.bf16.msra.mxu0 %v461
        %527 = vmatprep.subr.bf16.mxu0 %v464
        %528 = vmatpush1.bf16.msra.mxu0 %v463
        %529 = vmatprep.subr.bf16.mxu0 %v466
        %530 = vmatpush1.bf16.msra.mxu0 %v465
        %531 = vmatprep.subr.bf16.mxu0 %v468
        %532 = vmatpush1.bf16.msra.mxu0 %v467
        %533 = vmatprep.mubr.bf16.mxu0 %v334
        %534 = vmatmul.mubr.bf16.gmra.mrb[0].mxu0 %v333
        %v535 = vpop.f32.mrb[0].mxu0
        %v536 = vadd.f32 0.0, %v535
        %v537 = vpop.f32.mrb[0].mxu0
        %v538 = vadd.f32 0.0, %v537
        %v539 = vpop.f32.mrb[0].mxu0
        %v540 = vadd.f32 0.0, %v539
        %v541 = vpop.f32.mrb[0].mxu0
        %v542 = vadd.f32 0.0, %v541
        %543 = vmatprep.mubr.bf16.mxu0 %v336
        %544 = vmatmul.mubr.bf16.gmra.mrb[0].mxu0 %v335
        %v545 = vpop.f32.mrb[0].mxu0
        %v546 = vadd.f32 0.0, %v545
        %v547 = vpop.f32.mrb[0].mxu0
        %v548 = vadd.f32 0.0, %v547
        %v549 = vpop.f32.mrb[0].mxu0
        %v550 = vadd.f32 0.0, %v549
        %v551 = vpop.f32.mrb[0].mxu0
        %v552 = vadd.f32 0.0, %v551
        %553 = vdwg.mxu0
        %v554 = vadd.f32 %v277, %v536
        %v555 = vadd.f32 %v278, %v538
        %v556 = vadd.f32 %v279, %v540
        %v557 = vadd.f32 %v280, %v542
        %v558 = vadd.f32 %v281, %v546
        %v559 = vadd.f32 %v282, %v548
        %v560 = vadd.f32 %v283, %v550
        %v561 = vadd.f32 %v284, %v552
        %562 = vst [vmem:[%s263] sm:$0xff] %v554
        %563 = vst [vmem:[%s263 + $0x8] sm:$0xff] %v555
        %564 = vst [vmem:[%s263 + $0x10] sm:$0xff] %v556
        %565 = vst [vmem:[%s263 + $0x18] sm:$0xff] %v557
        %566 = vst [vmem:[%s263 + $0x20] sm:$0xff] %v558
        %567 = vst [vmem:[%s263 + $0x28] sm:$0xff] %v559
        %568 = vst [vmem:[%s263 + $0x30] sm:$0xff] %v560
        %569 = vst [vmem:[%s263 + $0x38] sm:$0xff] %v561
        %p570 = scmp.eq.s32.totalorder %s19, 7
        // Predicated region
        $region75: #{_lambda_.7} parent=65 // pred_check
          %p571 = pneg %p570
        $region76: #{_lambda_.7} parent=65 // pred_check_branch
          %573 = sbr.rel (%p571) target = $region78
        $region77: #{_lambda_.7} parent=65 // pred_region
          %v574 = vld [vmem:[%s263] sm:$0xff]
          %v575 = vld [vmem:[%s263 + $0x8] sm:$0xff]
          %v576 = vld [vmem:[%s263 + $0x10] sm:$0xff]
          %v577 = vld [vmem:[%s263 + $0x18] sm:$0xff]
          %v578 = vld [vmem:[%s263 + $0x20] sm:$0xff]
          %v579 = vld [vmem:[%s263 + $0x28] sm:$0xff]
          %v580 = vld [vmem:[%s263 + $0x30] sm:$0xff]
          %v581 = vld [vmem:[%s263 + $0x38] sm:$0xff]
          %v582 = vld [vmem:[%s2] sm:$0x3]
          %v584 = vlaneseq
          %v585 = vshrl.u32 %v584, 7
          %v586 = vsub.s32 0, %v585
          %v587 = vrot.slane %v582, %v586
          %v588 = vlaneseq
          %v589 = vshrl.u32 %v588, 7
          %v590 = vsub.s32 1, %v589
          %v591 = vrot.slane %v582, %v590
          %v594 = vadd.f32 %v574, %v587
          %v595 = vadd.f32 %v575, %v591
          %v596 = vadd.f32 %v576, %v587
          %v597 = vadd.f32 %v577, %v591
          %v598 = vadd.f32 %v578, %v587
          %v599 = vadd.f32 %v579, %v591
          %v600 = vadd.f32 %v580, %v587
          %v601 = vadd.f32 %v581, %v591
          %vm602 = vcmp.ge.f32.partialorder %v594, 0.0
          %vm603 = vcmp.ge.f32.partialorder %v595, 0.0
          %vm604 = vcmp.ge.f32.partialorder %v596, 0.0
          %vm605 = vcmp.ge.f32.partialorder %v597, 0.0
          %vm606 = vcmp.ge.f32.partialorder %v598, 0.0
          %vm607 = vcmp.ge.f32.partialorder %v599, 0.0
          %vm608 = vcmp.ge.f32.partialorder %v600, 0.0
          %vm609 = vcmp.ge.f32.partialorder %v601, 0.0
          %v610 = vmul.f32 %v594, 0.2
          %v611 = vmul.f32 %v595, 0.2
          %v612 = vmul.f32 %v596, 0.2
          %v613 = vmul.f32 %v597, 0.2
          %v614 = vmul.f32 %v598, 0.2
          %v615 = vmul.f32 %v599, 0.2
          %v616 = vmul.f32 %v600, 0.2
          %v617 = vmul.f32 %v601, 0.2
          %v618 = vsel %vm602, %v594, %v610
          %v619 = vsel %vm603, %v595, %v611
          %v620 = vsel %vm604, %v596, %v612
          %v621 = vsel %vm605, %v597, %v613
          %v622 = vsel %vm606, %v598, %v614
          %v623 = vsel %vm607, %v599, %v615
          %v624 = vsel %vm608, %v600, %v616
          %v625 = vsel %vm609, %v601, %v617
          %626 = vst [vmem:[%s263] sm:$0xff] %v618
          %627 = vst [vmem:[%s263 + $0x8] sm:$0xff] %v619
          %628 = vst [vmem:[%s263 + $0x10] sm:$0xff] %v620
          %629 = vst [vmem:[%s263 + $0x18] sm:$0xff] %v621
          %630 = vst [vmem:[%s263 + $0x20] sm:$0xff] %v622
          %631 = vst [vmem:[%s263 + $0x28] sm:$0xff] %v623
          %632 = vst [vmem:[%s263 + $0x30] sm:$0xff] %v624
          %633 = vst [vmem:[%s263 + $0x38] sm:$0xff] %v625
        $region78: #{_lambda_.7} parent=65 // pred_fallthru
          _
        %s634 = smul.u32 4, %s18
        %p635 = scmp.lt.s32.totalorder %s634, 3
        %s636 = scalar_select %p635, %s634, 3
        %s637 = smul.addr %s636, 2
        %s638 = smul.addr %s637, 8
        %s639 = scalar_lea.vmem %s3, %s638
        // Predicated region
        $region79: #{_lambda_.7} parent=65 // pred_check
          %p640 = pneg %p119
        $region80: #{_lambda_.7} parent=65 // pred_check_branch
          %642 = sbr.rel (%p640) target = $region82
        $region81: #{_lambda_.7} parent=65 // pred_region
          %s643 = smul.u32 4, %s18
        $region82: #{_lambda_.7} parent=65 // pred_fallthru
          _
        // Predicated region
        $region83: #{_lambda_.7} parent=65 // pred_check
          %p644 = pneg %p119
        $region84: #{_lambda_.7} parent=65 // pred_check_branch
          %646 = sbr.rel (%p644) target = $region86
        $region85: #{_lambda_.7} parent=65 // pred_region
          %s647 = smul.u32 4, %s18
          %p648 = scmp.lt.s32.totalorder %s647, 3
          %s649 = scalar_select %p648, %s647, 3
          %s650 = smul.addr %s649, 2
          %s651 = smul.addr %s650, 8
          %s652 = scalar_lea.vmem %s3, %s651
        $region86: #{_lambda_.7} parent=65 // pred_fallthru
          _
      $region66: #{_lambda_.7} parent=5 // pred_fallthru
        _
      %p653 = scmp.le.s32.totalorder 2, %s9
      // Predicated region
      $region87: #{_lambda_.7} parent=5 // pred_check
        %p654 = pneg %p653
      $region88: #{_lambda_.7} parent=5 // pred_check_branch
        %656 = sbr.rel (%p654) target = $region90
      $region89: #{_lambda_.7} parent=5 // pred_region
        %s657 = ssub.s32 %s9, 2
      $region90: #{_lambda_.7} parent=5 // pred_fallthru
        _
    $region6: #{_lambda_.7} parent=1 // loop_footer
      %s13 = sadd.s32 1, %s9
    $region7: #{_lambda_.7} parent=1 // loop_footer_branch
      %8 = sbr.rel target = $region3
    $region8: #{_lambda_.7} parent=1 // loop_exit
      _

// kernel: _lambda_.8
$region0: #{_lambda_.8}
  #allocation0 [shape = 'u32[]', space=smem, size = 0x4, offset = 0x4, fixed_abs, tag = 'smem constant byte address 0x4 - core index']
  #allocation1 [shape = 'u32[144,128]{1,0:T(1,128)}', space=vmem, size = 0x12000, scoped, tag = 'internal scratch']
  %s0 = inlined_call_operand.vmem [shape: bf16[32,4096], index: 0, kind: input, shape index: {}]
  %s1 = inlined_call_operand.vmem [shape: bf16[4096,512], index: 1, kind: input, shape index: {}]
  %s2 = inlined_call_operand.vmem [shape: f32[1,512], index: 2, kind: input, shape index: {}]
  %s3 = inlined_call_operand.vmem [shape: f32[32,512], index: 3, kind: output, shape index: {}]
  %s4 = sld [smem:[#allocation0]]
  $region91: #{_lambda_.8} parent=0
    _
  %s6 = ssub.s32 1, %s4
  %s7 = scalar_select 0, %s6, %s4
  $region1: #{_lambda_.8} parent=0
    #allocation2 [shape = 'u8[32768]{0}', space=vmem, size = 0x8000, scoped, tag = 'input window, operand 0']
    loop: start=0, step=1, limit=18
    $region2: #{_lambda_.8} parent=1 // loop_pre_header
      _
    $region3: #{_lambda_.8} parent=1 // loop_header
      %s9 = sphi 0, %s13
      %p10 = scmp.ge.s32.totalorder %s9, 18
      %s16 = sphi 0, %s28
      %s17 = sphi 0, %s24
      %s18 = sphi 0, %s16
      %s19 = sphi 0, %s17
      %s20 = sphi 0, %s18
      %s21 = sphi 0, %s19
      %s33 = sphi 0, %s35
      %s36 = sphi 0, %s33
      %s37 = sphi 0, %s36
      %s53 = sphi 0, %s37
      %s59 = sphi 0, %s61
      %s62 = sphi 0, %s59
      %s63 = sphi 0, %s62
      %s79 = sphi 0, %s63
      %s83 = sphi 0, %s83
      %s85 = sphi 0, %s83
      %s86 = sphi 0, %s85
      %s100 = sphi 0, %s86
      %s106 = sphi 0, %s108
      %s109 = sphi 0, %s106
      %s110 = sphi 0, %s109
      %s126 = sphi 0, %s110
    $region4: #{_lambda_.8} parent=1 // loop_header_branch
      %12 = sbr.rel (%p10) target = $region8
    $region5: #{_lambda_.8} parent=1 // loop_body
      %s14 = ssub.s32 %s9, 1
      %s15 = ssub.s32 %s9, 2
      %s22 = sadd.s32 1, %s17
      %p23 = scmp.ge.s32.totalorder %s22, 16
      %s24 = scalar_select %p23, 0, %s22
      %s25 = sadd.s32 1, %s16
      %s26 = scalar_select %p23, %s25, %s16
      %p27 = scmp.ge.s32.totalorder %s26, 1
      %s28 = scalar_select %p27, 0, %s26
      %s29 = ssub.s32 %s16, %s28
      %s30 = ssub.s32 %s17, %s24
      %s31 = sor.u32 %s29, %s30
      %p32 = scmp.eq.s32.totalorder %s31, 0
      %s34 = sadd.s32 %s33, 1
      %s35 = scalar_select %p32, %s33, %s34
      %p38 = pneg %p32
      %p39 = scmp.eq.s32.totalorder %s9, 15
      %p40 = por %p38, %p39
      %p41 = scmp.ne.s32.totalorder %s33, %s36
      %p42 = scmp.eq.s32.totalorder %s9, 0
      %p43 = por %p41, %p42
      %p44 = scmp.ne.s32.totalorder %s33, %s36
      %p45 = scmp.eq.s32.totalorder %s14, 15
      %p46 = por %p44, %p45
      %p47 = scmp.ne.s32.totalorder %s36, %s37
      %p48 = scmp.eq.s32.totalorder %s14, 0
      %p49 = por %p47, %p48
      %p50 = scmp.ne.s32.totalorder %s36, %s37
      %p51 = scmp.eq.s32.totalorder %s15, 15
      %p52 = por %p50, %p51
      %p54 = scmp.ne.s32.totalorder %s37, %s53
      %p55 = scmp.eq.s32.totalorder %s15, 0
      %p56 = por %p54, %p55
      %s57 = ssub.s32 %s17, %s24
      %p58 = scmp.eq.s32.totalorder %s57, 0
      %s60 = sadd.s32 %s59, 1
      %s61 = scalar_select %p58, %s59, %s60
      %p64 = pneg %p58
      %p65 = scmp.eq.s32.totalorder %s9, 15
      %p66 = por %p64, %p65
      %p67 = scmp.ne.s32.totalorder %s59, %s62
      %p68 = scmp.eq.s32.totalorder %s9, 0
      %p69 = por %p67, %p68
      %p70 = scmp.ne.s32.totalorder %s59, %s62
      %p71 = scmp.eq.s32.totalorder %s14, 15
      %p72 = por %p70, %p71
      %p73 = scmp.ne.s32.totalorder %s62, %s63
      %p74 = scmp.eq.s32.totalorder %s14, 0
      %p75 = por %p73, %p74
      %p76 = scmp.ne.s32.totalorder %s62, %s63
      %p77 = scmp.eq.s32.totalorder %s15, 15
      %p78 = por %p76, %p77
      %p80 = scmp.ne.s32.totalorder %s63, %s79
      %p81 = scmp.eq.s32.totalorder %s15, 0
      %p82 = por %p80, %p81
      %s84 = sadd.s32 %s83, 1
      %p87 = scmp.eq.s32.totalorder %s9, 15
      %p88 = scmp.ne.s32.totalorder %s83, %s85
      %p89 = scmp.eq.s32.totalorder %s9, 0
      %p90 = por %p88, %p89
      %p91 = scmp.ne.s32.totalorder %s83, %s85
      %p92 = scmp.eq.s32.totalorder %s14, 15
      %p93 = por %p91, %p92
      %p94 = scmp.ne.s32.totalorder %s85, %s86
      %p95 = scmp.eq.s32.totalorder %s14, 0
      %p96 = por %p94, %p95
      %p97 = scmp.ne.s32.totalorder %s85, %s86
      %p98 = scmp.eq.s32.totalorder %s15, 15
      %p99 = por %p97, %p98
      %p101 = scmp.ne.s32.totalorder %s86, %s100
      %p102 = scmp.eq.s32.totalorder %s15, 0
      %p103 = por %p101, %p102
      %s104 = ssub.s32 %s16, %s28
      %p105 = scmp.eq.s32.totalorder %s104, 0
      %s107 = sadd.s32 %s106, 1
      %s108 = scalar_select %p105, %s106, %s107
      %p111 = pneg %p105
      %p112 = scmp.eq.s32.totalorder %s9, 15
      %p113 = por %p111, %p112
      %p114 = scmp.ne.s32.totalorder %s106, %s109
      %p115 = scmp.eq.s32.totalorder %s9, 0
      %p116 = por %p114, %p115
      %p117 = scmp.ne.s32.totalorder %s106, %s109
      %p118 = scmp.eq.s32.totalorder %s14, 15
      %p119 = por %p117, %p118
      %p120 = scmp.ne.s32.totalorder %s109, %s110
      %p121 = scmp.eq.s32.totalorder %s14, 0
      %p122 = por %p120, %p121
      %p123 = scmp.ne.s32.totalorder %s109, %s110
      %p124 = scmp.eq.s32.totalorder %s15, 15
      %p125 = por %p123, %p124
      %p127 = scmp.ne.s32.totalorder %s110, %s126
      %p128 = scmp.eq.s32.totalorder %s15, 0
      %p129 = por %p127, %p128
      %p130 = scmp.le.s32.totalorder 1, %s9
      %p131 = scmp.lt.s32.totalorder %s9, 17
      %p132 = pnand %p130, %p131
      %p133 = pneg %p132
      // Predicated region
      $region9: #{_lambda_.8} parent=5 // pred_check
        _
      $region10: #{_lambda_.8} parent=5 // pred_check_branch
        %135 = sbr.rel (%p132) target = $region12
      $region11: #{_lambda_.8} parent=5 // pred_region
        %s136 = ssub.s32 %s9, 1
        // Predicated region
        $region13: #{_lambda_.8} parent=11 // pred_check
          %p137 = pneg %p96
        $region14: #{_lambda_.8} parent=11 // pred_check_branch
          %139 = sbr.rel (%p137) target = $region16
        $region15: #{_lambda_.8} parent=11 // pred_region
          _
        $region16: #{_lambda_.8} parent=11 // pred_fallthru
          _
      $region12: #{_lambda_.8} parent=5 // pred_fallthru
        _
      %p140 = scmp.lt.s32.totalorder %s9, 16
      // Predicated region
      $region17: #{_lambda_.8} parent=5 // pred_check
        %p141 = pneg %p140
      $region18: #{_lambda_.8} parent=5 // pred_check_branch
        %143 = sbr.rel (%p141) target = $region20
      $region19: #{_lambda_.8} parent=5 // pred_region
        // Predicated region
        $region21: #{_lambda_.8} parent=19 // pred_check
          %p144 = pneg %p43
        $region22: #{_lambda_.8} parent=19 // pred_check_branch
          %146 = sbr.rel (%p144) target = $region24
        $region23: #{_lambda_.8} parent=19 // pred_region
          %s147 = sand.u32 %s33, 1
          %s148 = sand.u32 %s33, 1
          %s149 = smul.addr %s148, 32
          %s150 = scalar_lea.vmem [#allocation2], %s149
          %s151 = smul.u32 4, %s16
          %s152 = smul.u32 2, %s17
          %s153 = smul.addr %s151, 32
          %s154 = sadd.s32 %s152, %s153
          %s155 = smul.addr %s154, 4
          %s156 = scalar_lea.vmem %s0, %s155
          // Predicated region
          $region25: #{_lambda_.8} parent=23 // pred_check
            _
          $region26: #{_lambda_.8} parent=23 // pred_check_branch
            %158 = sbr.rel (0) target = $region28
          $region27: #{_lambda_.8} parent=23 // pred_region
            // Predicated region
            $region29: #{_lambda_.8} parent=27 // pred_check
              _
            $region30: #{_lambda_.8} parent=27 // pred_check_branch
              %160 = sbr.rel (0) target = $region32
            $region31: #{_lambda_.8} parent=27 // pred_region
              // Predicated region
              $region44: #{_lambda_.8} parent=31 // pred_check
                _
              $region45: #{_lambda_.8} parent=31 // pred_check_branch
                %181 = sbr.rel (0) target = $region47
              $region46: #{_lambda_.8} parent=31 // pred_region
                loop: start=0, step=1, limit=1
                $region48: #{_lambda_.8} parent=46 // loop_pre_header
                  _
                $region49: #{_lambda_.8} parent=46 // loop_header
                  %s183 = sphi 0, %s187
                  %p184 = scmp.ge.s32.totalorder %s183, 1
                  %s188 = sphi %s156, %s156
                  %s189 = sphi %s150, %s150
                $region50: #{_lambda_.8} parent=46 // loop_header_branch
                  %186 = sbr.rel (%p184) target = $region54
                $region51: #{_lambda_.8} parent=46 // loop_body
                  %v190 = vld [vmem:[%s188] sm:$0xff]
                  %191 = vst [vmem:[%s189] sm:$0xff] %v190
                  %v192 = vld [vmem:[%s188 + $0x80] sm:$0xff]
                  %193 = vst [vmem:[%s189 + $0x8] sm:$0xff] %v192
                  %v194 = vld [vmem:[%s188 + $0x100] sm:$0xff]
                  %195 = vst [vmem:[%s189 + $0x10] sm:$0xff] %v194
                  %v196 = vld [vmem:[%s188 + $0x180] sm:$0xff]
                  %197 = vst [vmem:[%s189 + $0x18] sm:$0xff] %v196
                $region52: #{_lambda_.8} parent=46 // loop_footer
                  %s187 = sadd.s32 1, %s183
                $region53: #{_lambda_.8} parent=46 // loop_footer_branch
                  %182 = sbr.rel target = $region49
                $region54: #{_lambda_.8} parent=46 // loop_exit
                  _
              $region47: #{_lambda_.8} parent=31 // pred_fallthru
                _
              // Predicated region
              $region55: #{_lambda_.8} parent=31 // pred_check
                _
              $region56: #{_lambda_.8} parent=31 // pred_check_branch
                %199 = sbr.rel target = $region58
              $region57: #{_lambda_.8} parent=31 // pred_region
                _
              $region58: #{_lambda_.8} parent=31 // pred_fallthru
                _
            $region32: #{_lambda_.8} parent=27 // pred_fallthru
              _
            // Predicated region
            $region33: #{_lambda_.8} parent=27 // pred_check
              _
            $region34: #{_lambda_.8} parent=27 // pred_check_branch
              %162 = sbr.rel target = $region36
            $region35: #{_lambda_.8} parent=27 // pred_region
              loop: start=0, step=1, limit=1
              $region37: #{_lambda_.8} parent=35 // loop_pre_header
                _
              $region38: #{_lambda_.8} parent=35 // loop_header
                %s165 = sphi 0, %s169
                %p166 = scmp.ge.s32.totalorder %s165, 1
                %s170 = sphi %s156, %s156
                %s171 = sphi %s150, %s150
              $region39: #{_lambda_.8} parent=35 // loop_header_branch
                %168 = sbr.rel (%p166) target = $region43
              $region40: #{_lambda_.8} parent=35 // loop_body
                %v172 = vld [vmem:[%s170] sm:$0xff]
                %173 = vst [vmem:[%s171] sm:$0xff] %v172
                %v174 = vld [vmem:[%s170 + $0x80] sm:$0xff]
                %175 = vst [vmem:[%s171 + $0x8] sm:$0xff] %v174
                %v176 = vld [vmem:[%s170 + $0x100] sm:$0xff]
                %177 = vst [vmem:[%s171 + $0x10] sm:$0xff] %v176
                %v178 = vld [vmem:[%s170 + $0x180] sm:$0xff]
                %179 = vst [vmem:[%s171 + $0x18] sm:$0xff] %v178
              $region41: #{_lambda_.8} parent=35 // loop_footer
                %s169 = sadd.s32 1, %s165
              $region42: #{_lambda_.8} parent=35 // loop_footer_branch
                %164 = sbr.rel target = $region38
              $region43: #{_lambda_.8} parent=35 // loop_exit
                _
            $region36: #{_lambda_.8} parent=27 // pred_fallthru
              _
          $region28: #{_lambda_.8} parent=23 // pred_fallthru
            _
          %200 = vnop
        $region24: #{_lambda_.8} parent=19 // pred_fallthru
          _
        // Predicated region
        $region59: #{_lambda_.8} parent=19 // pred_check
          %p201 = pneg %p69
        $region60: #{_lambda_.8} parent=19 // pred_check_branch
          %203 = sbr.rel (%p201) target = $region62
        $region61: #{_lambda_.8} parent=19 // pred_region
          %s204 = smul.u32 32, %s17
          %p205 = scmp.lt.s32.totalorder %s204, 511
          %s206 = scalar_select %p205, %s204, 511
          %s207 = smul.addr %s206, 4
          %s208 = smul.addr %s207, 4
          %s209 = scalar_lea.vmem %s1, %s208
          %s210 = smul.u32 32, %s17
        $region62: #{_lambda_.8} parent=19 // pred_fallthru
          _
      $region20: #{_lambda_.8} parent=5 // pred_fallthru
        _
      %p211 = scmp.le.s32.totalorder 1, %s9
      %p212 = scmp.lt.s32.totalorder %s9, 17
      %p213 = pnand %p211, %p212
      %p214 = pneg %p213
      // Predicated region
      $region63: #{_lambda_.8} parent=5 // pred_check
        _
      $region64: #{_lambda_.8} parent=5 // pred_check_branch
        %216 = sbr.rel (%p213) target = $region66
      $region65: #{_lambda_.8} parent=5 // pred_region
        %s217 = ssub.s32 %s9, 1
        %s218 = sand.u32 %s36, 1
        %s219 = sand.u32 %s36, 1
        %s220 = smul.addr %s219, 32
        %s221 = scalar_lea.vmem [#allocation2], %s220
        // Predicated region
        $region67: #{_lambda_.8} parent=65 // pred_check
          %p222 = pneg %p49
        $region68: #{_lambda_.8} parent=65 // pred_check_branch
          %224 = sbr.rel (%p222) target = $region70
        $region69: #{_lambda_.8} parent=65 // pred_region
          _
        $region70: #{_lambda_.8} parent=65 // pred_fallthru
          _
        %s225 = sand.u32 %s36, 1
        %s226 = sand.u32 %s36, 1
        %s227 = smul.addr %s226, 32
        %s228 = scalar_lea.vmem [#allocation2], %s227
        %p229 = pneg %p49
        %p230 = pneg %p46
        %s231 = smul.u32 32, %s19
        %p232 = scmp.lt.s32.totalorder %s231, 511
        %s233 = scalar_select %p232, %s231, 511
        %s234 = smul.addr %s233, 4
        %s235 = smul.addr %s234, 4
        %s236 = scalar_lea.vmem %s1, %s235
        %p237 = pneg %p75
        %p238 = pneg %p72
        %p239 = pneg %p96
        %p240 = pneg %p93
        %p241 = pneg %p122
        %p242 = pneg %p119
        %s243 = smul.u32 4, %s18
        %p244 = scmp.lt.s32.totalorder %s243, 3
        %s245 = scalar_select %p244, %s243, 3
        %s246 = smul.addr %s245, 4
        %s247 = smul.addr %s246, 8
        %s248 = scalar_lea.vmem %s3, %s247
        %s249 = smul.u32 4, %s18
        %s250 = smul.u32 2, %s19
        %s251 = smul.u32 32, %s19
        %p252 = scmp.lt.s32.totalorder %s251, 511
        %s253 = scalar_select %p252, %s251, 511
        %s254 = smul.addr %s253, 4
        %s255 = smul.addr %s254, 4
        %s256 = scalar_lea.vmem %s1, %s255
        %s257 = smul.u32 32, %s19
        %s258 = smul.u32 4, %s18
        %p259 = scmp.lt.s32.totalorder %s258, 3
        %s260 = scalar_select %p259, %s258, 3
        %s261 = smul.addr %s260, 4
        %s262 = smul.addr %s261, 8
        %s263 = scalar_lea.vmem %s3, %s262
        %s264 = smul.u32 4, %s18
        %p265 = scmp.eq.s32.totalorder %s19, 0
        // Predicated region
        $region71: #{_lambda_.8} parent=65 // pred_check
          %p266 = pneg %p265
        $region72: #{_lambda_.8} parent=65 // pred_check_branch
          %268 = sbr.rel (%p266) target = $region74
        $region73: #{_lambda_.8} parent=65 // pred_region
          %269 = vst [vmem:[%s263] sm:$0xff] 0.0
          %270 = vst [vmem:[%s263 + $0x8] sm:$0xff] 0.0
          %271 = vst [vmem:[%s263 + $0x10] sm:$0xff] 0.0
          %272 = vst [vmem:[%s263 + $0x18] sm:$0xff] 0.0
          %273 = vst [vmem:[%s263 + $0x20] sm:$0xff] 0.0
          %274 = vst [vmem:[%s263 + $0x28] sm:$0xff] 0.0
          %275 = vst [vmem:[%s263 + $0x30] sm:$0xff] 0.0
          %276 = vst [vmem:[%s263 + $0x38] sm:$0xff] 0.0
          %277 = vst [vmem:[%s263 + $0x40] sm:$0xff] 0.0
          %278 = vst [vmem:[%s263 + $0x48] sm:$0xff] 0.0
          %279 = vst [vmem:[%s263 + $0x50] sm:$0xff] 0.0
          %280 = vst [vmem:[%s263 + $0x58] sm:$0xff] 0.0
          %281 = vst [vmem:[%s263 + $0x60] sm:$0xff] 0.0
          %282 = vst [vmem:[%s263 + $0x68] sm:$0xff] 0.0
          %283 = vst [vmem:[%s263 + $0x70] sm:$0xff] 0.0
          %284 = vst [vmem:[%s263 + $0x78] sm:$0xff] 0.0
        $region74: #{_lambda_.8} parent=65 // pred_fallthru
          _
        %v285 = vld [vmem:[%s263] sm:$0xff]
        %v286 = vld [vmem:[%s263 + $0x8] sm:$0xff]
        %v287 = vld [vmem:[%s263 + $0x10] sm:$0xff]
        %v288 = vld [vmem:[%s263 + $0x18] sm:$0xff]
        %v289 = vld [vmem:[%s263 + $0x20] sm:$0xff]
        %v290 = vld [vmem:[%s263 + $0x28] sm:$0xff]
        %v291 = vld [vmem:[%s263 + $0x30] sm:$0xff]
        %v292 = vld [vmem:[%s263 + $0x38] sm:$0xff]
        %v293 = vld [vmem:[%s263 + $0x40] sm:$0xff]
        %v294 = vld [vmem:[%s263 + $0x48] sm:$0xff]
        %v295 = vld [vmem:[%s263 + $0x50] sm:$0xff]
        %v296 = vld [vmem:[%s263 + $0x58] sm:$0xff]
        %v297 = vld [vmem:[%s263 + $0x60] sm:$0xff]
        %v298 = vld [vmem:[%s263 + $0x68] sm:$0xff]
        %v299 = vld [vmem:[%s263 + $0x70] sm:$0xff]
        %v300 = vld [vmem:[%s263 + $0x78] sm:$0xff]
        %v301 = vld [vmem:[%s221] sm:$0xff]
        %v302 = vld [vmem:[%s221 + $0x8] sm:$0xff]
        %v303 = vld [vmem:[%s221 + $0x10] sm:$0xff]
        %v304 = vld [vmem:[%s221 + $0x18] sm:$0xff]
        %v305 = vld [vmem:[%s256] sm:$0xff]
        %v306 = vld [vmem:[%s256 + $0x8] sm:$0xff]
        %v307 = vld [vmem:[%s256 + $0x10] sm:$0xff]
        %v308 = vld [vmem:[%s256 + $0x18] sm:$0xff]
        %v309 = vld [vmem:[%s256 + $0x20] sm:$0xff]
        %v310 = vld [vmem:[%s256 + $0x28] sm:$0xff]
        %v311 = vld [vmem:[%s256 + $0x30] sm:$0xff]
        %v312 = vld [vmem:[%s256 + $0x38] sm:$0xff]
        %v313 = vld [vmem:[%s256 + $0x40] sm:$0xff]
        %v314 = vld [vmem:[%s256 + $0x48] sm:$0xff]
        %v315 = vld [vmem:[%s256 + $0x50] sm:$0xff]
        %v316 = vld [vmem:[%s256 + $0x58] sm:$0xff]
        %v317 = vld [vmem:[%s256 + $0x60] sm:$0xff]
        %v318 = vld [vmem:[%s256 + $0x68] sm:$0xff]
        %v319 = vld [vmem:[%s256 + $0x70] sm:$0xff]
        %v320 = vld [vmem:[%s256 + $0x78] sm:$0xff]
        %v321 = vld [vmem:[%s256 + $0x80] sm:$0xff]
        %v322 = vld [vmem:[%s256 + $0x88] sm:$0xff]
        %v323 = vld [vmem:[%s256 + $0x90] sm:$0xff]
        %v324 = vld [vmem:[%s256 + $0x98] sm:$0xff]
        %v325 = vld [vmem:[%s256 + $0xa0] sm:$0xff]
        %v326 = vld [vmem:[%s256 + $0xa8] sm:$0xff]
        %v327 = vld [vmem:[%s256 + $0xb0] sm:$0xff]
        %v328 = vld [vmem:[%s256 + $0xb8] sm:$0xff]
        %v329 = vld [vmem:[%s256 + $0xc0] sm:$0xff]
        %v330 = vld [vmem:[%s256 + $0xc8] sm:$0xff]
        %v331 = vld [vmem:[%s256 + $0xd0] sm:$0xff]
        %v332 = vld [vmem:[%s256 + $0xd8] sm:$0xff]
        %v333 = vld [vmem:[%s256 + $0xe0] sm:$0xff]
        %v334 = vld [vmem:[%s256 + $0xe8] sm:$0xff]
        %v335 = vld [vmem:[%s256 + $0xf0] sm:$0xff]
        %v336 = vld [vmem:[%s256 + $0xf8] sm:$0xff]
        %v337 = vld [vmem:[%s256 + $0x100] sm:$0xff]
        %v338 = vld [vmem:[%s256 + $0x108] sm:$0xff]
        %v339 = vld [vmem:[%s256 + $0x110] sm:$0xff]
        %v340 = vld [vmem:[%s256 + $0x118] sm:$0xff]
        %v341 = vld [vmem:[%s256 + $0x120] sm:$0xff]
        %v342 = vld [vmem:[%s256 + $0x128] sm:$0xff]
        %v343 = vld [vmem:[%s256 + $0x130] sm:$0xff]
        %v344 = vld [vmem:[%s256 + $0x138] sm:$0xff]
        %v345 = vld [vmem:[%s256 + $0x140] sm:$0xff]
        %v346 = vld [vmem:[%s256 + $0x148] sm:$0xff]
        %v347 = vld [vmem:[%s256 + $0x150] sm:$0xff]
        %v348 = vld [vmem:[%s256 + $0x158] sm:$0xff]
        %v349 = vld [vmem:[%s256 + $0x160] sm:$0xff]
        %v350 = vld [vmem:[%s256 + $0x168] sm:$0xff]
        %v351 = vld [vmem:[%s256 + $0x170] sm:$0xff]
        %v352 = vld [vmem:[%s256 + $0x178] sm:$0xff]
        %v353 = vld [vmem:[%s256 + $0x180] sm:$0xff]
        %v354 = vld [vmem:[%s256 + $0x188] sm:$0xff]
        %v355 = vld [vmem:[%s256 + $0x190] sm:$0xff]
        %v356 = vld [vmem:[%s256 + $0x198] sm:$0xff]
        %v357 = vld [vmem:[%s256 + $0x1a0] sm:$0xff]
        %v358 = vld [vmem:[%s256 + $0x1a8] sm:$0xff]
        %v359 = vld [vmem:[%s256 + $0x1b0] sm:$0xff]
        %v360 = vld [vmem:[%s256 + $0x1b8] sm:$0xff]
        %v361 = vld [vmem:[%s256 + $0x1c0] sm:$0xff]
        %v362 = vld [vmem:[%s256 + $0x1c8] sm:$0xff]
        %v363 = vld [vmem:[%s256 + $0x1d0] sm:$0xff]
        %v364 = vld [vmem:[%s256 + $0x1d8] sm:$0xff]
        %v365 = vld [vmem:[%s256 + $0x1e0] sm:$0xff]
        %v366 = vld [vmem:[%s256 + $0x1e8] sm:$0xff]
        %v367 = vld [vmem:[%s256 + $0x1f0] sm:$0xff]
        %v368 = vld [vmem:[%s256 + $0x1f8] sm:$0xff]
        %v373 = vunpack.c.l.b16 %v301
        %v374 = vunpack.c.h.b16 %v301
        %v375 = vunpack.c.l.b16 %v302
        %v376 = vunpack.c.h.b16 %v302
        %v377 = vunpack.c.l.b16 %v303
        %v378 = vunpack.c.h.b16 %v303
        %v379 = vunpack.c.l.b16 %v304
        %v380 = vunpack.c.h.b16 %v304
        %v381 = vpack.c.b16 %v375, %v373
        %v382 = vpack.c.b16 %v376, %v374
        %v383 = vpack.c.b16 %v379, %v377
        %v384 = vpack.c.b16 %v380, %v378
        %v453 = vunpack.c.l.b16 %v305
        %v454 = vunpack.c.h.b16 %v305
        %v455 = vunpack.c.l.b16 %v306
        %v456 = vunpack.c.h.b16 %v306
        %v457 = vunpack.c.l.b16 %v307
        %v458 = vunpack.c.h.b16 %v307
        %v459 = vunpack.c.l.b16 %v308
        %v460 = vunpack.c.h.b16 %v308
        %v461 = vunpack.c.l.b16 %v309
        %v462 = vunpack.c.h.b16 %v309
        %v463 = vunpack.c.l.b16 %v310
        %v464 = vunpack.c.h.b16 %v310
        %v465 = vunpack.c.l.b16 %v311
        %v466 = vunpack.c.h.b16 %v311
        %v467 = vunpack.c.l.b16 %v312
        %v468 = vunpack.c.h.b16 %v312
        %v469 = vunpack.c.l.b16 %v313
        %v470 = vunpack.c.h.b16 %v313
        %v471 = vunpack.c.l.b16 %v314
        %v472 = vunpack.c.h.b16 %v314
        %v473 = vunpack.c.l.b16 %v315
        %v474 = vunpack.c.h.b16 %v315
        %v475 = vunpack.c.l.b16 %v316
        %v476 = vunpack.c.h.b16 %v316
        %v477 = vunpack.c.l.b16 %v317
        %v478 = vunpack.c.h.b16 %v317
        %v479 = vunpack.c.l.b16 %v318
        %v480 = vunpack.c.h.b16 %v318
        %v481 = vunpack.c.l.b16 %v319
        %v482 = vunpack.c.h.b16 %v319
        %v483 = vunpack.c.l.b16 %v320
        %v484 = vunpack.c.h.b16 %v320
        %v485 = vunpack.c.l.b16 %v321
        %v486 = vunpack.c.h.b16 %v321
        %v487 = vunpack.c.l.b16 %v322
        %v488 = vunpack.c.h.b16 %v322
        %v489 = vunpack.c.l.b16 %v323
        %v490 = vunpack.c.h.b16 %v323
        %v491 = vunpack.c.l.b16 %v324
        %v492 = vunpack.c.h.b16 %v324
        %v493 = vunpack.c.l.b16 %v325
        %v494 = vunpack.c.h.b16 %v325
        %v495 = vunpack.c.l.b16 %v326
        %v496 = vunpack.c.h.b16 %v326
        %v497 = vunpack.c.l.b16 %v327
        %v498 = vunpack.c.h.b16 %v327
        %v499 = vunpack.c.l.b16 %v328
        %v500 = vunpack.c.h.b16 %v328
        %v501 = vunpack.c.l.b16 %v329
        %v502 = vunpack.c.h.b16 %v329
        %v503 = vunpack.c.l.b16 %v330
        %v504 = vunpack.c.h.b16 %v330
        %v505 = vunpack.c.l.b16 %v331
        %v506 = vunpack.c.h.b16 %v331
        %v507 = vunpack.c.l.b16 %v332
        %v508 = vunpack.c.h.b16 %v332
        %v509 = vunpack.c.l.b16 %v333
        %v510 = vunpack.c.h.b16 %v333
        %v511 = vunpack.c.l.b16 %v334
        %v512 = vunpack.c.h.b16 %v334
        %v513 = vunpack.c.l.b16 %v335
        %v514 = vunpack.c.h.b16 %v335
        %v515 = vunpack.c.l.b16 %v336
        %v516 = vunpack.c.h.b16 %v336
        %v517 = vunpack.c.l.b16 %v337
        %v518 = vunpack.c.h.b16 %v337
        %v519 = vunpack.c.l.b16 %v338
        %v520 = vunpack.c.h.b16 %v338
        %v521 = vunpack.c.l.b16 %v339
        %v522 = vunpack.c.h.b16 %v339
        %v523 = vunpack.c.l.b16 %v340
        %v524 = vunpack.c.h.b16 %v340
        %v525 = vunpack.c.l.b16 %v341
        %v526 = vunpack.c.h.b16 %v341
        %v527 = vunpack.c.l.b16 %v342
        %v528 = vunpack.c.h.b16 %v342
        %v529 = vunpack.c.l.b16 %v343
        %v530 = vunpack.c.h.b16 %v343
        %v531 = vunpack.c.l.b16 %v344
        %v532 = vunpack.c.h.b16 %v344
        %v533 = vunpack.c.l.b16 %v345
        %v534 = vunpack.c.h.b16 %v345
        %v535 = vunpack.c.l.b16 %v346
        %v536 = vunpack.c.h.b16 %v346
        %v537 = vunpack.c.l.b16 %v347
        %v538 = vunpack.c.h.b16 %v347
        %v539 = vunpack.c.l.b16 %v348
        %v540 = vunpack.c.h.b16 %v348
        %v541 = vunpack.c.l.b16 %v349
        %v542 = vunpack.c.h.b16 %v349
        %v543 = vunpack.c.l.b16 %v350
        %v544 = vunpack.c.h.b16 %v350
        %v545 = vunpack.c.l.b16 %v351
        %v546 = vunpack.c.h.b16 %v351
        %v547 = vunpack.c.l.b16 %v352
        %v548 = vunpack.c.h.b16 %v352
        %v549 = vunpack.c.l.b16 %v353
        %v550 = vunpack.c.h.b16 %v353
        %v551 = vunpack.c.l.b16 %v354
        %v552 = vunpack.c.h.b16 %v354
        %v553 = vunpack.c.l.b16 %v355
        %v554 = vunpack.c.h.b16 %v355
        %v555 = vunpack.c.l.b16 %v356
        %v556 = vunpack.c.h.b16 %v356
        %v557 = vunpack.c.l.b16 %v357
        %v558 = vunpack.c.h.b16 %v357
        %v559 = vunpack.c.l.b16 %v358
        %v560 = vunpack.c.h.b16 %v358
        %v561 = vunpack.c.l.b16 %v359
        %v562 = vunpack.c.h.b16 %v359
        %v563 = vunpack.c.l.b16 %v360
        %v564 = vunpack.c.h.b16 %v360
        %v565 = vunpack.c.l.b16 %v361
        %v566 = vunpack.c.h.b16 %v361
        %v567 = vunpack.c.l.b16 %v362
        %v568 = vunpack.c.h.b16 %v362
        %v569 = vunpack.c.l.b16 %v363
        %v570 = vunpack.c.h.b16 %v363
        %v571 = vunpack.c.l.b16 %v364
        %v572 = vunpack.c.h.b16 %v364
        %v573 = vunpack.c.l.b16 %v365
        %v574 = vunpack.c.h.b16 %v365
        %v575 = vunpack.c.l.b16 %v366
        %v576 = vunpack.c.h.b16 %v366
        %v577 = vunpack.c.l.b16 %v367
        %v578 = vunpack.c.h.b16 %v367
        %v579 = vunpack.c.l.b16 %v368
        %v580 = vunpack.c.h.b16 %v368
        %v581 = vpack.c.b16 %v457, %v453
        %v582 = vpack.c.b16 %v458, %v454
        %v583 = vpack.c.b16 %v459, %v455
        %v584 = vpack.c.b16 %v460, %v456
        %v585 = vpack.c.b16 %v465, %v461
        %v586 = vpack.c.b16 %v466, %v462
        %v587 = vpack.c.b16 %v467, %v463
        %v588 = vpack.c.b16 %v468, %v464
        %v589 = vpack.c.b16 %v473, %v469
        %v590 = vpack.c.b16 %v474, %v470
        %v591 = vpack.c.b16 %v475, %v471
        %v592 = vpack.c.b16 %v476, %v472
        %v593 = vpack.c.b16 %v481, %v477
        %v594 = vpack.c.b16 %v482, %v478
        %v595 = vpack.c.b16 %v483, %v479
        %v596 = vpack.c.b16 %v484, %v480
        %v597 = vpack.c.b16 %v489, %v485
        %v598 = vpack.c.b16 %v490, %v486
        %v599 = vpack.c.b16 %v491, %v487
        %v600 = vpack.c.b16 %v492, %v488
        %v601 = vpack.c.b16 %v497, %v493
        %v602 = vpack.c.b16 %v498, %v494
        %v603 = vpack.c.b16 %v499, %v495
        %v604 = vpack.c.b16 %v500, %v496
        %v605 = vpack.c.b16 %v505, %v501
        %v606 = vpack.c.b16 %v506, %v502
        %v607 = vpack.c.b16 %v507, %v503
        %v608 = vpack.c.b16 %v508, %v504
        %v609 = vpack.c.b16 %v513, %v509
        %v610 = vpack.c.b16 %v514, %v510
        %v611 = vpack.c.b16 %v515, %v511
        %v612 = vpack.c.b16 %v516, %v512
        %v613 = vpack.c.b16 %v521, %v517
        %v614 = vpack.c.b16 %v522, %v518
        %v615 = vpack.c.b16 %v523, %v519
        %v616 = vpack.c.b16 %v524, %v520
        %v617 = vpack.c.b16 %v529, %v525
        %v618 = vpack.c.b16 %v530, %v526
        %v619 = vpack.c.b16 %v531, %v527
        %v620 = vpack.c.b16 %v532, %v528
        %v621 = vpack.c.b16 %v537, %v533
        %v622 = vpack.c.b16 %v538, %v534
        %v623 = vpack.c.b16 %v539, %v535
        %v624 = vpack.c.b16 %v540, %v536
        %v625 = vpack.c.b16 %v545, %v541
        %v626 = vpack.c.b16 %v546, %v542
        %v627 = vpack.c.b16 %v547, %v543
        %v628 = vpack.c.b16 %v548, %v544
        %v629 = vpack.c.b16 %v553, %v549
        %v630 = vpack.c.b16 %v554, %v550
        %v631 = vpack.c.b16 %v555, %v551
        %v632 = vpack.c.b16 %v556, %v552
        %v633 = vpack.c.b16 %v561, %v557
        %v634 = vpack.c.b16 %v562, %v558
        %v635 = vpack.c.b16 %v563, %v559
        %v636 = vpack.c.b16 %v564, %v560
        %v637 = vpack.c.b16 %v569, %v565
        %v638 = vpack.c.b16 %v570, %v566
        %v639 = vpack.c.b16 %v571, %v567
        %v640 = vpack.c.b16 %v572, %v568
        %v641 = vpack.c.b16 %v577, %v573
        %v642 = vpack.c.b16 %v578, %v574
        %v643 = vpack.c.b16 %v579, %v575
        %v644 = vpack.c.b16 %v580, %v576
        %709 = vmatprep.subr.bf16.mxu0 %v582
        %710 = vmatpush1.bf16.msra.mxu0 %v581
        %711 = vmatprep.subr.bf16.mxu0 %v586
        %712 = vmatpush1.bf16.msra.mxu0 %v585
        %713 = vmatprep.subr.bf16.mxu0 %v590
        %714 = vmatpush1.bf16.msra.mxu0 %v589
        %715 = vmatprep.subr.bf16.mxu0 %v594
        %716 = vmatpush1.bf16.msra.mxu0 %v593
        %717 = vmatprep.subr.bf16.mxu0 %v598
        %718 = vmatpush1.bf16.msra.mxu0 %v597
        %719 = vmatprep.subr.bf16.mxu0 %v602
        %720 = vmatpush1.bf16.msra.mxu0 %v601
        %721 = vmatprep.subr.bf16.mxu0 %v606
        %722 = vmatpush1.bf16.msra.mxu0 %v605
        %723 = vmatprep.subr.bf16.mxu0 %v610
        %724 = vmatpush1.bf16.msra.mxu0 %v609
        %725 = vmatprep.subr.bf16.mxu0 %v614
        %726 = vmatpush1.bf16.msra.mxu0 %v613
        %727 = vmatprep.subr.bf16.mxu0 %v618
        %728 = vmatpush1.bf16.msra.mxu0 %v617
        %729 = vmatprep.subr.bf16.mxu0 %v622
        %730 = vmatpush1.bf16.msra.mxu0 %v621
        %731 = vmatprep.subr.bf16.mxu0 %v626
        %732 = vmatpush1.bf16.msra.mxu0 %v625
        %733 = vmatprep.subr.bf16.mxu0 %v630
        %734 = vmatpush1.bf16.msra.mxu0 %v629
        %735 = vmatprep.subr.bf16.mxu0 %v634
        %736 = vmatpush1.bf16.msra.mxu0 %v633
        %737 = vmatprep.subr.bf16.mxu0 %v638
        %738 = vmatpush1.bf16.msra.mxu0 %v637
        %739 = vmatprep.subr.bf16.mxu0 %v642
        %740 = vmatpush1.bf16.msra.mxu0 %v641
        %741 = vmatprep.mubr.bf16.mxu0 %v382
        %742 = vmatmul.mubr.bf16.gmra.mrb[0].mxu0 %v381
        %v743 = vpop.f32.mrb[0].mxu0
        %v744 = vadd.f32 0.0, %v743
        %v745 = vpop.f32.mrb[0].mxu0
        %v746 = vadd.f32 0.0, %v745
        %v747 = vpop.f32.mrb[0].mxu0
        %v748 = vadd.f32 0.0, %v747
        %v749 = vpop.f32.mrb[0].mxu0
        %v750 = vadd.f32 0.0, %v749
        %751 = vmatprep.mubr.bf16.mxu0 %v384
        %752 = vmatmul.mubr.bf16.gmra.mrb[0].mxu0 %v383
        %v753 = vpop.f32.mrb[0].mxu0
        %v754 = vadd.f32 0.0, %v753
        %v755 = vpop.f32.mrb[0].mxu0
        %v756 = vadd.f32 0.0, %v755
        %v757 = vpop.f32.mrb[0].mxu0
        %v758 = vadd.f32 0.0, %v757
        %v759 = vpop.f32.mrb[0].mxu0
        %v760 = vadd.f32 0.0, %v759
        %761 = vdwg.mxu0
        %762 = vmatprep.subr.bf16.mxu0 %v584
        %763 = vmatpush1.bf16.msra.mxu0 %v583
        %764 = vmatprep.subr.bf16.mxu0 %v588
        %765 = vmatpush1.bf16.msra.mxu0 %v587
        %766 = vmatprep.subr.bf16.mxu0 %v592
        %767 = vmatpush1.bf16.msra.mxu0 %v591
        %768 = vmatprep.subr.bf16.mxu0 %v596
        %769 = vmatpush1.bf16.msra.mxu0 %v595
        %770 = vmatprep.subr.bf16.mxu0 %v600
        %771 = vmatpush1.bf16.msra.mxu0 %v599
        %772 = vmatprep.subr.bf16.mxu0 %v604
        %773 = vmatpush1.bf16.msra.mxu0 %v603
        %774 = vmatprep.subr.bf16.mxu0 %v608
        %775 = vmatpush1.bf16.msra.mxu0 %v607
        %776 = vmatprep.subr.bf16.mxu0 %v612
        %777 = vmatpush1.bf16.msra.mxu0 %v611
        %778 = vmatprep.subr.bf16.mxu0 %v616
        %779 = vmatpush1.bf16.msra.mxu0 %v615
        %780 = vmatprep.subr.bf16.mxu0 %v620
        %781 = vmatpush1.bf16.msra.mxu0 %v619
        %782 = vmatprep.subr.bf16.mxu0 %v624
        %783 = vmatpush1.bf16.msra.mxu0 %v623
        %784 = vmatprep.subr.bf16.mxu0 %v628
        %785 = vmatpush1.bf16.msra.mxu0 %v627
        %786 = vmatprep.subr.bf16.mxu0 %v632
        %787 = vmatpush1.bf16.msra.mxu0 %v631
        %788 = vmatprep.subr.bf16.mxu0 %v636
        %789 = vmatpush1.bf16.msra.mxu0 %v635
        %790 = vmatprep.subr.bf16.mxu0 %v640
        %791 = vmatpush1.bf16.msra.mxu0 %v639
        %792 = vmatprep.subr.bf16.mxu0 %v644
        %793 = vmatpush1.bf16.msra.mxu0 %v643
        %794 = vmatprep.mubr.bf16.mxu0 %v382
        %795 = vmatmul.mubr.bf16.gmra.mrb[0].mxu0 %v381
        %v796 = vpop.f32.mrb[0].mxu0
        %v797 = vadd.f32 0.0, %v796
        %v798 = vpop.f32.mrb[0].mxu0
        %v799 = vadd.f32 0.0, %v798
        %v800 = vpop.f32.mrb[0].mxu0
        %v801 = vadd.f32 0.0, %v800
        %v802 = vpop.f32.mrb[0].mxu0
        %v803 = vadd.f32 0.0, %v802
        %804 = vmatprep.mubr.bf16.mxu0 %v384
        %805 = vmatmul.mubr.bf16.gmra.mrb[0].mxu0 %v383
        %v806 = vpop.f32.mrb[0].mxu0
        %v807 = vadd.f32 0.0, %v806
        %v808 = vpop.f32.mrb[0].mxu0
        %v809 = vadd.f32 0.0, %v808
        %v810 = vpop.f32.mrb[0].mxu0
        %v811 = vadd.f32 0.0, %v810
        %v812 = vpop.f32.mrb[0].mxu0
        %v813 = vadd.f32 0.0, %v812
        %814 = vdwg.mxu0
        %v815 = vadd.f32 %v285, %v744
        %v816 = vadd.f32 %v286, %v746
        %v817 = vadd.f32 %v287, %v797
        %v818 = vadd.f32 %v288, %v799
        %v819 = vadd.f32 %v289, %v748
        %v820 = vadd.f32 %v290, %v750
        %v821 = vadd.f32 %v291, %v801
        %v822 = vadd.f32 %v292, %v803
        %v823 = vadd.f32 %v293, %v754
        %v824 = vadd.f32 %v294, %v756
        %v825 = vadd.f32 %v295, %v807
        %v826 = vadd.f32 %v296, %v809
        %v827 = vadd.f32 %v297, %v758
        %v828 = vadd.f32 %v298, %v760
        %v829 = vadd.f32 %v299, %v811
        %v830 = vadd.f32 %v300, %v813
        %831 = vst [vmem:[%s263] sm:$0xff] %v815
        %832 = vst [vmem:[%s263 + $0x8] sm:$0xff] %v816
        %833 = vst [vmem:[%s263 + $0x10] sm:$0xff] %v817
        %834 = vst [vmem:[%s263 + $0x18] sm:$0xff] %v818
        %835 = vst [vmem:[%s263 + $0x20] sm:$0xff] %v819
        %836 = vst [vmem:[%s263 + $0x28] sm:$0xff] %v820
        %837 = vst [vmem:[%s263 + $0x30] sm:$0xff] %v821
        %838 = vst [vmem:[%s263 + $0x38] sm:$0xff] %v822
        %839 = vst [vmem:[%s263 + $0x40] sm:$0xff] %v823
        %840 = vst [vmem:[%s263 + $0x48] sm:$0xff] %v824
        %841 = vst [vmem:[%s263 + $0x50] sm:$0xff] %v825
        %842 = vst [vmem:[%s263 + $0x58] sm:$0xff] %v826
        %843 = vst [vmem:[%s263 + $0x60] sm:$0xff] %v827
        %844 = vst [vmem:[%s263 + $0x68] sm:$0xff] %v828
        %845 = vst [vmem:[%s263 + $0x70] sm:$0xff] %v829
        %846 = vst [vmem:[%s263 + $0x78] sm:$0xff] %v830
        %p847 = scmp.eq.s32.totalorder %s19, 15
        // Predicated region
        $region75: #{_lambda_.8} parent=65 // pred_check
          %p848 = pneg %p847
        $region76: #{_lambda_.8} parent=65 // pred_check_branch
          %850 = sbr.rel (%p848) target = $region78
        $region77: #{_lambda_.8} parent=65 // pred_region
          %v851 = vld [vmem:[%s263] sm:$0xff]
          %v852 = vld [vmem:[%s263 + $0x8] sm:$0xff]
          %v853 = vld [vmem:[%s263 + $0x10] sm:$0xff]
          %v854 = vld [vmem:[%s263 + $0x18] sm:$0xff]
          %v855 = vld [vmem:[%s263 + $0x20] sm:$0xff]
          %v856 = vld [vmem:[%s263 + $0x28] sm:$0xff]
          %v857 = vld [vmem:[%s263 + $0x30] sm:$0xff]
          %v858 = vld [vmem:[%s263 + $0x38] sm:$0xff]
          %v859 = vld [vmem:[%s263 + $0x40] sm:$0xff]
          %v860 = vld [vmem:[%s263 + $0x48] sm:$0xff]
          %v861 = vld [vmem:[%s263 + $0x50] sm:$0xff]
          %v862 = vld [vmem:[%s263 + $0x58] sm:$0xff]
          %v863 = vld [vmem:[%s263 + $0x60] sm:$0xff]
          %v864 = vld [vmem:[%s263 + $0x68] sm:$0xff]
          %v865 = vld [vmem:[%s263 + $0x70] sm:$0xff]
          %v866 = vld [vmem:[%s263 + $0x78] sm:$0xff]
          %v867 = vld [vmem:[%s2] sm:$0xf]
          %v869 = vlaneseq
          %v870 = vshrl.u32 %v869, 7
          %v871 = vsub.s32 0, %v870
          %v872 = vrot.slane %v867, %v871
          %v873 = vlaneseq
          %v874 = vshrl.u32 %v873, 7
          %v875 = vsub.s32 1, %v874
          %v876 = vrot.slane %v867, %v875
          %v877 = vlaneseq
          %v878 = vshrl.u32 %v877, 7
          %v879 = vsub.s32 2, %v878
          %v880 = vrot.slane %v867, %v879
          %v881 = vlaneseq
          %v882 = vshrl.u32 %v881, 7
          %v883 = vsub.s32 3, %v882
          %v884 = vrot.slane %v867, %v883
          %v889 = vadd.f32 %v851, %v872
          %v890 = vadd.f32 %v852, %v876
          %v891 = vadd.f32 %v853, %v880
          %v892 = vadd.f32 %v854, %v884
          %v893 = vadd.f32 %v855, %v872
          %v894 = vadd.f32 %v856, %v876
          %v895 = vadd.f32 %v857, %v880
          %v896 = vadd.f32 %v858, %v884
          %v897 = vadd.f32 %v859, %v872
          %v898 = vadd.f32 %v860, %v876
          %v899 = vadd.f32 %v861, %v880
          %v900 = vadd.f32 %v862, %v884
          %v901 = vadd.f32 %v863, %v872
          %v902 = vadd.f32 %v864, %v876
          %v903 = vadd.f32 %v865, %v880
          %v904 = vadd.f32 %v866, %v884
          %vm905 = vcmp.ge.f32.partialorder %v889, 0.0
          %vm906 = vcmp.ge.f32.partialorder %v890, 0.0
          %vm907 = vcmp.ge.f32.partialorder %v891, 0.0
          %vm908 = vcmp.ge.f32.partialorder %v892, 0.0
          %vm909 = vcmp.ge.f32.partialorder %v893, 0.0
          %vm910 = vcmp.ge.f32.partialorder %v894, 0.0
          %vm911 = vcmp.ge.f32.partialorder %v895, 0.0
          %vm912 = vcmp.ge.f32.partialorder %v896, 0.0
          %vm913 = vcmp.ge.f32.partialorder %v897, 0.0
          %vm914 = vcmp.ge.f32.partialorder %v898, 0.0
          %vm915 = vcmp.ge.f32.partialorder %v899, 0.0
          %vm916 = vcmp.ge.f32.partialorder %v900, 0.0
          %vm917 = vcmp.ge.f32.partialorder %v901, 0.0
          %vm918 = vcmp.ge.f32.partialorder %v902, 0.0
          %vm919 = vcmp.ge.f32.partialorder %v903, 0.0
          %vm920 = vcmp.ge.f32.partialorder %v904, 0.0
          %v921 = vmul.f32 %v889, 0.2
          %v922 = vmul.f32 %v890, 0.2
          %v923 = vmul.f32 %v891, 0.2
          %v924 = vmul.f32 %v892, 0.2
          %v925 = vmul.f32 %v893, 0.2
          %v926 = vmul.f32 %v894, 0.2
          %v927 = vmul.f32 %v895, 0.2
          %v928 = vmul.f32 %v896, 0.2
          %v929 = vmul.f32 %v897, 0.2
          %v930 = vmul.f32 %v898, 0.2
          %v931 = vmul.f32 %v899, 0.2
          %v932 = vmul.f32 %v900, 0.2
          %v933 = vmul.f32 %v901, 0.2
          %v934 = vmul.f32 %v902, 0.2
          %v935 = vmul.f32 %v903, 0.2
          %v936 = vmul.f32 %v904, 0.2
          %v937 = vsel %vm905, %v889, %v921
          %v938 = vsel %vm906, %v890, %v922
          %v939 = vsel %vm907, %v891, %v923
          %v940 = vsel %vm908, %v892, %v924
          %v941 = vsel %vm909, %v893, %v925
          %v942 = vsel %vm910, %v894, %v926
          %v943 = vsel %vm911, %v895, %v927
          %v944 = vsel %vm912, %v896, %v928
          %v945 = vsel %vm913, %v897, %v929
          %v946 = vsel %vm914, %v898, %v930
          %v947 = vsel %vm915, %v899, %v931
          %v948 = vsel %vm916, %v900, %v932
          %v949 = vsel %vm917, %v901, %v933
          %v950 = vsel %vm918, %v902, %v934
          %v951 = vsel %vm919, %v903, %v935
          %v952 = vsel %vm920, %v904, %v936
          %953 = vst [vmem:[%s263] sm:$0xff] %v937
          %954 = vst [vmem:[%s263 + $0x8] sm:$0xff] %v938
          %955 = vst [vmem:[%s263 + $0x10] sm:$0xff] %v939
          %956 = vst [vmem:[%s263 + $0x18] sm:$0xff] %v940
          %957 = vst [vmem:[%s263 + $0x20] sm:$0xff] %v941
          %958 = vst [vmem:[%s263 + $0x28] sm:$0xff] %v942
          %959 = vst [vmem:[%s263 + $0x30] sm:$0xff] %v943
          %960 = vst [vmem:[%s263 + $0x38] sm:$0xff] %v944
          %961 = vst [vmem:[%s263 + $0x40] sm:$0xff] %v945
          %962 = vst [vmem:[%s263 + $0x48] sm:$0xff] %v946
          %963 = vst [vmem:[%s263 + $0x50] sm:$0xff] %v947
          %964 = vst [vmem:[%s263 + $0x58] sm:$0xff] %v948
          %965 = vst [vmem:[%s263 + $0x60] sm:$0xff] %v949
          %966 = vst [vmem:[%s263 + $0x68] sm:$0xff] %v950
          %967 = vst [vmem:[%s263 + $0x70] sm:$0xff] %v951
          %968 = vst [vmem:[%s263 + $0x78] sm:$0xff] %v952
        $region78: #{_lambda_.8} parent=65 // pred_fallthru
          _
        %s969 = smul.u32 4, %s18
        %p970 = scmp.lt.s32.totalorder %s969, 3
        %s971 = scalar_select %p970, %s969, 3
        %s972 = smul.addr %s971, 4
        %s973 = smul.addr %s972, 8
        %s974 = scalar_lea.vmem %s3, %s973
        // Predicated region
        $region79: #{_lambda_.8} parent=65 // pred_check
          %p975 = pneg %p119
        $region80: #{_lambda_.8} parent=65 // pred_check_branch
          %977 = sbr.rel (%p975) target = $region82
        $region81: #{_lambda_.8} parent=65 // pred_region
          %s978 = smul.u32 4, %s18
        $region82: #{_lambda_.8} parent=65 // pred_fallthru
          _
        // Predicated region
        $region83: #{_lambda_.8} parent=65 // pred_check
          %p979 = pneg %p119
        $region84: #{_lambda_.8} parent=65 // pred_check_branch
          %981 = sbr.rel (%p979) target = $region86
        $region85: #{_lambda_.8} parent=65 // pred_region
          %s982 = smul.u32 4, %s18
          %p983 = scmp.lt.s32.totalorder %s982, 3
          %s984 = scalar_select %p983, %s982, 3
          %s985 = smul.addr %s984, 4
          %s986 = smul.addr %s985, 8
          %s987 = scalar_lea.vmem %s3, %s986
        $region86: #{_lambda_.8} parent=65 // pred_fallthru
          _
      $region66: #{_lambda_.8} parent=5 // pred_fallthru
        _
      %p988 = scmp.le.s32.totalorder 2, %s9
      // Predicated region
      $region87: #{_lambda_.8} parent=5 // pred_check
        %p989 = pneg %p988
      $region88: #{_lambda_.8} parent=5 // pred_check_branch
        %991 = sbr.rel (%p989) target = $region90
      $region89: #{_lambda_.8} parent=5 // pred_region
        %s992 = ssub.s32 %s9, 2
      $region90: #{_lambda_.8} parent=5 // pred_fallthru
        _
    $region6: #{_lambda_.8} parent=1 // loop_footer
      %s13 = sadd.s32 1, %s9
    $region7: #{_lambda_.8} parent=1 // loop_footer_branch
      %8 = sbr.rel target = $region3
    $region8: #{_lambda_.8} parent=1 // loop_exit
      _

// kernel: _lambda_.9
$region0: #{_lambda_.9}
  #allocation0 [shape = 'u32[]', space=smem, size = 0x4, offset = 0x4, fixed_abs, tag = 'smem constant byte address 0x4 - core index']
  #allocation1 [shape = 'u32[144,128]{1,0:T(1,128)}', space=vmem, size = 0x12000, scoped, tag = 'internal scratch']
  %s0 = inlined_call_operand.vmem [shape: bf16[16,8192], index: 0, kind: input, shape index: {}]
  %s1 = inlined_call_operand.vmem [shape: bf16[8192,128], index: 1, kind: input, shape index: {}]
  %s2 = inlined_call_operand.vmem [shape: f32[1,128], index: 2, kind: input, shape index: {}]
  %s3 = inlined_call_operand.vmem [shape: f32[16,128], index: 3, kind: output, shape index: {}]
  %s4 = sld [smem:[#allocation0]]
  $region91: #{_lambda_.9} parent=0
    _
  %s6 = ssub.s32 1, %s4
  %s7 = scalar_select 0, %s6, %s4
  $region1: #{_lambda_.9} parent=0
    #allocation2 [shape = 'u8[16384]{0}', space=vmem, size = 0x4000, scoped, tag = 'input window, operand 0']
    loop: start=0, step=1, limit=34
    $region2: #{_lambda_.9} parent=1 // loop_pre_header
      _
    $region3: #{_lambda_.9} parent=1 // loop_header
      %s9 = sphi 0, %s13
      %p10 = scmp.ge.s32.totalorder %s9, 34
      %s16 = sphi 0, %s28
      %s17 = sphi 0, %s24
      %s18 = sphi 0, %s16
      %s19 = sphi 0, %s17
      %s20 = sphi 0, %s18
      %s21 = sphi 0, %s19
      %s33 = sphi 0, %s35
      %s36 = sphi 0, %s33
      %s37 = sphi 0, %s36
      %s53 = sphi 0, %s37
      %s59 = sphi 0, %s61
      %s62 = sphi 0, %s59
      %s63 = sphi 0, %s62
      %s79 = sphi 0, %s63
      %s83 = sphi 0, %s83
      %s85 = sphi 0, %s83
      %s86 = sphi 0, %s85
      %s100 = sphi 0, %s86
      %s106 = sphi 0, %s108
      %s109 = sphi 0, %s106
      %s110 = sphi 0, %s109
      %s126 = sphi 0, %s110
    $region4: #{_lambda_.9} parent=1 // loop_header_branch
      %12 = sbr.rel (%p10) target = $region8
    $region5: #{_lambda_.9} parent=1 // loop_body
      %s14 = ssub.s32 %s9, 1
      %s15 = ssub.s32 %s9, 2
      %s22 = sadd.s32 1, %s17
      %p23 = scmp.ge.s32.totalorder %s22, 32
      %s24 = scalar_select %p23, 0, %s22
      %s25 = sadd.s32 1, %s16
      %s26 = scalar_select %p23, %s25, %s16
      %p27 = scmp.ge.s32.totalorder %s26, 1
      %s28 = scalar_select %p27, 0, %s26
      %s29 = ssub.s32 %s16, %s28
      %s30 = ssub.s32 %s17, %s24
      %s31 = sor.u32 %s29, %s30
      %p32 = scmp.eq.s32.totalorder %s31, 0
      %s34 = sadd.s32 %s33, 1
      %s35 = scalar_select %p32, %s33, %s34
      %p38 = pneg %p32
      %p39 = scmp.eq.s32.totalorder %s9, 31
      %p40 = por %p38, %p39
      %p41 = scmp.ne.s32.totalorder %s33, %s36
      %p42 = scmp.eq.s32.totalorder %s9, 0
      %p43 = por %p41, %p42
      %p44 = scmp.ne.s32.totalorder %s33, %s36
      %p45 = scmp.eq.s32.totalorder %s14, 31
      %p46 = por %p44, %p45
      %p47 = scmp.ne.s32.totalorder %s36, %s37
      %p48 = scmp.eq.s32.totalorder %s14, 0
      %p49 = por %p47, %p48
      %p50 = scmp.ne.s32.totalorder %s36, %s37
      %p51 = scmp.eq.s32.totalorder %s15, 31
      %p52 = por %p50, %p51
      %p54 = scmp.ne.s32.totalorder %s37, %s53
      %p55 = scmp.eq.s32.totalorder %s15, 0
      %p56 = por %p54, %p55
      %s57 = ssub.s32 %s17, %s24
      %p58 = scmp.eq.s32.totalorder %s57, 0
      %s60 = sadd.s32 %s59, 1
      %s61 = scalar_select %p58, %s59, %s60
      %p64 = pneg %p58
      %p65 = scmp.eq.s32.totalorder %s9, 31
      %p66 = por %p64, %p65
      %p67 = scmp.ne.s32.totalorder %s59, %s62
      %p68 = scmp.eq.s32.totalorder %s9, 0
      %p69 = por %p67, %p68
      %p70 = scmp.ne.s32.totalorder %s59, %s62
      %p71 = scmp.eq.s32.totalorder %s14, 31
      %p72 = por %p70, %p71
      %p73 = scmp.ne.s32.totalorder %s62, %s63
      %p74 = scmp.eq.s32.totalorder %s14, 0
      %p75 = por %p73, %p74
      %p76 = scmp.ne.s32.totalorder %s62, %s63
      %p77 = scmp.eq.s32.totalorder %s15, 31
      %p78 = por %p76, %p77
      %p80 = scmp.ne.s32.totalorder %s63, %s79
      %p81 = scmp.eq.s32.totalorder %s15, 0
      %p82 = por %p80, %p81
      %s84 = sadd.s32 %s83, 1
      %p87 = scmp.eq.s32.totalorder %s9, 31
      %p88 = scmp.ne.s32.totalorder %s83, %s85
      %p89 = scmp.eq.s32.totalorder %s9, 0
      %p90 = por %p88, %p89
      %p91 = scmp.ne.s32.totalorder %s83, %s85
      %p92 = scmp.eq.s32.totalorder %s14, 31
      %p93 = por %p91, %p92
      %p94 = scmp.ne.s32.totalorder %s85, %s86
      %p95 = scmp.eq.s32.totalorder %s14, 0
      %p96 = por %p94, %p95
      %p97 = scmp.ne.s32.totalorder %s85, %s86
      %p98 = scmp.eq.s32.totalorder %s15, 31
      %p99 = por %p97, %p98
      %p101 = scmp.ne.s32.totalorder %s86, %s100
      %p102 = scmp.eq.s32.totalorder %s15, 0
      %p103 = por %p101, %p102
      %s104 = ssub.s32 %s16, %s28
      %p105 = scmp.eq.s32.totalorder %s104, 0
      %s107 = sadd.s32 %s106, 1
      %s108 = scalar_select %p105, %s106, %s107
      %p111 = pneg %p105
      %p112 = scmp.eq.s32.totalorder %s9, 31
      %p113 = por %p111, %p112
      %p114 = scmp.ne.s32.totalorder %s106, %s109
      %p115 = scmp.eq.s32.totalorder %s9, 0
      %p116 = por %p114, %p115
      %p117 = scmp.ne.s32.totalorder %s106, %s109
      %p118 = scmp.eq.s32.totalorder %s14, 31
      %p119 = por %p117, %p118
      %p120 = scmp.ne.s32.totalorder %s109, %s110
      %p121 = scmp.eq.s32.totalorder %s14, 0
      %p122 = por %p120, %p121
      %p123 = scmp.ne.s32.totalorder %s109, %s110
      %p124 = scmp.eq.s32.totalorder %s15, 31
      %p125 = por %p123, %p124
      %p127 = scmp.ne.s32.totalorder %s110, %s126
      %p128 = scmp.eq.s32.totalorder %s15, 0
      %p129 = por %p127, %p128
      %p130 = scmp.le.s32.totalorder 1, %s9
      %p131 = scmp.lt.s32.totalorder %s9, 33
      %p132 = pnand %p130, %p131
      %p133 = pneg %p132
      // Predicated region
      $region9: #{_lambda_.9} parent=5 // pred_check
        _
      $region10: #{_lambda_.9} parent=5 // pred_check_branch
        %135 = sbr.rel (%p132) target = $region12
      $region11: #{_lambda_.9} parent=5 // pred_region
        %s136 = ssub.s32 %s9, 1
        // Predicated region
        $region13: #{_lambda_.9} parent=11 // pred_check
          %p137 = pneg %p96
        $region14: #{_lambda_.9} parent=11 // pred_check_branch
          %139 = sbr.rel (%p137) target = $region16
        $region15: #{_lambda_.9} parent=11 // pred_region
          _
        $region16: #{_lambda_.9} parent=11 // pred_fallthru
          _
      $region12: #{_lambda_.9} parent=5 // pred_fallthru
        _
      %p140 = scmp.lt.s32.totalorder %s9, 32
      // Predicated region
      $region17: #{_lambda_.9} parent=5 // pred_check
        %p141 = pneg %p140
      $region18: #{_lambda_.9} parent=5 // pred_check_branch
        %143 = sbr.rel (%p141) target = $region20
      $region19: #{_lambda_.9} parent=5 // pred_region
        // Predicated region
        $region21: #{_lambda_.9} parent=19 // pred_check
          %p144 = pneg %p43
        $region22: #{_lambda_.9} parent=19 // pred_check_branch
          %146 = sbr.rel (%p144) target = $region24
        $region23: #{_lambda_.9} parent=19 // pred_region
          %s147 = sand.u32 %s33, 1
          %s148 = sand.u32 %s33, 1
          %s149 = smul.addr %s148, 16
          %s150 = scalar_lea.vmem [#allocation2], %s149
          %s151 = smul.u32 2, %s16
          %s152 = smul.u32 2, %s17
          %s153 = smul.addr %s151, 64
          %s154 = sadd.s32 %s152, %s153
          %s155 = smul.addr %s154, 4
          %s156 = scalar_lea.vmem %s0, %s155
          // Predicated region
          $region25: #{_lambda_.9} parent=23 // pred_check
            _
          $region26: #{_lambda_.9} parent=23 // pred_check_branch
            %158 = sbr.rel (0) target = $region28
          $region27: #{_lambda_.9} parent=23 // pred_region
            // Predicated region
            $region29: #{_lambda_.9} parent=27 // pred_check
              _
            $region30: #{_lambda_.9} parent=27 // pred_check_branch
              %160 = sbr.rel (0) target = $region32
            $region31: #{_lambda_.9} parent=27 // pred_region
              // Predicated region
              $region44: #{_lambda_.9} parent=31 // pred_check
                _
              $region45: #{_lambda_.9} parent=31 // pred_check_branch
                %177 = sbr.rel (0) target = $region47
              $region46: #{_lambda_.9} parent=31 // pred_region
                loop: start=0, step=1, limit=1
                $region48: #{_lambda_.9} parent=46 // loop_pre_header
                  _
                $region49: #{_lambda_.9} parent=46 // loop_header
                  %s179 = sphi 0, %s183
                  %p180 = scmp.ge.s32.totalorder %s179, 1
                  %s184 = sphi %s156, %s156
                  %s185 = sphi %s150, %s150
                $region50: #{_lambda_.9} parent=46 // loop_header_branch
                  %182 = sbr.rel (%p180) target = $region54
                $region51: #{_lambda_.9} parent=46 // loop_body
                  %v186 = vld [vmem:[%s184] sm:$0xff]
                  %187 = vst [vmem:[%s185] sm:$0xff] %v186
                  %v188 = vld [vmem:[%s184 + $0x100] sm:$0xff]
                  %189 = vst [vmem:[%s185 + $0x8] sm:$0xff] %v188
                $region52: #{_lambda_.9} parent=46 // loop_footer
                  %s183 = sadd.s32 1, %s179
                $region53: #{_lambda_.9} parent=46 // loop_footer_branch
                  %178 = sbr.rel target = $region49
                $region54: #{_lambda_.9} parent=46 // loop_exit
                  _
              $region47: #{_lambda_.9} parent=31 // pred_fallthru
                _
              // Predicated region
              $region55: #{_lambda_.9} parent=31 // pred_check
                _
              $region56: #{_lambda_.9} parent=31 // pred_check_branch
                %191 = sbr.rel target = $region58
              $region57: #{_lambda_.9} parent=31 // pred_region
                _
              $region58: #{_lambda_.9} parent=31 // pred_fallthru
                _
            $region32: #{_lambda_.9} parent=27 // pred_fallthru
              _
            // Predicated region
            $region33: #{_lambda_.9} parent=27 // pred_check
              _
            $region34: #{_lambda_.9} parent=27 // pred_check_branch
              %162 = sbr.rel target = $region36
            $region35: #{_lambda_.9} parent=27 // pred_region
              loop: start=0, step=1, limit=1
              $region37: #{_lambda_.9} parent=35 // loop_pre_header
                _
              $region38: #{_lambda_.9} parent=35 // loop_header
                %s165 = sphi 0, %s169
                %p166 = scmp.ge.s32.totalorder %s165, 1
                %s170 = sphi %s156, %s156
                %s171 = sphi %s150, %s150
              $region39: #{_lambda_.9} parent=35 // loop_header_branch
                %168 = sbr.rel (%p166) target = $region43
              $region40: #{_lambda_.9} parent=35 // loop_body
                %v172 = vld [vmem:[%s170] sm:$0xff]
                %173 = vst [vmem:[%s171] sm:$0xff] %v172
                %v174 = vld [vmem:[%s170 + $0x100] sm:$0xff]
                %175 = vst [vmem:[%s171 + $0x8] sm:$0xff] %v174
              $region41: #{_lambda_.9} parent=35 // loop_footer
                %s169 = sadd.s32 1, %s165
              $region42: #{_lambda_.9} parent=35 // loop_footer_branch
                %164 = sbr.rel target = $region38
              $region43: #{_lambda_.9} parent=35 // loop_exit
                _
            $region36: #{_lambda_.9} parent=27 // pred_fallthru
              _
          $region28: #{_lambda_.9} parent=23 // pred_fallthru
            _
          %192 = vnop
        $region24: #{_lambda_.9} parent=19 // pred_fallthru
          _
        // Predicated region
        $region59: #{_lambda_.9} parent=19 // pred_check
          %p193 = pneg %p69
        $region60: #{_lambda_.9} parent=19 // pred_check_branch
          %195 = sbr.rel (%p193) target = $region62
        $region61: #{_lambda_.9} parent=19 // pred_region
          %s196 = smul.u32 32, %s17
          %p197 = scmp.lt.s32.totalorder %s196, 1023
          %s198 = scalar_select %p197, %s196, 1023
          %s199 = smul.addr %s198, 4
          %s200 = scalar_lea.vmem %s1, %s199
          %s201 = smul.u32 32, %s17
        $region62: #{_lambda_.9} parent=19 // pred_fallthru
          _
      $region20: #{_lambda_.9} parent=5 // pred_fallthru
        _
      %p202 = scmp.le.s32.totalorder 1, %s9
      %p203 = scmp.lt.s32.totalorder %s9, 33
      %p204 = pnand %p202, %p203
      %p205 = pneg %p204
      // Predicated region
      $region63: #{_lambda_.9} parent=5 // pred_check
        _
      $region64: #{_lambda_.9} parent=5 // pred_check_branch
        %207 = sbr.rel (%p204) target = $region66
      $region65: #{_lambda_.9} parent=5 // pred_region
        %s208 = ssub.s32 %s9, 1
        %s209 = sand.u32 %s36, 1
        %s210 = sand.u32 %s36, 1
        %s211 = smul.addr %s210, 16
        %s212 = scalar_lea.vmem [#allocation2], %s211
        // Predicated region
        $region67: #{_lambda_.9} parent=65 // pred_check
          %p213 = pneg %p49
        $region68: #{_lambda_.9} parent=65 // pred_check_branch
          %215 = sbr.rel (%p213) target = $region70
        $region69: #{_lambda_.9} parent=65 // pred_region
          _
        $region70: #{_lambda_.9} parent=65 // pred_fallthru
          _
        %s216 = sand.u32 %s36, 1
        %s217 = sand.u32 %s36, 1
        %s218 = smul.addr %s217, 16
        %s219 = scalar_lea.vmem [#allocation2], %s218
        %p220 = pneg %p49
        %p221 = pneg %p46
        %s222 = smul.u32 32, %s19
        %p223 = scmp.lt.s32.totalorder %s222, 1023
        %s224 = scalar_select %p223, %s222, 1023
        %s225 = smul.addr %s224, 4
        %s226 = scalar_lea.vmem %s1, %s225
        %p227 = pneg %p75
        %p228 = pneg %p72
        %p229 = pneg %p96
        %p230 = pneg %p93
        %p231 = pneg %p122
        %p232 = pneg %p119
        %s233 = smul.u32 2, %s18
        %p234 = scmp.lt.s32.totalorder %s233, 1
        %s235 = scalar_select %p234, %s233, 1
        %s236 = smul.addr %s235, 8
        %s237 = scalar_lea.vmem %s3, %s236
        %s238 = smul.u32 2, %s18
        %s239 = smul.u32 2, %s19
        %s240 = smul.u32 32, %s19
        %p241 = scmp.lt.s32.totalorder %s240, 1023
        %s242 = scalar_select %p241, %s240, 1023
        %s243 = smul.addr %s242, 4
        %s244 = scalar_lea.vmem %s1, %s243
        %s245 = smul.u32 32, %s19
        %s246 = smul.u32 2, %s18
        %p247 = scmp.lt.s32.totalorder %s246, 1
        %s248 = scalar_select %p247, %s246, 1
        %s249 = smul.addr %s248, 8
        %s250 = scalar_lea.vmem %s3, %s249
        %s251 = smul.u32 2, %s18
        %p253 = scmp.eq.s32.totalorder %s19, 0
        // Predicated region
        $region71: #{_lambda_.9} parent=65 // pred_check
          %p254 = pneg %p253
        $region72: #{_lambda_.9} parent=65 // pred_check_branch
          %256 = sbr.rel (%p254) target = $region74
        $region73: #{_lambda_.9} parent=65 // pred_region
          %257 = vst [vmem:[%s250] sm:$0xff] 0.0
          %258 = vst [vmem:[%s250 + $0x8] sm:$0xff] 0.0
        $region74: #{_lambda_.9} parent=65 // pred_fallthru
          _
        %v259 = vld [vmem:[%s250] sm:$0xff]
        %v260 = vld [vmem:[%s250 + $0x8] sm:$0xff]
        %v261 = vld [vmem:[%s212] sm:$0xff]
        %v262 = vld [vmem:[%s212 + $0x8] sm:$0xff]
        %v263 = vld [vmem:[%s244] sm:$0xf]
        %v264 = vld [vmem:[%s244 + $0x4] sm:$0xf]
        %v265 = vld [vmem:[%s244 + $0x8] sm:$0xf]
        %v266 = vld [vmem:[%s244 + $0xc] sm:$0xf]
        %v267 = vld [vmem:[%s244 + $0x10] sm:$0xf]
        %v268 = vld [vmem:[%s244 + $0x14] sm:$0xf]
        %v269 = vld [vmem:[%s244 + $0x18] sm:$0xf]
        %v270 = vld [vmem:[%s244 + $0x1c] sm:$0xf]
        %v271 = vld [vmem:[%s244 + $0x20] sm:$0xf]
        %v272 = vld [vmem:[%s244 + $0x24] sm:$0xf]
        %v273 = vld [vmem:[%s244 + $0x28] sm:$0xf]
        %v274 = vld [vmem:[%s244 + $0x2c] sm:$0xf]
        %v275 = vld [vmem:[%s244 + $0x30] sm:$0xf]
        %v276 = vld [vmem:[%s244 + $0x34] sm:$0xf]
        %v277 = vld [vmem:[%s244 + $0x38] sm:$0xf]
        %v278 = vld [vmem:[%s244 + $0x3c] sm:$0xf]
        %v279 = vld [vmem:[%s244 + $0x40] sm:$0xf]
        %v280 = vld [vmem:[%s244 + $0x44] sm:$0xf]
        %v281 = vld [vmem:[%s244 + $0x48] sm:$0xf]
        %v282 = vld [vmem:[%s244 + $0x4c] sm:$0xf]
        %v283 = vld [vmem:[%s244 + $0x50] sm:$0xf]
        %v284 = vld [vmem:[%s244 + $0x54] sm:$0xf]
        %v285 = vld [vmem:[%s244 + $0x58] sm:$0xf]
        %v286 = vld [vmem:[%s244 + $0x5c] sm:$0xf]
        %v287 = vld [vmem:[%s244 + $0x60] sm:$0xf]
        %v288 = vld [vmem:[%s244 + $0x64] sm:$0xf]
        %v289 = vld [vmem:[%s244 + $0x68] sm:$0xf]
        %v290 = vld [vmem:[%s244 + $0x6c] sm:$0xf]
        %v291 = vld [vmem:[%s244 + $0x70] sm:$0xf]
        %v292 = vld [vmem:[%s244 + $0x74] sm:$0xf]
        %v293 = vld [vmem:[%s244 + $0x78] sm:$0xf]
        %v294 = vld [vmem:[%s244 + $0x7c] sm:$0xf]
        %v297 = vunpack.c.l.b16 %v261
        %v298 = vunpack.c.h.b16 %v261
        %v299 = vunpack.c.l.b16 %v262
        %v300 = vunpack.c.h.b16 %v262
        %v301 = vpack.c.b16 %v299, %v297
        %v302 = vpack.c.b16 %v300, %v298
        %v337 = vunpack.c.l.b16 %v263
        %v338 = vunpack.c.l.b16 %v264
        %v339 = vunpack.c.l.b16 %v265
        %v340 = vunpack.c.l.b16 %v266
        %v341 = vunpack.c.l.b16 %v267
        %v342 = vunpack.c.l.b16 %v268
        %v343 = vunpack.c.l.b16 %v269
        %v344 = vunpack.c.l.b16 %v270
        %v345 = vunpack.c.l.b16 %v271
        %v346 = vunpack.c.l.b16 %v272
        %v347 = vunpack.c.l.b16 %v273
        %v348 = vunpack.c.l.b16 %v274
        %v349 = vunpack.c.l.b16 %v275
        %v350 = vunpack.c.l.b16 %v276
        %v351 = vunpack.c.l.b16 %v277
        %v352 = vunpack.c.l.b16 %v278
        %v353 = vunpack.c.l.b16 %v279
        %v354 = vunpack.c.l.b16 %v280
        %v355 = vunpack.c.l.b16 %v281
        %v356 = vunpack.c.l.b16 %v282
        %v357 = vunpack.c.l.b16 %v283
        %v358 = vunpack.c.l.b16 %v284
        %v359 = vunpack.c.l.b16 %v285
        %v360 = vunpack.c.l.b16 %v286
        %v361 = vunpack.c.l.b16 %v287
        %v362 = vunpack.c.l.b16 %v288
        %v363 = vunpack.c.l.b16 %v289
        %v364 = vunpack.c.l.b16 %v290
        %v365 = vunpack.c.l.b16 %v291
        %v366 = vunpack.c.l.b16 %v292
        %v367 = vunpack.c.l.b16 %v293
        %v368 = vunpack.c.l.b16 %v294
        %v369 = vpack.c.b16 %v338, %v337
        %v370 = vpack.c.b16 %v340, %v339
        %v371 = vpack.c.b16 %v342, %v341
        %v372 = vpack.c.b16 %v344, %v343
        %v373 = vpack.c.b16 %v346, %v345
        %v374 = vpack.c.b16 %v348, %v347
        %v375 = vpack.c.b16 %v350, %v349
        %v376 = vpack.c.b16 %v352, %v351
        %v377 = vpack.c.b16 %v354, %v353
        %v378 = vpack.c.b16 %v356, %v355
        %v379 = vpack.c.b16 %v358, %v357
        %v380 = vpack.c.b16 %v360, %v359
        %v381 = vpack.c.b16 %v362, %v361
        %v382 = vpack.c.b16 %v364, %v363
        %v383 = vpack.c.b16 %v366, %v365
        %v384 = vpack.c.b16 %v368, %v367
        %401 = vmatprep.subr.bf16.mxu0 0
        %402 = vmatpush1.bf16.msra.mxu0 %v369
        %403 = vmatprep.subr.bf16.mxu0 0
        %404 = vmatpush1.bf16.msra.mxu0 %v370
        %405 = vmatprep.subr.bf16.mxu0 0
        %406 = vmatpush1.bf16.msra.mxu0 %v371
        %407 = vmatprep.subr.bf16.mxu0 0
        %408 = vmatpush1.bf16.msra.mxu0 %v372
        %409 = vmatprep.subr.bf16.mxu0 0
        %410 = vmatpush1.bf16.msra.mxu0 %v373
        %411 = vmatprep.subr.bf16.mxu0 0
        %412 = vmatpush1.bf16.msra.mxu0 %v374
        %413 = vmatprep.subr.bf16.mxu0 0
        %414 = vmatpush1.bf16.msra.mxu0 %v375
        %415 = vmatprep.subr.bf16.mxu0 0
        %416 = vmatpush1.bf16.msra.mxu0 %v376
        %417 = vmatprep.subr.bf16.mxu0 0
        %418 = vmatpush1.bf16.msra.mxu0 %v377
        %419 = vmatprep.subr.bf16.mxu0 0
        %420 = vmatpush1.bf16.msra.mxu0 %v378
        %421 = vmatprep.subr.bf16.mxu0 0
        %422 = vmatpush1.bf16.msra.mxu0 %v379
        %423 = vmatprep.subr.bf16.mxu0 0
        %424 = vmatpush1.bf16.msra.mxu0 %v380
        %425 = vmatprep.subr.bf16.mxu0 0
        %426 = vmatpush1.bf16.msra.mxu0 %v381
        %427 = vmatprep.subr.bf16.mxu0 0
        %428 = vmatpush1.bf16.msra.mxu0 %v382
        %429 = vmatprep.subr.bf16.mxu0 0
        %430 = vmatpush1.bf16.msra.mxu0 %v383
        %431 = vmatprep.subr.bf16.mxu0 0
        %432 = vmatpush1.bf16.msra.mxu0 %v384
        %433 = vmatprep.mubr.bf16.mxu0 %v302
        %434 = vmatmul.mubr.bf16.gmra.mrb[0].mxu0 %v301
        %v435 = vpop.f32.mrb[0].mxu0
        %v436 = vadd.f32 0.0, %v435
        %v437 = vpop.f32.mrb[0].mxu0
        %v438 = vpop.f32.mrb[0].mxu0
        %v439 = vadd.f32 0.0, %v438
        %v440 = vpop.f32.mrb[0].mxu0
        %441 = vdwg.mxu0
        %v442 = vadd.f32 %v259, %v436
        %v443 = vadd.f32 %v260, %v439
        %444 = vst [vmem:[%s250] sm:$0xff] %v442
        %445 = vst [vmem:[%s250 + $0x8] sm:$0xff] %v443
        %p446 = scmp.eq.s32.totalorder %s19, 31
        // Predicated region
        $region75: #{_lambda_.9} parent=65 // pred_check
          %p447 = pneg %p446
        $region76: #{_lambda_.9} parent=65 // pred_check_branch
          %449 = sbr.rel (%p447) target = $region78
        $region77: #{_lambda_.9} parent=65 // pred_region
          %v450 = vld [vmem:[%s250] sm:$0xff]
          %v451 = vld [vmem:[%s250 + $0x8] sm:$0xff]
          %v452 = vld [vmem:[%s2] sm:$0x1]
          %v454 = vlaneseq
          %v455 = vshrl.u32 %v454, 7
          %v456 = vsub.s32 0, %v455
          %v457 = vrot.slane %v452, %v456
          %v459 = vadd.f32 %v450, %v457
          %v460 = vadd.f32 %v451, %v457
          %v461 = vxor.u32 %v459, 2147483648
          %v462 = vxor.u32 %v460, 2147483648
          %v463 = vmul.f32 %v461, 1.442695
          %v464 = vpow.pop %v463
          %v465 = vmul.f32 %v462, 1.442695
          %v466 = vpow.pop %v465
          %v467 = vadd.f32 %v464, 1.0
          %v468 = vadd.f32 %v466, 1.0
          %v469 = vrcp.pop %v467
          %v470 = vmul.f32 1.0, %v469
          %v471 = vrcp.pop %v468
          %v472 = vmul.f32 1.0, %v471
          %473 = vst [vmem:[%s250] sm:$0xff] %v470
          %474 = vst [vmem:[%s250 + $0x8] sm:$0xff] %v472
        $region78: #{_lambda_.9} parent=65 // pred_fallthru
          _
        %s475 = smul.u32 2, %s18
        %p476 = scmp.lt.s32.totalorder %s475, 1
        %s477 = scalar_select %p476, %s475, 1
        %s478 = smul.addr %s477, 8
        %s479 = scalar_lea.vmem %s3, %s478
        // Predicated region
        $region79: #{_lambda_.9} parent=65 // pred_check
          %p480 = pneg %p119
        $region80: #{_lambda_.9} parent=65 // pred_check_branch
          %482 = sbr.rel (%p480) target = $region82
        $region81: #{_lambda_.9} parent=65 // pred_region
          %s483 = smul.u32 2, %s18
        $region82: #{_lambda_.9} parent=65 // pred_fallthru
          _
        // Predicated region
        $region83: #{_lambda_.9} parent=65 // pred_check
          %p484 = pneg %p119
        $region84: #{_lambda_.9} parent=65 // pred_check_branch
          %486 = sbr.rel (%p484) target = $region86
        $region85: #{_lambda_.9} parent=65 // pred_region
          %s487 = smul.u32 2, %s18
          %p488 = scmp.lt.s32.totalorder %s487, 1
          %s489 = scalar_select %p488, %s487, 1
          %s490 = smul.addr %s489, 8
          %s491 = scalar_lea.vmem %s3, %s490
        $region86: #{_lambda_.9} parent=65 // pred_fallthru
          _
      $region66: #{_lambda_.9} parent=5 // pred_fallthru
        _
      %p492 = scmp.le.s32.totalorder 2, %s9
      // Predicated region
      $region87: #{_lambda_.9} parent=5 // pred_check
        %p493 = pneg %p492
      $region88: #{_lambda_.9} parent=5 // pred_check_branch
        %495 = sbr.rel (%p493) target = $region90
      $region89: #{_lambda_.9} parent=5 // pred_region
        %s496 = ssub.s32 %s9, 2
      $region90: #{_lambda_.9} parent=5 // pred_fallthru
        _
    $region6: #{_lambda_.9} parent=1 // loop_footer
      %s13 = sadd.s32 1, %s9
    $region7: #{_lambda_.9} parent=1 // loop_footer_branch
      %8 = sbr.rel target = $region3
    $region8: #{_lambda_.9} parent=1 // loop_exit
      _

</llo_original>
